<compile_context>
chip_gen: v5e
topology: v5e:2x2
jax: 0.10.0
libtpu: 0.0.40
codegen_flags: <defaults>
</compile_context>

<pallas_src>
import functools
import math

import jax
import jax.numpy as jnp
from jax.experimental import pallas as pl
from jax.experimental.pallas import tpu as pltpu

EPS = 1e-5  # GraphNorm eps (torch_geometric default)

_SMEM = functools.partial(pl.BlockSpec, memory_space=pltpu.MemorySpace.SMEM)


# --------------------------------------------------------------------------- #
# Tiling helpers
# --------------------------------------------------------------------------- #
def _round_up(x, m):
    return ((x + m - 1) // m) * m


def _vmem_limit_bytes():
    # Generation-aware scoped-VMEM limit (v7x has 64 MiB/TC, v5e/v6e 128 MiB).
    try:
        cap = pltpu.get_tpu_info().vmem_capacity_bytes
    except Exception:
        cap = 64 * 1024 * 1024
    return int(min(3 * cap // 4, 96 * 1024 * 1024))


def _pick_tiles(n, row_tile=None, col_tile=None):
    """Row tile (target nodes), column tile (source nodes), padded node count."""
    if row_tile is None:
        tm = 256
        # keep at least 2 row tiles so a "parallel" grid can split across TCs (v7x)
        while tm > 8 and (n + tm - 1) // tm < 2:
            tm //= 2
        tm = max(8, tm)
    else:
        tm = max(8, row_tile)
    tk = 512 if col_tile is None else col_tile
    if n <= tk:
        np_ = _round_up(n, tm)
        tk = np_                       # single, full-width column block
    else:
        np_ = _round_up(n, (tm * tk) // math.gcd(tm, tk))
    return tm, tk, np_


def _col_blk(i, j, cs_ref, cc_ref, nj):
    # Column block for grid step (i, j): stay inside the row tile's same-graph
    # band; skipped steps (j >= count) re-address the last in-band block so the
    # pipeline does not issue fresh DMAs for them.
    jj = jnp.minimum(j, jnp.maximum(cc_ref[i] - 1, 0))
    return jnp.clip(cs_ref[i] + jj, 0, nj - 1)


# --------------------------------------------------------------------------- #
# Pallas kernels
# --------------------------------------------------------------------------- #
def _edge_stats_kernel(cs_ref, cc_ref, prow_ref, pcol_ref, brow_ref, bcol_ref,
                       out_ref, *, cutoff):
    """Per-row [edge count, sum(dist), sum(dist^2)] partial sums (lanes 0..2)."""
    i = pl.program_id(0)
    j = pl.program_id(1)
    tm = prow_ref.shape[0]
    tk = pcol_ref.shape[1]

    @pl.when(j == 0)
    def _init():
        out_ref[...] = jnp.zeros_like(out_ref)

    @pl.when(j < cc_ref[i])
    def _accumulate():
        prow = prow_ref[...]
        pcol = pcol_ref[...]
        d2 = None
        for k in range(3):
            dk = prow[:, k:k + 1] - pcol[k:k + 1, :]
            d2 = dk * dk if d2 is None else d2 + dk * dk
        dist = jnp.sqrt(d2)
        col_base = (cs_ref[i] + j) * tk
        row_rel = (i * tm - col_base) + jax.lax.broadcasted_iota(jnp.int32, (tm, 1), 0)
        not_self = jax.lax.broadcasted_iota(jnp.int32, (tm, tk), 1) != row_rel
        pred = (brow_ref[...] == bcol_ref[...]) & not_self & (d2 <= cutoff * cutoff)
        cnt = jnp.sum(jnp.where(pred, 1.0, 0.0), axis=1, keepdims=True)
        sd = jnp.sum(jnp.where(pred, dist, 0.0), axis=1, keepdims=True)
        sd2 = jnp.sum(jnp.where(pred, d2, 0.0), axis=1, keepdims=True)
        lane = jax.lax.broadcasted_iota(jnp.int32, (tm, 128), 1)
        out_ref[...] = (out_ref[...]
                        + jnp.where(lane == 0, cnt, 0.0)
                        + jnp.where(lane == 1, sd, 0.0)
                        + jnp.where(lane == 2, sd2, 0.0))


def _moginconv_kernel(cs_ref, cc_ref,
                      we1_ref, be1_ref, we2_ref, be2_ref,
                      prow_ref, pcol_ref, brow_ref, bcol_ref,
                      mean_ref, istd_ref, xw1_ref, bn1_ref, wn2_ref, bn2_ref,
                      out_ref, lb_ref, acc_ref, lbacc_ref, *, cutoff):
    i = pl.program_id(0)
    j = pl.program_id(1)
    tm = prow_ref.shape[0]
    tk = pcol_ref.shape[1]
    n_experts, _, hn = xw1_ref.shape
    n_hidden_edge = we1_ref.shape[1]

    @pl.when(j == 0)
    def _init():
        acc_ref[...] = jnp.zeros_like(acc_ref)
        lbacc_ref[...] = jnp.zeros_like(lbacc_ref)

    @pl.when(j < cc_ref[i])
    def _accumulate():
        prow = prow_ref[...]
        pcol = pcol_ref[...]
        # Pairwise distances for this (row tile, column block); no (N, N) HBM I/O.
        d2 = None
        for k in range(3):
            dk = prow[:, k:k + 1] - pcol[k:k + 1, :]
            d2 = dk * dk if d2 is None else d2 + dk * dk
        dist = jnp.sqrt(d2)

        # Radius-graph predicate: same graph, no self-loop, inside the cutoff.
        col_base = (cs_ref[i] + j) * tk
        row_rel = (i * tm - col_base) + jax.lax.broadcasted_iota(jnp.int32, (tm, 1), 0)
        not_self = jax.lax.broadcasted_iota(jnp.int32, (tm, tk), 1) != row_rel
        pred = (brow_ref[...] == bcol_ref[...]) & not_self & (d2 <= cutoff * cutoff)
        ewm = jnp.where(pred, (cutoff - dist) * (1.0 / cutoff), 0.0)  # weight*mask
        dn = (dist - mean_ref[...]) * istd_ref[...]       # GraphNorm'd distance
        # (dist-norm bias folded into be1 in the wrapper)

        # Edge MLP (1 -> He -> E experts), streamed over the hidden dim.
        # TODO(synk): switch to lax.fori_loop(unroll=True) + VMEM logits if He/E grow.
        logit = [None] * n_experts
        for k in range(n_hidden_edge):
            h1k = jnp.maximum(dn * we1_ref[0, k] + be1_ref[0, k], 0.0)
            for e in range(n_experts):
                t = h1k * we2_ref[k, e]
                logit[e] = t if logit[e] is None else logit[e] + t
        mx = None
        for e in range(n_experts):
            logit[e] = logit[e] + be2_ref[0, e]
            mx = logit[e] if mx is None else jnp.maximum(mx, logit[e])
        p = [jnp.exp(logit[e] - mx) for e in range(n_experts)]
        den = p[0]
        for e in range(1, n_experts):
            den = den + p[e]
        inv = pl.reciprocal(den, approx=True)   # EUP path, off the VALU critical path
        inv_m = jnp.where(pred, inv, 0.0)       # for the load-balancing sums
        inv_ew = inv * ewm                      # softmax-normalizer * edge_weight * mask

        lane = jax.lax.broadcasted_iota(jnp.int32, (8, 128), 1)
        lb_new = lbacc_ref[...]
        for e in range(n_experts):
            # routed adjacency rows in bf16; xw1 (= x @ W1_e, hoisted) already bf16
            a = (p[e] * inv_ew).astype(xw1_ref.dtype)
            acc_ref[e] = acc_ref[e] + jnp.dot(a, xw1_ref[e],
                                              preferred_element_type=jnp.float32)
            lb_new = lb_new + jnp.where(lane == e, jnp.sum(p[e] * inv_m), 0.0)
        lbacc_ref[...] = lb_new

    @pl.when(j == pl.num_programs(1) - 1)
    def _finalize():
        res = None
        for e in range(n_experts):
            he = jnp.maximum(acc_ref[e] + bn1_ref[e], 0.0)
            t = jnp.dot(he, wn2_ref[e], preferred_element_type=jnp.float32)
            res = t if res is None else res + t
        out_ref[...] = res + bn2_ref[...]        # lane-dense (TM, 128k) store
        lb_ref[...] = lbacc_ref[...]


def _graphnorm_tanh_kernel(x_ref, ohr_ref, mgs_ref, isw_ref, b_ref, out_ref):
    # per-row broadcast of per-graph stats via two tiny MXU matmuls
    mean_rows = jnp.dot(ohr_ref[...], mgs_ref[...], preferred_element_type=jnp.float32)
    isw_rows = jnp.dot(ohr_ref[...], isw_ref[...], preferred_element_type=jnp.float32)
    out_ref[...] = jnp.tanh((x_ref[...] - mean_rows) * isw_rows + b_ref[...])


# --------------------------------------------------------------------------- #
# Wrappers
# --------------------------------------------------------------------------- #
def edge_distance_stats(pos_p, batch_f, cb_start, cb_count, *, cutoff, tm, tk,
                        vmem_limit):
    np_ = pos_p.shape[0]
    ni, nj = np_ // tm, np_ // tk
    col_map = lambda i, j, cs, cc: (0, _col_blk(i, j, cs, cc, nj))
    row_map = lambda i, j, cs, cc: (i, 0)
    return pl.pallas_call(
        functools.partial(_edge_stats_kernel, cutoff=cutoff),
        grid_spec=pltpu.PrefetchScalarGridSpec(
            num_scalar_prefetch=2,
            grid=(ni, nj),
            in_specs=[
                pl.BlockSpec((tm, 3), row_map),
                pl.BlockSpec((3, tk), col_map),
                pl.BlockSpec((tm, 1), row_map),
                pl.BlockSpec((1, tk), col_map),
            ],
            out_specs=pl.BlockSpec((tm, 128), row_map),
        ),
        out_shape=jax.ShapeDtypeStruct((np_, 128), jnp.float32),
        compiler_params=pltpu.CompilerParams(
            dimension_semantics=("parallel", "arbitrary"),
            vmem_limit_bytes=vmem_limit),
    )(cb_start, cb_count, pos_p, pos_p.T, batch_f[:, None], batch_f[None, :])


def mogin_conv(pos_p, batch_f, mean_n, istd_n, cb_start, cb_count, h, conv_params,
               *, cutoff, b_dn, n_edges, tm, tk, vmem_limit):
    we1, be1, we2, be2, wn1, bn1, wn2, bn2 = conv_params
    np_ = h.shape[0]
    n_hidden_edge, n_experts = we2.shape
    hn = wn1.shape[2]
    d_out = wn2.shape[2]
    d_pad = _round_up(d_out, 128)                 # lane-dense output slab
    ni, nj = np_ // tm, np_ // tk

    # Hoist the first node-MLP Linear:  (A @ x) @ W1 == A @ (x @ W1).  bf16 storage
    # (the MXU truncates f32 operands to bf16 anyway) halves VMEM/DMA cost.
    xw1 = jnp.einsum('nd,edh->enh', h, wn1).astype(jnp.bfloat16)        # (E, Np, Hn)
    wn2_pad = jnp.pad(wn2, ((0, 0), (0, 0), (0, d_pad - d_out)))
    bn2_pad = jnp.pad(jnp.sum(bn2, axis=0), ((0, 0), (0, d_pad - d_out)))
    be1_f = be1 + b_dn * we1          # fold the dist-norm bias into the edge MLP

    col_map = lambda i, j, cs, cc: (0, _col_blk(i, j, cs, cc, nj))
    row_map = lambda i, j, cs, cc: (i, 0)
    const2 = lambda i, j, cs, cc: (0, 0)
    const3 = lambda i, j, cs, cc: (0, 0, 0)

    out, lb_part = pl.pallas_call(
        functools.partial(_moginconv_kernel, cutoff=cutoff),
        grid_spec=pltpu.PrefetchScalarGridSpec(
            num_scalar_prefetch=2,
            grid=(ni, nj),
            in_specs=[
                _SMEM(), _SMEM(), _SMEM(), _SMEM(),                     # edge-MLP params
                pl.BlockSpec((tm, 3), row_map),                          # pos (rows)
                pl.BlockSpec((3, tk), col_map),                          # pos^T (cols)
                pl.BlockSpec((tm, 1), row_map),                          # batch id (rows)
                pl.BlockSpec((1, tk), col_map),                          # batch id (cols)
                pl.BlockSpec((tm, 1), row_map),                          # edge-dist mean
                pl.BlockSpec((tm, 1), row_map),                          # edge-dist 1/std
                pl.BlockSpec((n_experts, tk, hn),
                             lambda i, j, cs, cc: (0, _col_blk(i, j, cs, cc, nj), 0)),
                pl.BlockSpec((n_experts, 1, hn), const3),                # bn1
                pl.BlockSpec((n_experts, hn, d_pad), const3),            # wn2 (padded)
                pl.BlockSpec((1, d_pad), const2),                        # summed bn2
            ],
            out_specs=(pl.BlockSpec((tm, d_pad), row_map),
                       pl.BlockSpec((8, 128), row_map)),
            scratch_shapes=[pltpu.VMEM((n_experts, tm, hn), jnp.float32),
                            pltpu.VMEM((8, 128), jnp.float32)],
        ),
        out_shape=(jax.ShapeDtypeStruct((np_, d_pad), jnp.float32),
                   jax.ShapeDtypeStruct((ni * 8, 128), jnp.float32)),
        compiler_params=pltpu.CompilerParams(
            dimension_semantics=("parallel", "arbitrary"),
            vmem_limit_bytes=vmem_limit),
    )(cb_start, cb_count, we1, be1_f, we2, be2,
      pos_p, pos_p.T, batch_f[:, None], batch_f[None, :], mean_n, istd_n,
      xw1, bn1, wn2_pad, bn2_pad)

    attr_sums = lb_part.reshape(ni, 8, 128)[:, 0, :n_experts].sum(axis=0)
    lb = jnp.sum((attr_sums / n_edges) ** 2) * n_experts
    return out[:, :d_out], lb


def graphnorm_tanh(h, oh, cnt, w, b, ms, *, tm, vmem_limit):
    # Per-graph stats are cheap O(G*N*D) wrapper matmuls; the normalize+tanh pass
    # is row-tiled in Pallas with only (TM, G) + (G, D) operands resident.
    # TODO(synk): fuse the stats into a Pallas row-block reduction for very large N/G.
    np_, d = h.shape
    gp = oh.shape[0]
    mean_g = jnp.dot(oh, h) / cnt                     # (G, D)
    cen = h - jnp.dot(oh.T, mean_g) * ms              # (Np, D)
    var_g = jnp.dot(oh, cen * cen) / cnt              # (G, D)
    mgs_g = mean_g * ms
    isw_g = w / jnp.sqrt(var_g + EPS)
    return pl.pallas_call(
        _graphnorm_tanh_kernel,
        grid=(np_ // tm,),
        out_shape=jax.ShapeDtypeStruct((np_, d), jnp.float32),
        in_specs=[pl.BlockSpec((tm, d), lambda i: (i, 0)),
                  pl.BlockSpec((tm, gp), lambda i: (i, 0)),
                  pl.BlockSpec((gp, d), lambda i: (0, 0)),
                  pl.BlockSpec((gp, d), lambda i: (0, 0)),
                  pl.BlockSpec((1, d), lambda i: (0, 0))],
        out_specs=pl.BlockSpec((tm, d), lambda i: (i, 0)),
        compiler_params=pltpu.CompilerParams(
            dimension_semantics=("parallel",), vmem_limit_bytes=vmem_limit),
    )(h, oh.T, mgs_g, isw_g, b)


def mogin2_forward(atom_type, pos, batch, params, n_graphs, cutoff=10.0,
                   routing_loss_weight=0.1, row_tile=None, col_tile=None):
    n = pos.shape[0]
    batch = batch.astype(jnp.int32)
    tm, tk, np_ = _pick_tiles(n, row_tile, col_tile)
    pad = np_ - n
    ni, nj = np_ // tm, np_ // tk
    vmem_limit = _vmem_limit_bytes()

    # Padded node arrays; padded nodes get unique negative graph ids so they never
    # match any real row/column in the same-graph mask.
    pos_p = jnp.concatenate([pos, jnp.zeros((pad, 3), jnp.float32)], axis=0)
    batch_p = jnp.concatenate([batch, -(1 + jnp.arange(pad, dtype=jnp.int32))])
    batch_f = batch_p.astype(jnp.float32)

    # Per-row-tile same-graph column band (O(N) wrapper work; scalar-prefetched).
    idx = jnp.arange(n, dtype=jnp.int32)
    col_min_g = jnp.full((n_graphs,), np_, jnp.int32).at[batch].min(idx)
    col_max_g = jnp.full((n_graphs,), -1, jnp.int32).at[batch].max(idx)
    row_lo = jnp.concatenate([col_min_g[batch], jnp.full((pad,), np_, jnp.int32)])
    row_hi = jnp.concatenate([col_max_g[batch], jnp.full((pad,), -1, jnp.int32)])
    lo_t = row_lo.reshape(ni, tm).min(axis=1)
    hi_t = row_hi.reshape(ni, tm).max(axis=1)
    cb_start = jnp.clip(lo_t // tk, 0, nj - 1).astype(jnp.int32)
    cb_end = jnp.clip((hi_t + tk) // tk, 0, nj)
    cb_count = jnp.maximum(cb_end - cb_start, 0).astype(jnp.int32)

    # Per-graph edge-distance statistics via a tiled Pallas reduction (no (N,N)).
    rowstats = edge_distance_stats(pos_p, batch_f, cb_start, cb_count,
                                   cutoff=cutoff, tm=tm, tk=tk,
                                   vmem_limit=vmem_limit)
    node_oh = (batch[None, :] == jnp.arange(n_graphs)[:, None]).astype(jnp.float32)
    per_g = jnp.dot(node_oh, rowstats[:n, :3])        # (G, 3): cnt, sum d, sum d^2
    w_dn, b_dn, ms_dn = params['dist_norm']
    cnt_e = jnp.maximum(per_g[:, 0], 1.0)
    mean_d = per_g[:, 1] / cnt_e
    ex_d2 = per_g[:, 2] / cnt_e
    var_d = jnp.maximum(ex_d2 - (2.0 * ms_dn - ms_dn * ms_dn) * mean_d * mean_d, 0.0)
    mean_eff_g = mean_d * ms_dn
    istd_eff_g = w_dn / jnp.sqrt(var_d + EPS)
    n_edges = jnp.maximum(jnp.sum(per_g[:, 0]), 1.0)
    # TODO(synk): radius_graph's max_num_neighbors top-k truncation not implemented.
    mean_n = jnp.concatenate([mean_eff_g[batch],
                              jnp.zeros((pad,), jnp.float32)])[:, None]
    istd_n = jnp.concatenate([istd_eff_g[batch],
                              jnp.ones((pad,), jnp.float32)])[:, None]

    # Node embedding + GraphNorm helpers.
    d0 = params['emb'].shape[1]
    h = jnp.concatenate([params['emb'][atom_type],
                         jnp.zeros((pad, d0), jnp.float32)], axis=0)
    oh = (batch_p[None, :] ==
          jnp.arange(n_graphs, dtype=jnp.int32)[:, None]).astype(jnp.float32)
    cnt = jnp.maximum(oh.sum(axis=1, keepdims=True), 1.0)

    n_convs = len(params['convs'])
    total_lb = jnp.float32(0.0)
    for i, conv_p in enumerate(params['convs']):
        h, lb = mogin_conv(pos_p, batch_f, mean_n, istd_n, cb_start, cb_count, h,
                           conv_p, cutoff=cutoff, b_dn=b_dn, n_edges=n_edges,
                           tm=tm, tk=tk, vmem_limit=vmem_limit)
        total_lb = total_lb + lb / n_convs
        if i + 1 < n_convs:
            w_gn, b_gn, ms_gn = params['norms'][i]
            h = graphnorm_tanh(h, oh, cnt, w_gn, b_gn, ms_gn,
                               tm=tm, vmem_limit=vmem_limit)

    # Readout: per-graph mean over nodes, then mean over features.
    g_mean = jnp.dot(oh, h) / cnt
    return g_mean.mean(-1), total_lb * routing_loss_weight


# --------------------------------------------------------------------------- #
# Deterministic parameter init
# --------------------------------------------------------------------------- #
def _dense_init(key, fan_in, fan_out):
    scale = 1.0 / jnp.sqrt(jnp.float32(fan_in))
    kw, kb = jax.random.split(key)
    w = jax.random.uniform(kw, (fan_in, fan_out), jnp.float32, -scale, scale)
    b = jax.random.uniform(kb, (fan_out,), jnp.float32, -scale, scale)
    return w, b


def init_conv_params(key, node_dims, edge_dims):
    d_in, h_n, d_out = node_dims          # node MLP: d_in -> h_n -> d_out
    _, h_e, n_exp = edge_dims             # edge MLP: 1 -> h_e -> n_exp experts
    keys = jax.random.split(key, 2 + 2 * n_exp)
    we1, be1 = _dense_init(keys[0], 1, h_e)
    we2, be2 = _dense_init(keys[1], h_e, n_exp)
    wn1, bn1, wn2, bn2 = [], [], [], []
    for e in range(n_exp):
        w1, b1 = _dense_init(keys[2 + 2 * e], d_in, h_n)
        w2, b2 = _dense_init(keys[3 + 2 * e], h_n, d_out)
        wn1.append(w1); bn1.append(b1[None, :])
        wn2.append(w2); bn2.append(b2[None, :])
    return (we1, be1[None, :], we2, be2[None, :],
            jnp.stack(wn1), jnp.stack(bn1), jnp.stack(wn2), jnp.stack(bn2))


# --------------------------------------------------------------------------- #
if __name__ == "__main__":
    key = jax.random.PRNGKey(0)
    N = 16                                        # 2 graphs x 8 nodes
    node_dimses = [[8, 16, 8], [8, 16, 8]]        # per-layer node MLP dims
    edge_dimses = [[1, 8, 4], [1, 8, 4]]          # per-layer edge MLP dims (4 experts)
    cutoff = 10.0

    keys = jax.random.split(key, 3 + len(node_dimses))
    k_emb, k_pos, k_at = keys[0], keys[1], keys[2]
    emb = jax.random.normal(k_emb, (200, node_dimses[0][0]), jnp.float32)
    conv_params = [init_conv_params(k, nd, ed)
                   for k, nd, ed in zip(keys[3:], node_dimses, edge_dimses)]
    norm_params = [(jnp.ones((1, nd[-1]), jnp.float32),   # GraphNorm weight
                    jnp.zeros((1, nd[-1]), jnp.float32),  # bias
                    jnp.ones((1, nd[-1]), jnp.float32))   # mean_scale
                   for nd in node_dimses]
    params = dict(emb=emb, convs=conv_params, norms=norm_params,
                  dist_norm=(jnp.float32(1.0), jnp.float32(0.0), jnp.float32(1.0)))

    pos = jax.random.uniform(k_pos, (N, 3), jnp.float32) * 2.0   # all dists << cutoff
    atom_type = jax.random.randint(k_at, (N,), 0, 200)
    batch = jnp.repeat(jnp.arange(2, dtype=jnp.int32), N // 2)

    @jax.jit
    def run(atom_type, pos, batch):
        # auto tiling -> 2 row tiles x 1 column block at this toy size (exercises
        # the banded grid, the lb partial reduction, and the lane-dense output).
        return mogin2_forward(atom_type, pos, batch, params, n_graphs=2,
                              cutoff=cutoff, routing_loss_weight=0.1)

    out, lb_loss = run(atom_type, pos, batch)
    jax.block_until_ready((out, lb_loss))
    assert out.shape == (2,) and bool(jnp.all(jnp.isfinite(out)))
    assert bool(jnp.isfinite(lb_loss))
    print("KERNEL_OK")
</pallas_src>

<mosaic_0001>
module attributes {stable_mosaic.version = 11 : i64} {
  func.func @_edge_stats_kernel(%arg0: i32, %arg1: i32, %arg2: memref<2xi32, #tpu.memory_space<smem>>, %arg3: memref<2xi32, #tpu.memory_space<smem>>, %arg4: memref<8x3xf32, #tpu.memory_space<vmem>>, %arg5: memref<3x16xf32, #tpu.memory_space<vmem>>, %arg6: memref<8x1xf32, #tpu.memory_space<vmem>>, %arg7: memref<1x16xf32, #tpu.memory_space<vmem>>, %arg8: memref<8x128xf32, #tpu.memory_space<vmem>>) attributes {dimension_semantics = [#tpu.dimension_semantics<parallel>, #tpu.dimension_semantics<arbitrary>], iteration_bounds = array<i64: 2, 1>, scalar_prefetch = 2 : i64, scratch_operands = 0 : i64, tpu.core_type = #tpu.core_type<tc>, window_params = [{transform_indices = @transform_0, window_bounds = array<i64: 8, 3>}, {transform_indices = @transform_1, window_bounds = array<i64: 3, 16>}, {transform_indices = @transform_2, window_bounds = array<i64: 8, 1>}, {transform_indices = @transform_3, window_bounds = array<i64: 1, 16>}, {transform_indices = @transform_4, window_bounds = array<i64: 8, 128>}]} {
    %c0_i32 = arith.constant 0 : i32
    %0 = arith.cmpi eq, %arg1, %c0_i32 : i32
    %1 = arith.extui %0 : i1 to i32
    %c0_i32_0 = arith.constant 0 : i32
    %2 = arith.cmpi ne, %1, %c0_i32_0 : i32
    scf.if %2 {
      %cst = arith.constant 0.000000e+00 : f32
      %8 = vector.broadcast %cst : f32 to vector<8x128xf32>
      %c0 = arith.constant 0 : index
      %c0_2 = arith.constant 0 : index
      %9 = vector.load %arg8[%c0, %c0_2] : memref<8x128xf32, #tpu.memory_space<vmem>>, vector<8x128xf32>
      tpu.vector_store %arg8[%c0, %c0_2], %8 {strides = array<i32>} : memref<8x128xf32, #tpu.memory_space<vmem>>, vector<8x128xf32>,
    } else {
    }
    %3 = arith.index_cast %arg0 : i32 to index
    %4 = memref.load %arg3[%3] : memref<2xi32, #tpu.memory_space<smem>>
    %5 = arith.cmpi slt, %arg1, %4 : i32
    %6 = arith.extui %5 : i1 to i32
    %c0_i32_1 = arith.constant 0 : i32
    %7 = arith.cmpi ne, %6, %c0_i32_1 : i32
    scf.if %7 {
      %c0 = arith.constant 0 : index
      %c0_2 = arith.constant 0 : index
      %8 = vector.load %arg4[%c0, %c0_2] : memref<8x3xf32, #tpu.memory_space<vmem>>, vector<8x3xf32>
      %c0_3 = arith.constant 0 : index
      %c0_4 = arith.constant 0 : index
      %9 = vector.load %arg5[%c0_3, %c0_4] : memref<3x16xf32, #tpu.memory_space<vmem>>, vector<3x16xf32>
      %10 = vector.extract_strided_slice %8 {offsets = [0, 0], sizes = [8, 1], strides = [1, 1]} : vector<8x3xf32> to vector<8x1xf32>
      %11 = vector.extract_strided_slice %9 {offsets = [0, 0], sizes = [1, 16], strides = [1, 1]} : vector<3x16xf32> to vector<1x16xf32>
      %12 = vector.broadcast %10 : vector<8x1xf32> to vector<8x16xf32>
      %13 = vector.broadcast %11 : vector<1x16xf32> to vector<8x16xf32>
      %14 = arith.subf %12, %13 : vector<8x16xf32>
      %15 = arith.mulf %14, %14 : vector<8x16xf32>
      %16 = vector.extract_strided_slice %8 {offsets = [0, 1], sizes = [8, 1], strides = [1, 1]} : vector<8x3xf32> to vector<8x1xf32>
      %17 = vector.extract_strided_slice %9 {offsets = [1, 0], sizes = [1, 16], strides = [1, 1]} : vector<3x16xf32> to vector<1x16xf32>
      %18 = vector.broadcast %16 : vector<8x1xf32> to vector<8x16xf32>
      %19 = vector.broadcast %17 : vector<1x16xf32> to vector<8x16xf32>
      %20 = arith.subf %18, %19 : vector<8x16xf32>
      %21 = arith.mulf %20, %20 : vector<8x16xf32>
      %22 = arith.addf %15, %21 : vector<8x16xf32>
      %23 = vector.extract_strided_slice %8 {offsets = [0, 2], sizes = [8, 1], strides = [1, 1]} : vector<8x3xf32> to vector<8x1xf32>
      %24 = vector.extract_strided_slice %9 {offsets = [2, 0], sizes = [1, 16], strides = [1, 1]} : vector<3x16xf32> to vector<1x16xf32>
      %25 = vector.broadcast %23 : vector<8x1xf32> to vector<8x16xf32>
      %26 = vector.broadcast %24 : vector<1x16xf32> to vector<8x16xf32>
      %27 = arith.subf %25, %26 : vector<8x16xf32>
      %28 = arith.mulf %27, %27 : vector<8x16xf32>
      %29 = arith.addf %22, %28 : vector<8x16xf32>
      %30 = math.sqrt %29 : vector<8x16xf32>
      %31 = arith.index_cast %arg0 : i32 to index
      %32 = memref.load %arg2[%31] : memref<2xi32, #tpu.memory_space<smem>>
      %33 = arith.addi %32, %arg1 : i32
      %c16_i32 = arith.constant 16 : i32
      %34 = arith.muli %33, %c16_i32 : i32
      %c8_i32 = arith.constant 8 : i32
      %35 = arith.muli %arg0, %c8_i32 : i32
      %36 = arith.subi %35, %34 : i32
      %37 = tpu.iota {dimensions = array<i32: 0>} : vector<8x1xi32>
      %38 = vector.broadcast %36 : i32 to vector<8x1xi32>
      %39 = arith.addi %38, %37 : vector<8x1xi32>
      %40 = tpu.iota {dimensions = array<i32: 1>} : vector<8x16xi32>
      %41 = vector.broadcast %39 : vector<8x1xi32> to vector<8x16xi32>
      %42 = arith.cmpi ne, %40, %41 : vector<8x16xi32>
      %c0_5 = arith.constant 0 : index
      %c0_6 = arith.constant 0 : index
      %43 = vector.load %arg6[%c0_5, %c0_6] : memref<8x1xf32, #tpu.memory_space<vmem>>, vector<8x1xf32>
      %c0_7 = arith.constant 0 : index
      %c0_8 = arith.constant 0 : index
      %44 = vector.load %arg7[%c0_7, %c0_8] : memref<1x16xf32, #tpu.memory_space<vmem>>, vector<1x16xf32>
      %45 = vector.broadcast %43 : vector<8x1xf32> to vector<8x16xf32>
      %46 = vector.broadcast %44 : vector<1x16xf32> to vector<8x16xf32>
      %47 = arith.cmpf oeq, %45, %46 : vector<8x16xf32>
      %48 = arith.andi %47, %42 : vector<8x16xi1>
      %cst = arith.constant 1.000000e+02 : f32
      %49 = vector.broadcast %cst : f32 to vector<8x16xf32>
      %50 = arith.cmpf ole, %29, %49 : vector<8x16xf32>
      %51 = arith.andi %48, %50 : vector<8x16xi1>
      %cst_9 = arith.constant 1.000000e+00 : f32
      %cst_10 = arith.constant 0.000000e+00 : f32
      %52 = vector.broadcast %cst_9 : f32 to vector<8x16xf32>
      %53 = vector.broadcast %cst_10 : f32 to vector<8x16xf32>
      %54 = arith.select %51, %52, %53 : vector<8x16xi1>, vector<8x16xf32>
      %cst_11 = arith.constant dense<0.000000e+00> : vector<8xf32>
      %55 = vector.multi_reduction <add>, %54, %cst_11 [1] : vector<8x16xf32> to vector<8xf32>
      %56 = vector.shape_cast %55 : vector<8xf32> to vector<8x1xf32>
      %cst_12 = arith.constant 0.000000e+00 : f32
      %57 = vector.broadcast %cst_12 : f32 to vector<8x16xf32>
      %58 = arith.select %51, %30, %57 : vector<8x16xi1>, vector<8x16xf32>
      %cst_13 = arith.constant dense<0.000000e+00> : vector<8xf32>
      %59 = vector.multi_reduction <add>, %58, %cst_13 [1] : vector<8x16xf32> to vector<8xf32>
      %60 = vector.shape_cast %59 : vector<8xf32> to vector<8x1xf32>
      %cst_14 = arith.constant 0.000000e+00 : f32
      %61 = vector.broadcast %cst_14 : f32 to vector<8x16xf32>
      %62 = arith.select %51, %29, %61 : vector<8x16xi1>, vector<8x16xf32>
      %cst_15 = arith.constant dense<0.000000e+00> : vector<8xf32>
      %63 = vector.multi_reduction <add>, %62, %cst_15 [1] : vector<8x16xf32> to vector<8xf32>
      %64 = vector.shape_cast %63 : vector<8xf32> to vector<8x1xf32>
      %65 = tpu.iota {dimensions = array<i32: 1>} : vector<8x128xi32>
      %c0_16 = arith.constant 0 : index
      %c0_17 = arith.constant 0 : index
      %66 = vector.load %arg8[%c0_16, %c0_17] : memref<8x128xf32, #tpu.memory_space<vmem>>, vector<8x128xf32>
      %c0_i32_18 = arith.constant 0 : i32
      %67 = vector.broadcast %c0_i32_18 : i32 to vector<8x128xi32>
      %68 = arith.cmpi eq, %65, %67 : vector<8x128xi32>
      %cst_19 = arith.constant 0.000000e+00 : f32
      %69 = vector.shape_cast %56 : vector<8x1xf32> to vector<8x1xf32>
      %70 = vector.broadcast %69 : vector<8x1xf32> to vector<8x128xf32>
      %71 = vector.broadcast %cst_19 : f32 to vector<8x128xf32>
      %72 = arith.select %68, %70, %71 : vector<8x128xi1>, vector<8x128xf32>
      %73 = arith.addf %66, %72 : vector<8x128xf32>
      %c1_i32 = arith.constant 1 : i32
      %74 = vector.broadcast %c1_i32 : i32 to vector<8x128xi32>
      %75 = arith.cmpi eq, %65, %74 : vector<8x128xi32>
      %cst_20 = arith.constant 0.000000e+00 : f32
      %76 = vector.shape_cast %60 : vector<8x1xf32> to vector<8x1xf32>
      %77 = vector.broadcast %76 : vector<8x1xf32> to vector<8x128xf32>
      %78 = vector.broadcast %cst_20 : f32 to vector<8x128xf32>
      %79 = arith.select %75, %77, %78 : vector<8x128xi1>, vector<8x128xf32>
      %80 = arith.addf %73, %79 : vector<8x128xf32>
      %c2_i32 = arith.constant 2 : i32
      %81 = vector.broadcast %c2_i32 : i32 to vector<8x128xi32>
      %82 = arith.cmpi eq, %65, %81 : vector<8x128xi32>
      %cst_21 = arith.constant 0.000000e+00 : f32
      %83 = vector.shape_cast %64 : vector<8x1xf32> to vector<8x1xf32>
      %84 = vector.broadcast %83 : vector<8x1xf32> to vector<8x128xf32>
      %85 = vector.broadcast %cst_21 : f32 to vector<8x128xf32>
      %86 = arith.select %82, %84, %85 : vector<8x128xi1>, vector<8x128xf32>
      %87 = arith.addf %80, %86 : vector<8x128xf32>
      %c0_22 = arith.constant 0 : index
      %c0_23 = arith.constant 0 : index
      %88 = vector.load %arg8[%c0_22, %c0_23] : memref<8x128xf32, #tpu.memory_space<vmem>>, vector<8x128xf32>
      tpu.vector_store %arg8[%c0_22, %c0_23], %87 {strides = array<i32>} : memref<8x128xf32, #tpu.memory_space<vmem>>, vector<8x128xf32>,
    } else {
    }
    return
  }
  func.func @transform_0(%arg0: i32, %arg1: i32, %arg2: memref<2xi32, #tpu.memory_space<smem>>, %arg3: memref<2xi32, #tpu.memory_space<smem>>) -> (i32, i32) {
    %c0_i32 = arith.constant 0 : i32
    %c0_i32_0 = arith.constant 0 : i32
    return %arg0, %c0_i32 : i32, i32
  }
  func.func @transform_1(%arg0: i32, %arg1: i32, %arg2: memref<2xi32, #tpu.memory_space<smem>>, %arg3: memref<2xi32, #tpu.memory_space<smem>>) -> (i32, i32) {
    %0 = arith.index_cast %arg0 : i32 to index
    %1 = memref.load %arg3[%0] : memref<2xi32, #tpu.memory_space<smem>>
    %c1_i32 = arith.constant 1 : i32
    %2 = arith.subi %1, %c1_i32 : i32
    %c0_i32 = arith.constant 0 : i32
    %3 = arith.maxsi %2, %c0_i32 : i32
    %4 = arith.minsi %arg1, %3 : i32
    %5 = arith.index_cast %arg0 : i32 to index
    %6 = memref.load %arg2[%5] : memref<2xi32, #tpu.memory_space<smem>>
    %7 = arith.addi %6, %4 : i32
    %c0_i32_0 = arith.constant 0 : i32
    %c0_i32_1 = arith.constant 0 : i32
    %8 = arith.maxsi %c0_i32_0, %7 : i32
    %9 = arith.minsi %c0_i32_1, %8 : i32
    %c0_i32_2 = arith.constant 0 : i32
    %c0_i32_3 = arith.constant 0 : i32
    return %c0_i32_2, %9 : i32, i32
  }
  func.func @transform_2(%arg0: i32, %arg1: i32, %arg2: memref<2xi32, #tpu.memory_space<smem>>, %arg3: memref<2xi32, #tpu.memory_space<smem>>) -> (i32, i32) {
    %c0_i32 = arith.constant 0 : i32
    %c0_i32_0 = arith.constant 0 : i32
    return %arg0, %c0_i32 : i32, i32
  }
  func.func @transform_3(%arg0: i32, %arg1: i32, %arg2: memref<2xi32, #tpu.memory_space<smem>>, %arg3: memref<2xi32, #tpu.memory_space<smem>>) -> (i32, i32) {
    %0 = arith.index_cast %arg0 : i32 to index
    %1 = memref.load %arg3[%0] : memref<2xi32, #tpu.memory_space<smem>>
    %c1_i32 = arith.constant 1 : i32
    %2 = arith.subi %1, %c1_i32 : i32
    %c0_i32 = arith.constant 0 : i32
    %3 = arith.maxsi %2, %c0_i32 : i32
    %4 = arith.minsi %arg1, %3 : i32
    %5 = arith.index_cast %arg0 : i32 to index
    %6 = memref.load %arg2[%5] : memref<2xi32, #tpu.memory_space<smem>>
    %7 = arith.addi %6, %4 : i32
    %c0_i32_0 = arith.constant 0 : i32
    %c0_i32_1 = arith.constant 0 : i32
    %8 = arith.maxsi %c0_i32_0, %7 : i32
    %9 = arith.minsi %c0_i32_1, %8 : i32
    %c0_i32_2 = arith.constant 0 : i32
    %c0_i32_3 = arith.constant 0 : i32
    return %c0_i32_2, %9 : i32, i32
  }
  func.func @transform_4(%arg0: i32, %arg1: i32, %arg2: memref<2xi32, #tpu.memory_space<smem>>, %arg3: memref<2xi32, #tpu.memory_space<smem>>) -> (i32, i32) {
    %c0_i32 = arith.constant 0 : i32
    %c0_i32_0 = arith.constant 0 : i32
    return %arg0, %c0_i32 : i32, i32
  }
}

module attributes {stable_mosaic.version = 11 : i64} {
  func.func @_graphnorm_tanh_kernel(%arg0: i32, %arg1: memref<8x8xf32, #tpu.memory_space<vmem>>, %arg2: memref<8x2xf32, #tpu.memory_space<vmem>>, %arg3: memref<2x8xf32, #tpu.memory_space<vmem>>, %arg4: memref<2x8xf32, #tpu.memory_space<vmem>>, %arg5: memref<1x8xf32, #tpu.memory_space<vmem>>, %arg6: memref<8x8xf32, #tpu.memory_space<vmem>>) attributes {dimension_semantics = [#tpu.dimension_semantics<parallel>], iteration_bounds = array<i64: 2>, scalar_prefetch = 0 : i64, scratch_operands = 0 : i64, tpu.core_type = #tpu.core_type<tc>, window_params = [{transform_indices = @transform_0, window_bounds = array<i64: 8, 8>}, {transform_indices = @transform_1, window_bounds = array<i64: 8, 2>}, {pipeline_mode = #tpu.pipeline_mode<synchronous>, transform_indices = @transform_2, window_bounds = array<i64: 2, 8>}, {pipeline_mode = #tpu.pipeline_mode<synchronous>, transform_indices = @transform_3, window_bounds = array<i64: 2, 8>}, {pipeline_mode = #tpu.pipeline_mode<synchronous>, transform_indices = @transform_4, window_bounds = array<i64: 1, 8>}, {transform_indices = @transform_5, window_bounds = array<i64: 8, 8>}]} {
    %c0 = arith.constant 0 : index
    %c0_0 = arith.constant 0 : index
    %0 = vector.load %arg2[%c0, %c0_0] : memref<8x2xf32, #tpu.memory_space<vmem>>, vector<8x2xf32>
    %c0_1 = arith.constant 0 : index
    %c0_2 = arith.constant 0 : index
    %1 = vector.load %arg3[%c0_1, %c0_2] : memref<2x8xf32, #tpu.memory_space<vmem>>, vector<2x8xf32>
    %cst = arith.constant dense<0.000000e+00> : vector<8x8xf32>
    %2 = tpu.matmul %0, %1, %cst {dimension_numbers = #tpu.dot_dimension_numbers<[1], [0], [0], [1], [0, 0, 1, 1], [], []>} : vector<8x2xf32>, vector<2x8xf32>, vector<8x8xf32> -> vector<8x8xf32>
    %c0_3 = arith.constant 0 : index
    %c0_4 = arith.constant 0 : index
    %3 = vector.load %arg2[%c0_3, %c0_4] : memref<8x2xf32, #tpu.memory_space<vmem>>, vector<8x2xf32>
    %c0_5 = arith.constant 0 : index
    %c0_6 = arith.constant 0 : index
    %4 = vector.load %arg4[%c0_5, %c0_6] : memref<2x8xf32, #tpu.memory_space<vmem>>, vector<2x8xf32>
    %cst_7 = arith.constant dense<0.000000e+00> : vector<8x8xf32>
    %5 = tpu.matmul %3, %4, %cst_7 {dimension_numbers = #tpu.dot_dimension_numbers<[1], [0], [0], [1], [0, 0, 1, 1], [], []>} : vector<8x2xf32>, vector<2x8xf32>, vector<8x8xf32> -> vector<8x8xf32>
    %c0_8 = arith.constant 0 : index
    %c0_9 = arith.constant 0 : index
    %6 = vector.load %arg1[%c0_8, %c0_9] : memref<8x8xf32, #tpu.memory_space<vmem>>, vector<8x8xf32>
    %7 = arith.subf %6, %2 : vector<8x8xf32>
    %8 = arith.mulf %7, %5 : vector<8x8xf32>
    %c0_10 = arith.constant 0 : index
    %c0_11 = arith.constant 0 : index
    %9 = vector.load %arg5[%c0_10, %c0_11] : memref<1x8xf32, #tpu.memory_space<vmem>>, vector<1x8xf32>
    %10 = vector.broadcast %9 : vector<1x8xf32> to vector<8x8xf32>
    %11 = arith.addf %8, %10 : vector<8x8xf32>
    %12 = math.tanh %11 : vector<8x8xf32>
    %c0_12 = arith.constant 0 : index
    %c0_13 = arith.constant 0 : index
    %13 = vector.load %arg6[%c0_12, %c0_13] : memref<8x8xf32, #tpu.memory_space<vmem>>, vector<8x8xf32>
    tpu.vector_store %arg6[%c0_12, %c0_13], %12 {strides = array<i32>} : memref<8x8xf32, #tpu.memory_space<vmem>>, vector<8x8xf32>,
    return
  }
  func.func @transform_0(%arg0: i32) -> (i32, i32) {
    %c0_i32 = arith.constant 0 : i32
    %c0_i32_0 = arith.constant 0 : i32
    return %arg0, %c0_i32 : i32, i32
  }
  func.func @transform_1(%arg0: i32) -> (i32, i32) {
    %c0_i32 = arith.constant 0 : i32
    %c0_i32_0 = arith.constant 0 : i32
    return %arg0, %c0_i32 : i32, i32
  }
  func.func @transform_2(%arg0: i32) -> (i32, i32) {
    %c0_i32 = arith.constant 0 : i32
    %c0_i32_0 = arith.constant 0 : i32
    %c0_i32_1 = arith.constant 0 : i32
    return %c0_i32, %c0_i32_0 : i32, i32
  }
  func.func @transform_3(%arg0: i32) -> (i32, i32) {
    %c0_i32 = arith.constant 0 : i32
    %c0_i32_0 = arith.constant 0 : i32
    %c0_i32_1 = arith.constant 0 : i32
    return %c0_i32, %c0_i32_0 : i32, i32
  }
  func.func @transform_4(%arg0: i32) -> (i32, i32) {
    %c0_i32 = arith.constant 0 : i32
    %c0_i32_0 = arith.constant 0 : i32
    %c0_i32_1 = arith.constant 0 : i32
    return %c0_i32, %c0_i32_0 : i32, i32
  }
  func.func @transform_5(%arg0: i32) -> (i32, i32) {
    %c0_i32 = arith.constant 0 : i32
    %c0_i32_0 = arith.constant 0 : i32
    return %arg0, %c0_i32 : i32, i32
  }
}

module attributes {stable_mosaic.version = 11 : i64} {
  func.func @_moginconv_kernel(%arg0: i32, %arg1: i32, %arg2: memref<2xi32, #tpu.memory_space<smem>>, %arg3: memref<2xi32, #tpu.memory_space<smem>>, %arg4: memref<1x8xf32, #tpu.memory_space<smem>>, %arg5: memref<1x8xf32, #tpu.memory_space<smem>>, %arg6: memref<8x4xf32, #tpu.memory_space<smem>>, %arg7: memref<1x4xf32, #tpu.memory_space<smem>>, %arg8: memref<8x3xf32, #tpu.memory_space<vmem>>, %arg9: memref<3x16xf32, #tpu.memory_space<vmem>>, %arg10: memref<8x1xf32, #tpu.memory_space<vmem>>, %arg11: memref<1x16xf32, #tpu.memory_space<vmem>>, %arg12: memref<8x1xf32, #tpu.memory_space<vmem>>, %arg13: memref<8x1xf32, #tpu.memory_space<vmem>>, %arg14: memref<4x16x16xbf16, #tpu.memory_space<vmem>>, %arg15: memref<4x1x16xf32, #tpu.memory_space<vmem>>, %arg16: memref<4x16x128xf32, #tpu.memory_space<vmem>>, %arg17: memref<1x128xf32, #tpu.memory_space<vmem>>, %arg18: memref<8x128xf32, #tpu.memory_space<vmem>>, %arg19: memref<8x128xf32, #tpu.memory_space<vmem>>, %arg20: memref<4x8x16xf32, #tpu.memory_space<vmem>>, %arg21: memref<8x128xf32, #tpu.memory_space<vmem>>) attributes {dimension_semantics = [#tpu.dimension_semantics<parallel>, #tpu.dimension_semantics<arbitrary>], iteration_bounds = array<i64: 2, 1>, scalar_prefetch = 2 : i64, scratch_operands = 2 : i64, tpu.core_type = #tpu.core_type<tc>, window_params = [{transform_indices = @transform_0, window_bounds = array<i64: 1, 8>}, {transform_indices = @transform_1, window_bounds = array<i64: 1, 8>}, {transform_indices = @transform_2, window_bounds = array<i64: 8, 4>}, {transform_indices = @transform_3, window_bounds = array<i64: 1, 4>}, {transform_indices = @transform_4, window_bounds = array<i64: 8, 3>}, {transform_indices = @transform_5, window_bounds = array<i64: 3, 16>}, {transform_indices = @transform_6, window_bounds = array<i64: 8, 1>}, {transform_indices = @transform_7, window_bounds = array<i64: 1, 16>}, {transform_indices = @transform_8, window_bounds = array<i64: 8, 1>}, {transform_indices = @transform_9, window_bounds = array<i64: 8, 1>}, {transform_indices = @transform_10, window_bounds = array<i64: 4, 16, 16>}, {pipeline_mode = #tpu.pipeline_mode<synchronous>, transform_indices = @transform_11, window_bounds = array<i64: 4, 1, 16>}, {pipeline_mode = #tpu.pipeline_mode<synchronous>, transform_indices = @transform_12, window_bounds = array<i64: 4, 16, 128>}, {pipeline_mode = #tpu.pipeline_mode<synchronous>, transform_indices = @transform_13, window_bounds = array<i64: 1, 128>}, {transform_indices = @transform_14, window_bounds = array<i64: 8, 128>}, {transform_indices = @transform_15, window_bounds = array<i64: 8, 128>}]} {
    %c0_i32 = arith.constant 0 : i32
    %0 = arith.cmpi eq, %arg1, %c0_i32 : i32
    %1 = arith.extui %0 : i1 to i32
    %c0_i32_0 = arith.constant 0 : i32
    %2 = arith.cmpi ne, %1, %c0_i32_0 : i32
    scf.if %2 {
      %cst = arith.constant 0.000000e+00 : f32
      %11 = vector.broadcast %cst : f32 to vector<4x8x16xf32>
      %c0 = arith.constant 0 : index
      %c0_4 = arith.constant 0 : index
      %c0_5 = arith.constant 0 : index
      %12 = vector.load %arg20[%c0, %c0_4, %c0_5] : memref<4x8x16xf32, #tpu.memory_space<vmem>>, vector<4x8x16xf32>
      tpu.vector_store %arg20[%c0, %c0_4, %c0_5], %11 {strides = array<i32>} : memref<4x8x16xf32, #tpu.memory_space<vmem>>, vector<4x8x16xf32>,
      %cst_6 = arith.constant 0.000000e+00 : f32
      %13 = vector.broadcast %cst_6 : f32 to vector<8x128xf32>
      %c0_7 = arith.constant 0 : index
      %c0_8 = arith.constant 0 : index
      %14 = vector.load %arg21[%c0_7, %c0_8] : memref<8x128xf32, #tpu.memory_space<vmem>>, vector<8x128xf32>
      tpu.vector_store %arg21[%c0_7, %c0_8], %13 {strides = array<i32>} : memref<8x128xf32, #tpu.memory_space<vmem>>, vector<8x128xf32>,
    } else {
    }
    %3 = arith.index_cast %arg0 : i32 to index
    %4 = memref.load %arg3[%3] : memref<2xi32, #tpu.memory_space<smem>>
    %5 = arith.cmpi slt, %arg1, %4 : i32
    %6 = arith.extui %5 : i1 to i32
    %c0_i32_1 = arith.constant 0 : i32
    %7 = arith.cmpi ne, %6, %c0_i32_1 : i32
    scf.if %7 {
      %c0 = arith.constant 0 : index
      %c0_4 = arith.constant 0 : index
      %11 = vector.load %arg8[%c0, %c0_4] : memref<8x3xf32, #tpu.memory_space<vmem>>, vector<8x3xf32>
      %c0_5 = arith.constant 0 : index
      %c0_6 = arith.constant 0 : index
      %12 = vector.load %arg9[%c0_5, %c0_6] : memref<3x16xf32, #tpu.memory_space<vmem>>, vector<3x16xf32>
      %13 = vector.extract_strided_slice %11 {offsets = [0, 0], sizes = [8, 1], strides = [1, 1]} : vector<8x3xf32> to vector<8x1xf32>
      %14 = vector.extract_strided_slice %12 {offsets = [0, 0], sizes = [1, 16], strides = [1, 1]} : vector<3x16xf32> to vector<1x16xf32>
      %15 = vector.broadcast %13 : vector<8x1xf32> to vector<8x16xf32>
      %16 = vector.broadcast %14 : vector<1x16xf32> to vector<8x16xf32>
      %17 = arith.subf %15, %16 : vector<8x16xf32>
      %18 = arith.mulf %17, %17 : vector<8x16xf32>
      %19 = vector.extract_strided_slice %11 {offsets = [0, 1], sizes = [8, 1], strides = [1, 1]} : vector<8x3xf32> to vector<8x1xf32>
      %20 = vector.extract_strided_slice %12 {offsets = [1, 0], sizes = [1, 16], strides = [1, 1]} : vector<3x16xf32> to vector<1x16xf32>
      %21 = vector.broadcast %19 : vector<8x1xf32> to vector<8x16xf32>
      %22 = vector.broadcast %20 : vector<1x16xf32> to vector<8x16xf32>
      %23 = arith.subf %21, %22 : vector<8x16xf32>
      %24 = arith.mulf %23, %23 : vector<8x16xf32>
      %25 = arith.addf %18, %24 : vector<8x16xf32>
      %26 = vector.extract_strided_slice %11 {offsets = [0, 2], sizes = [8, 1], strides = [1, 1]} : vector<8x3xf32> to vector<8x1xf32>
      %27 = vector.extract_strided_slice %12 {offsets = [2, 0], sizes = [1, 16], strides = [1, 1]} : vector<3x16xf32> to vector<1x16xf32>
      %28 = vector.broadcast %26 : vector<8x1xf32> to vector<8x16xf32>
      %29 = vector.broadcast %27 : vector<1x16xf32> to vector<8x16xf32>
      %30 = arith.subf %28, %29 : vector<8x16xf32>
      %31 = arith.mulf %30, %30 : vector<8x16xf32>
      %32 = arith.addf %25, %31 : vector<8x16xf32>
      %33 = math.sqrt %32 : vector<8x16xf32>
      %34 = arith.index_cast %arg0 : i32 to index
      %35 = memref.load %arg2[%34] : memref<2xi32, #tpu.memory_space<smem>>
      %36 = arith.addi %35, %arg1 : i32
      %c16_i32 = arith.constant 16 : i32
      %37 = arith.muli %36, %c16_i32 : i32
      %c8_i32 = arith.constant 8 : i32
      %38 = arith.muli %arg0, %c8_i32 : i32
      %39 = arith.subi %38, %37 : i32
      %40 = tpu.iota {dimensions = array<i32: 0>} : vector<8x1xi32>
      %41 = vector.broadcast %39 : i32 to vector<8x1xi32>
      %42 = arith.addi %41, %40 : vector<8x1xi32>
      %43 = tpu.iota {dimensions = array<i32: 1>} : vector<8x16xi32>
      %44 = vector.broadcast %42 : vector<8x1xi32> to vector<8x16xi32>
      %45 = arith.cmpi ne, %43, %44 : vector<8x16xi32>
      %c0_7 = arith.constant 0 : index
      %c0_8 = arith.constant 0 : index
      %46 = vector.load %arg10[%c0_7, %c0_8] : memref<8x1xf32, #tpu.memory_space<vmem>>, vector<8x1xf32>
      %c0_9 = arith.constant 0 : index
      %c0_10 = arith.constant 0 : index
      %47 = vector.load %arg11[%c0_9, %c0_10] : memref<1x16xf32, #tpu.memory_space<vmem>>, vector<1x16xf32>
      %48 = vector.broadcast %46 : vector<8x1xf32> to vector<8x16xf32>
      %49 = vector.broadcast %47 : vector<1x16xf32> to vector<8x16xf32>
      %50 = arith.cmpf oeq, %48, %49 : vector<8x16xf32>
      %51 = arith.andi %50, %45 : vector<8x16xi1>
      %cst = arith.constant 1.000000e+02 : f32
      %52 = vector.broadcast %cst : f32 to vector<8x16xf32>
      %53 = arith.cmpf ole, %32, %52 : vector<8x16xf32>
      %54 = arith.andi %51, %53 : vector<8x16xi1>
      %cst_11 = arith.constant 1.000000e+01 : f32
      %55 = vector.broadcast %cst_11 : f32 to vector<8x16xf32>
      %56 = arith.subf %55, %33 : vector<8x16xf32>
      %cst_12 = arith.constant 1.000000e-01 : f32
      %57 = vector.broadcast %cst_12 : f32 to vector<8x16xf32>
      %58 = arith.mulf %56, %57 : vector<8x16xf32>
      %cst_13 = arith.constant 0.000000e+00 : f32
      %59 = vector.broadcast %cst_13 : f32 to vector<8x16xf32>
      %60 = arith.select %54, %58, %59 : vector<8x16xi1>, vector<8x16xf32>
      %c0_14 = arith.constant 0 : index
      %c0_15 = arith.constant 0 : index
      %61 = vector.load %arg12[%c0_14, %c0_15] : memref<8x1xf32, #tpu.memory_space<vmem>>, vector<8x1xf32>
      %62 = vector.broadcast %61 : vector<8x1xf32> to vector<8x16xf32>
      %63 = arith.subf %33, %62 : vector<8x16xf32>
      %c0_16 = arith.constant 0 : index
      %c0_17 = arith.constant 0 : index
      %64 = vector.load %arg13[%c0_16, %c0_17] : memref<8x1xf32, #tpu.memory_space<vmem>>, vector<8x1xf32>
      %65 = vector.broadcast %64 : vector<8x1xf32> to vector<8x16xf32>
      %66 = arith.mulf %63, %65 : vector<8x16xf32>
      %c0_18 = arith.constant 0 : index
      %c0_19 = arith.constant 0 : index
      %67 = memref.load %arg4[%c0_18, %c0_19] : memref<1x8xf32, #tpu.memory_space<smem>>
      %68 = vector.broadcast %67 : f32 to vector<8x16xf32>
      %69 = arith.mulf %66, %68 : vector<8x16xf32>
      %c0_20 = arith.constant 0 : index
      %c0_21 = arith.constant 0 : index
      %70 = memref.load %arg5[%c0_20, %c0_21] : memref<1x8xf32, #tpu.memory_space<smem>>
      %71 = vector.broadcast %70 : f32 to vector<8x16xf32>
      %72 = arith.addf %69, %71 : vector<8x16xf32>
      %cst_22 = arith.constant 0.000000e+00 : f32
      %73 = vector.broadcast %cst_22 : f32 to vector<8x16xf32>
      %74 = arith.maximumf %72, %73 : vector<8x16xf32>
      %c0_23 = arith.constant 0 : index
      %c0_24 = arith.constant 0 : index
      %75 = memref.load %arg6[%c0_23, %c0_24] : memref<8x4xf32, #tpu.memory_space<smem>>
      %76 = vector.broadcast %75 : f32 to vector<8x16xf32>
      %77 = arith.mulf %74, %76 : vector<8x16xf32>
      %c0_25 = arith.constant 0 : index
      %c1 = arith.constant 1 : index
      %78 = memref.load %arg6[%c0_25, %c1] : memref<8x4xf32, #tpu.memory_space<smem>>
      %79 = vector.broadcast %78 : f32 to vector<8x16xf32>
      %80 = arith.mulf %74, %79 : vector<8x16xf32>
      %c0_26 = arith.constant 0 : index
      %c2 = arith.constant 2 : index
      %81 = memref.load %arg6[%c0_26, %c2] : memref<8x4xf32, #tpu.memory_space<smem>>
      %82 = vector.broadcast %81 : f32 to vector<8x16xf32>
      %83 = arith.mulf %74, %82 : vector<8x16xf32>
      %c0_27 = arith.constant 0 : index
      %c3 = arith.constant 3 : index
      %84 = memref.load %arg6[%c0_27, %c3] : memref<8x4xf32, #tpu.memory_space<smem>>
      %85 = vector.broadcast %84 : f32 to vector<8x16xf32>
      %86 = arith.mulf %74, %85 : vector<8x16xf32>
      %c0_28 = arith.constant 0 : index
      %c1_29 = arith.constant 1 : index
      %87 = memref.load %arg4[%c0_28, %c1_29] : memref<1x8xf32, #tpu.memory_space<smem>>
      %88 = vector.broadcast %87 : f32 to vector<8x16xf32>
      %89 = arith.mulf %66, %88 : vector<8x16xf32>
      %c0_30 = arith.constant 0 : index
      %c1_31 = arith.constant 1 : index
      %90 = memref.load %arg5[%c0_30, %c1_31] : memref<1x8xf32, #tpu.memory_space<smem>>
      %91 = vector.broadcast %90 : f32 to vector<8x16xf32>
      %92 = arith.addf %89, %91 : vector<8x16xf32>
      %cst_32 = arith.constant 0.000000e+00 : f32
      %93 = vector.broadcast %cst_32 : f32 to vector<8x16xf32>
      %94 = arith.maximumf %92, %93 : vector<8x16xf32>
      %c1_33 = arith.constant 1 : index
      %c0_34 = arith.constant 0 : index
      %95 = memref.load %arg6[%c1_33, %c0_34] : memref<8x4xf32, #tpu.memory_space<smem>>
      %96 = vector.broadcast %95 : f32 to vector<8x16xf32>
      %97 = arith.mulf %94, %96 : vector<8x16xf32>
      %98 = arith.addf %77, %97 : vector<8x16xf32>
      %c1_35 = arith.constant 1 : index
      %c1_36 = arith.constant 1 : index
      %99 = memref.load %arg6[%c1_35, %c1_36] : memref<8x4xf32, #tpu.memory_space<smem>>
      %100 = vector.broadcast %99 : f32 to vector<8x16xf32>
      %101 = arith.mulf %94, %100 : vector<8x16xf32>
      %102 = arith.addf %80, %101 : vector<8x16xf32>
      %c1_37 = arith.constant 1 : index
      %c2_38 = arith.constant 2 : index
      %103 = memref.load %arg6[%c1_37, %c2_38] : memref<8x4xf32, #tpu.memory_space<smem>>
      %104 = vector.broadcast %103 : f32 to vector<8x16xf32>
      %105 = arith.mulf %94, %104 : vector<8x16xf32>
      %106 = arith.addf %83, %105 : vector<8x16xf32>
      %c1_39 = arith.constant 1 : index
      %c3_40 = arith.constant 3 : index
      %107 = memref.load %arg6[%c1_39, %c3_40] : memref<8x4xf32, #tpu.memory_space<smem>>
      %108 = vector.broadcast %107 : f32 to vector<8x16xf32>
      %109 = arith.mulf %94, %108 : vector<8x16xf32>
      %110 = arith.addf %86, %109 : vector<8x16xf32>
      %c0_41 = arith.constant 0 : index
      %c2_42 = arith.constant 2 : index
      %111 = memref.load %arg4[%c0_41, %c2_42] : memref<1x8xf32, #tpu.memory_space<smem>>
      %112 = vector.broadcast %111 : f32 to vector<8x16xf32>
      %113 = arith.mulf %66, %112 : vector<8x16xf32>
      %c0_43 = arith.constant 0 : index
      %c2_44 = arith.constant 2 : index
      %114 = memref.load %arg5[%c0_43, %c2_44] : memref<1x8xf32, #tpu.memory_space<smem>>
      %115 = vector.broadcast %114 : f32 to vector<8x16xf32>
      %116 = arith.addf %113, %115 : vector<8x16xf32>
      %cst_45 = arith.constant 0.000000e+00 : f32
      %117 = vector.broadcast %cst_45 : f32 to vector<8x16xf32>
      %118 = arith.maximumf %116, %117 : vector<8x16xf32>
      %c2_46 = arith.constant 2 : index
      %c0_47 = arith.constant 0 : index
      %119 = memref.load %arg6[%c2_46, %c0_47] : memref<8x4xf32, #tpu.memory_space<smem>>
      %120 = vector.broadcast %119 : f32 to vector<8x16xf32>
      %121 = arith.mulf %118, %120 : vector<8x16xf32>
      %122 = arith.addf %98, %121 : vector<8x16xf32>
      %c2_48 = arith.constant 2 : index
      %c1_49 = arith.constant 1 : index
      %123 = memref.load %arg6[%c2_48, %c1_49] : memref<8x4xf32, #tpu.memory_space<smem>>
      %124 = vector.broadcast %123 : f32 to vector<8x16xf32>
      %125 = arith.mulf %118, %124 : vector<8x16xf32>
      %126 = arith.addf %102, %125 : vector<8x16xf32>
      %c2_50 = arith.constant 2 : index
      %c2_51 = arith.constant 2 : index
      %127 = memref.load %arg6[%c2_50, %c2_51] : memref<8x4xf32, #tpu.memory_space<smem>>
      %128 = vector.broadcast %127 : f32 to vector<8x16xf32>
      %129 = arith.mulf %118, %128 : vector<8x16xf32>
      %130 = arith.addf %106, %129 : vector<8x16xf32>
      %c2_52 = arith.constant 2 : index
      %c3_53 = arith.constant 3 : index
      %131 = memref.load %arg6[%c2_52, %c3_53] : memref<8x4xf32, #tpu.memory_space<smem>>
      %132 = vector.broadcast %131 : f32 to vector<8x16xf32>
      %133 = arith.mulf %118, %132 : vector<8x16xf32>
      %134 = arith.addf %110, %133 : vector<8x16xf32>
      %c0_54 = arith.constant 0 : index
      %c3_55 = arith.constant 3 : index
      %135 = memref.load %arg4[%c0_54, %c3_55] : memref<1x8xf32, #tpu.memory_space<smem>>
      %136 = vector.broadcast %135 : f32 to vector<8x16xf32>
      %137 = arith.mulf %66, %136 : vector<8x16xf32>
      %c0_56 = arith.constant 0 : index
      %c3_57 = arith.constant 3 : index
      %138 = memref.load %arg5[%c0_56, %c3_57] : memref<1x8xf32, #tpu.memory_space<smem>>
      %139 = vector.broadcast %138 : f32 to vector<8x16xf32>
      %140 = arith.addf %137, %139 : vector<8x16xf32>
      %cst_58 = arith.constant 0.000000e+00 : f32
      %141 = vector.broadcast %cst_58 : f32 to vector<8x16xf32>
      %142 = arith.maximumf %140, %141 : vector<8x16xf32>
      %c3_59 = arith.constant 3 : index
      %c0_60 = arith.constant 0 : index
      %143 = memref.load %arg6[%c3_59, %c0_60] : memref<8x4xf32, #tpu.memory_space<smem>>
      %144 = vector.broadcast %143 : f32 to vector<8x16xf32>
      %145 = arith.mulf %142, %144 : vector<8x16xf32>
      %146 = arith.addf %122, %145 : vector<8x16xf32>
      %c3_61 = arith.constant 3 : index
      %c1_62 = arith.constant 1 : index
      %147 = memref.load %arg6[%c3_61, %c1_62] : memref<8x4xf32, #tpu.memory_space<smem>>
      %148 = vector.broadcast %147 : f32 to vector<8x16xf32>
      %149 = arith.mulf %142, %148 : vector<8x16xf32>
      %150 = arith.addf %126, %149 : vector<8x16xf32>
      %c3_63 = arith.constant 3 : index
      %c2_64 = arith.constant 2 : index
      %151 = memref.load %arg6[%c3_63, %c2_64] : memref<8x4xf32, #tpu.memory_space<smem>>
      %152 = vector.broadcast %151 : f32 to vector<8x16xf32>
      %153 = arith.mulf %142, %152 : vector<8x16xf32>
      %154 = arith.addf %130, %153 : vector<8x16xf32>
      %c3_65 = arith.constant 3 : index
      %c3_66 = arith.constant 3 : index
      %155 = memref.load %arg6[%c3_65, %c3_66] : memref<8x4xf32, #tpu.memory_space<smem>>
      %156 = vector.broadcast %155 : f32 to vector<8x16xf32>
      %157 = arith.mulf %142, %156 : vector<8x16xf32>
      %158 = arith.addf %134, %157 : vector<8x16xf32>
      %c0_67 = arith.constant 0 : index
      %c4 = arith.constant 4 : index
      %159 = memref.load %arg4[%c0_67, %c4] : memref<1x8xf32, #tpu.memory_space<smem>>
      %160 = vector.broadcast %159 : f32 to vector<8x16xf32>
      %161 = arith.mulf %66, %160 : vector<8x16xf32>
      %c0_68 = arith.constant 0 : index
      %c4_69 = arith.constant 4 : index
      %162 = memref.load %arg5[%c0_68, %c4_69] : memref<1x8xf32, #tpu.memory_space<smem>>
      %163 = vector.broadcast %162 : f32 to vector<8x16xf32>
      %164 = arith.addf %161, %163 : vector<8x16xf32>
      %cst_70 = arith.constant 0.000000e+00 : f32
      %165 = vector.broadcast %cst_70 : f32 to vector<8x16xf32>
      %166 = arith.maximumf %164, %165 : vector<8x16xf32>
      %c4_71 = arith.constant 4 : index
      %c0_72 = arith.constant 0 : index
      %167 = memref.load %arg6[%c4_71, %c0_72] : memref<8x4xf32, #tpu.memory_space<smem>>
      %168 = vector.broadcast %167 : f32 to vector<8x16xf32>
      %169 = arith.mulf %166, %168 : vector<8x16xf32>
      %170 = arith.addf %146, %169 : vector<8x16xf32>
      %c4_73 = arith.constant 4 : index
      %c1_74 = arith.constant 1 : index
      %171 = memref.load %arg6[%c4_73, %c1_74] : memref<8x4xf32, #tpu.memory_space<smem>>
      %172 = vector.broadcast %171 : f32 to vector<8x16xf32>
      %173 = arith.mulf %166, %172 : vector<8x16xf32>
      %174 = arith.addf %150, %173 : vector<8x16xf32>
      %c4_75 = arith.constant 4 : index
      %c2_76 = arith.constant 2 : index
      %175 = memref.load %arg6[%c4_75, %c2_76] : memref<8x4xf32, #tpu.memory_space<smem>>
      %176 = vector.broadcast %175 : f32 to vector<8x16xf32>
      %177 = arith.mulf %166, %176 : vector<8x16xf32>
      %178 = arith.addf %154, %177 : vector<8x16xf32>
      %c4_77 = arith.constant 4 : index
      %c3_78 = arith.constant 3 : index
      %179 = memref.load %arg6[%c4_77, %c3_78] : memref<8x4xf32, #tpu.memory_space<smem>>
      %180 = vector.broadcast %179 : f32 to vector<8x16xf32>
      %181 = arith.mulf %166, %180 : vector<8x16xf32>
      %182 = arith.addf %158, %181 : vector<8x16xf32>
      %c0_79 = arith.constant 0 : index
      %c5 = arith.constant 5 : index
      %183 = memref.load %arg4[%c0_79, %c5] : memref<1x8xf32, #tpu.memory_space<smem>>
      %184 = vector.broadcast %183 : f32 to vector<8x16xf32>
      %185 = arith.mulf %66, %184 : vector<8x16xf32>
      %c0_80 = arith.constant 0 : index
      %c5_81 = arith.constant 5 : index
      %186 = memref.load %arg5[%c0_80, %c5_81] : memref<1x8xf32, #tpu.memory_space<smem>>
      %187 = vector.broadcast %186 : f32 to vector<8x16xf32>
      %188 = arith.addf %185, %187 : vector<8x16xf32>
      %cst_82 = arith.constant 0.000000e+00 : f32
      %189 = vector.broadcast %cst_82 : f32 to vector<8x16xf32>
      %190 = arith.maximumf %188, %189 : vector<8x16xf32>
      %c5_83 = arith.constant 5 : index
      %c0_84 = arith.constant 0 : index
      %191 = memref.load %arg6[%c5_83, %c0_84] : memref<8x4xf32, #tpu.memory_space<smem>>
      %192 = vector.broadcast %191 : f32 to vector<8x16xf32>
      %193 = arith.mulf %190, %192 : vector<8x16xf32>
      %194 = arith.addf %170, %193 : vector<8x16xf32>
      %c5_85 = arith.constant 5 : index
      %c1_86 = arith.constant 1 : index
      %195 = memref.load %arg6[%c5_85, %c1_86] : memref<8x4xf32, #tpu.memory_space<smem>>
      %196 = vector.broadcast %195 : f32 to vector<8x16xf32>
      %197 = arith.mulf %190, %196 : vector<8x16xf32>
      %198 = arith.addf %174, %197 : vector<8x16xf32>
      %c5_87 = arith.constant 5 : index
      %c2_88 = arith.constant 2 : index
      %199 = memref.load %arg6[%c5_87, %c2_88] : memref<8x4xf32, #tpu.memory_space<smem>>
      %200 = vector.broadcast %199 : f32 to vector<8x16xf32>
      %201 = arith.mulf %190, %200 : vector<8x16xf32>
      %202 = arith.addf %178, %201 : vector<8x16xf32>
      %c5_89 = arith.constant 5 : index
      %c3_90 = arith.constant 3 : index
      %203 = memref.load %arg6[%c5_89, %c3_90] : memref<8x4xf32, #tpu.memory_space<smem>>
      %204 = vector.broadcast %203 : f32 to vector<8x16xf32>
      %205 = arith.mulf %190, %204 : vector<8x16xf32>
      %206 = arith.addf %182, %205 : vector<8x16xf32>
      %c0_91 = arith.constant 0 : index
      %c6 = arith.constant 6 : index
      %207 = memref.load %arg4[%c0_91, %c6] : memref<1x8xf32, #tpu.memory_space<smem>>
      %208 = vector.broadcast %207 : f32 to vector<8x16xf32>
      %209 = arith.mulf %66, %208 : vector<8x16xf32>
      %c0_92 = arith.constant 0 : index
      %c6_93 = arith.constant 6 : index
      %210 = memref.load %arg5[%c0_92, %c6_93] : memref<1x8xf32, #tpu.memory_space<smem>>
      %211 = vector.broadcast %210 : f32 to vector<8x16xf32>
      %212 = arith.addf %209, %211 : vector<8x16xf32>
      %cst_94 = arith.constant 0.000000e+00 : f32
      %213 = vector.broadcast %cst_94 : f32 to vector<8x16xf32>
      %214 = arith.maximumf %212, %213 : vector<8x16xf32>
      %c6_95 = arith.constant 6 : index
      %c0_96 = arith.constant 0 : index
      %215 = memref.load %arg6[%c6_95, %c0_96] : memref<8x4xf32, #tpu.memory_space<smem>>
      %216 = vector.broadcast %215 : f32 to vector<8x16xf32>
      %217 = arith.mulf %214, %216 : vector<8x16xf32>
      %218 = arith.addf %194, %217 : vector<8x16xf32>
      %c6_97 = arith.constant 6 : index
      %c1_98 = arith.constant 1 : index
      %219 = memref.load %arg6[%c6_97, %c1_98] : memref<8x4xf32, #tpu.memory_space<smem>>
      %220 = vector.broadcast %219 : f32 to vector<8x16xf32>
      %221 = arith.mulf %214, %220 : vector<8x16xf32>
      %222 = arith.addf %198, %221 : vector<8x16xf32>
      %c6_99 = arith.constant 6 : index
      %c2_100 = arith.constant 2 : index
      %223 = memref.load %arg6[%c6_99, %c2_100] : memref<8x4xf32, #tpu.memory_space<smem>>
      %224 = vector.broadcast %223 : f32 to vector<8x16xf32>
      %225 = arith.mulf %214, %224 : vector<8x16xf32>
      %226 = arith.addf %202, %225 : vector<8x16xf32>
      %c6_101 = arith.constant 6 : index
      %c3_102 = arith.constant 3 : index
      %227 = memref.load %arg6[%c6_101, %c3_102] : memref<8x4xf32, #tpu.memory_space<smem>>
      %228 = vector.broadcast %227 : f32 to vector<8x16xf32>
      %229 = arith.mulf %214, %228 : vector<8x16xf32>
      %230 = arith.addf %206, %229 : vector<8x16xf32>
      %c0_103 = arith.constant 0 : index
      %c7 = arith.constant 7 : index
      %231 = memref.load %arg4[%c0_103, %c7] : memref<1x8xf32, #tpu.memory_space<smem>>
      %232 = vector.broadcast %231 : f32 to vector<8x16xf32>
      %233 = arith.mulf %66, %232 : vector<8x16xf32>
      %c0_104 = arith.constant 0 : index
      %c7_105 = arith.constant 7 : index
      %234 = memref.load %arg5[%c0_104, %c7_105] : memref<1x8xf32, #tpu.memory_space<smem>>
      %235 = vector.broadcast %234 : f32 to vector<8x16xf32>
      %236 = arith.addf %233, %235 : vector<8x16xf32>
      %cst_106 = arith.constant 0.000000e+00 : f32
      %237 = vector.broadcast %cst_106 : f32 to vector<8x16xf32>
      %238 = arith.maximumf %236, %237 : vector<8x16xf32>
      %c7_107 = arith.constant 7 : index
      %c0_108 = arith.constant 0 : index
      %239 = memref.load %arg6[%c7_107, %c0_108] : memref<8x4xf32, #tpu.memory_space<smem>>
      %240 = vector.broadcast %239 : f32 to vector<8x16xf32>
      %241 = arith.mulf %238, %240 : vector<8x16xf32>
      %242 = arith.addf %218, %241 : vector<8x16xf32>
      %c7_109 = arith.constant 7 : index
      %c1_110 = arith.constant 1 : index
      %243 = memref.load %arg6[%c7_109, %c1_110] : memref<8x4xf32, #tpu.memory_space<smem>>
      %244 = vector.broadcast %243 : f32 to vector<8x16xf32>
      %245 = arith.mulf %238, %244 : vector<8x16xf32>
      %246 = arith.addf %222, %245 : vector<8x16xf32>
      %c7_111 = arith.constant 7 : index
      %c2_112 = arith.constant 2 : index
      %247 = memref.load %arg6[%c7_111, %c2_112] : memref<8x4xf32, #tpu.memory_space<smem>>
      %248 = vector.broadcast %247 : f32 to vector<8x16xf32>
      %249 = arith.mulf %238, %248 : vector<8x16xf32>
      %250 = arith.addf %226, %249 : vector<8x16xf32>
      %c7_113 = arith.constant 7 : index
      %c3_114 = arith.constant 3 : index
      %251 = memref.load %arg6[%c7_113, %c3_114] : memref<8x4xf32, #tpu.memory_space<smem>>
      %252 = vector.broadcast %251 : f32 to vector<8x16xf32>
      %253 = arith.mulf %238, %252 : vector<8x16xf32>
      %254 = arith.addf %230, %253 : vector<8x16xf32>
      %c0_115 = arith.constant 0 : index
      %c0_116 = arith.constant 0 : index
      %255 = memref.load %arg7[%c0_115, %c0_116] : memref<1x4xf32, #tpu.memory_space<smem>>
      %256 = vector.broadcast %255 : f32 to vector<8x16xf32>
      %257 = arith.addf %242, %256 : vector<8x16xf32>
      %c0_117 = arith.constant 0 : index
      %c1_118 = arith.constant 1 : index
      %258 = memref.load %arg7[%c0_117, %c1_118] : memref<1x4xf32, #tpu.memory_space<smem>>
      %259 = vector.broadcast %258 : f32 to vector<8x16xf32>
      %260 = arith.addf %246, %259 : vector<8x16xf32>
      %261 = arith.maximumf %257, %260 : vector<8x16xf32>
      %c0_119 = arith.constant 0 : index
      %c2_120 = arith.constant 2 : index
      %262 = memref.load %arg7[%c0_119, %c2_120] : memref<1x4xf32, #tpu.memory_space<smem>>
      %263 = vector.broadcast %262 : f32 to vector<8x16xf32>
      %264 = arith.addf %250, %263 : vector<8x16xf32>
      %265 = arith.maximumf %261, %264 : vector<8x16xf32>
      %c0_121 = arith.constant 0 : index
      %c3_122 = arith.constant 3 : index
      %266 = memref.load %arg7[%c0_121, %c3_122] : memref<1x4xf32, #tpu.memory_space<smem>>
      %267 = vector.broadcast %266 : f32 to vector<8x16xf32>
      %268 = arith.addf %254, %267 : vector<8x16xf32>
      %269 = arith.maximumf %265, %268 : vector<8x16xf32>
      %270 = arith.subf %257, %269 : vector<8x16xf32>
      %271 = math.exp %270 : vector<8x16xf32>
      %272 = arith.subf %260, %269 : vector<8x16xf32>
      %273 = math.exp %272 : vector<8x16xf32>
      %274 = arith.subf %264, %269 : vector<8x16xf32>
      %275 = math.exp %274 : vector<8x16xf32>
      %276 = arith.subf %268, %269 : vector<8x16xf32>
      %277 = math.exp %276 : vector<8x16xf32>
      %278 = arith.addf %271, %273 : vector<8x16xf32>
      %279 = arith.addf %278, %275 : vector<8x16xf32>
      %280 = arith.addf %279, %277 : vector<8x16xf32>
      %281 = tpu.reciprocal %280 {approx = true} : vector<8x16xf32> -> vector<8x16xf32>
      %cst_123 = arith.constant 0.000000e+00 : f32
      %282 = vector.broadcast %cst_123 : f32 to vector<8x16xf32>
      %283 = arith.select %54, %281, %282 : vector<8x16xi1>, vector<8x16xf32>
      %284 = arith.mulf %281, %60 : vector<8x16xf32>
      %285 = tpu.iota {dimensions = array<i32: 1>} : vector<8x128xi32>
      %c0_124 = arith.constant 0 : index
      %c0_125 = arith.constant 0 : index
      %286 = vector.load %arg21[%c0_124, %c0_125] : memref<8x128xf32, #tpu.memory_space<vmem>>, vector<8x128xf32>
      %287 = arith.mulf %271, %284 : vector<8x16xf32>
      %288 = arith.truncf %287 : vector<8x16xf32> to vector<8x16xbf16>
      %c0_126 = arith.constant 0 : index
      %c0_127 = arith.constant 0 : index
      %c0_128 = arith.constant 0 : index
      %289 = vector.load %arg20[%c0_126, %c0_127, %c0_128] : memref<4x8x16xf32, #tpu.memory_space<vmem>>, vector<1x8x16xf32>
      %290 = vector.shape_cast %289 : vector<1x8x16xf32> to vector<8x16xf32>
      %c0_129 = arith.constant 0 : index
      %c0_130 = arith.constant 0 : index
      %c0_131 = arith.constant 0 : index
      %291 = vector.load %arg14[%c0_129, %c0_130, %c0_131] : memref<4x16x16xbf16, #tpu.memory_space<vmem>>, vector<1x16x16xbf16>
      %292 = vector.shape_cast %291 : vector<1x16x16xbf16> to vector<16x16xbf16>
      %cst_132 = arith.constant dense<0.000000e+00> : vector<8x16xf32>
      %293 = tpu.matmul %288, %292, %cst_132 {dimension_numbers = #tpu.dot_dimension_numbers<[1], [0], [0], [1], [0, 0, 1, 1], [], []>} : vector<8x16xbf16>, vector<16x16xbf16>, vector<8x16xf32> -> vector<8x16xf32>
      %294 = arith.addf %290, %293 : vector<8x16xf32>
      %c0_133 = arith.constant 0 : index
      %c0_134 = arith.constant 0 : index
      %c0_135 = arith.constant 0 : index
      %295 = vector.load %arg20[%c0_133, %c0_134, %c0_135] : memref<4x8x16xf32, #tpu.memory_space<vmem>>, vector<1x8x16xf32>
      %296 = vector.shape_cast %295 : vector<1x8x16xf32> to vector<8x16xf32>
      %297 = vector.shape_cast %294 : vector<8x16xf32> to vector<1x8x16xf32>
      tpu.vector_store %arg20[%c0_133, %c0_134, %c0_135], %297 {strides = array<i32>} : memref<4x8x16xf32, #tpu.memory_space<vmem>>, vector<1x8x16xf32>,
      %c0_i32_136 = arith.constant 0 : i32
      %298 = vector.broadcast %c0_i32_136 : i32 to vector<8x128xi32>
      %299 = arith.cmpi eq, %285, %298 : vector<8x128xi32>
      %300 = arith.mulf %271, %283 : vector<8x16xf32>
      %301 = vector.shape_cast %300 : vector<8x16xf32> to vector<1x8x16xf32>
      %cst_137 = arith.constant dense<0.000000e+00> : vector<1xf32>
      %302 = vector.multi_reduction <add>, %301, %cst_137 [1, 2] : vector<1x8x16xf32> to vector<1xf32>
      %303 = vector.shape_cast %302 : vector<1xf32> to vector<1x1x1xf32>
      %304 = vector.extract %303[0, 0, 0] : f32 from vector<1x1x1xf32>
      %cst_138 = arith.constant 0.000000e+00 : f32
      %305 = vector.broadcast %304 : f32 to vector<8x128xf32>
      %306 = vector.broadcast %cst_138 : f32 to vector<8x128xf32>
      %307 = arith.select %299, %305, %306 : vector<8x128xi1>, vector<8x128xf32>
      %308 = arith.addf %286, %307 : vector<8x128xf32>
      %309 = arith.mulf %273, %284 : vector<8x16xf32>
      %310 = arith.truncf %309 : vector<8x16xf32> to vector<8x16xbf16>
      %c1_139 = arith.constant 1 : index
      %c0_140 = arith.constant 0 : index
      %c0_141 = arith.constant 0 : index
      %311 = vector.load %arg20[%c1_139, %c0_140, %c0_141] : memref<4x8x16xf32, #tpu.memory_space<vmem>>, vector<1x8x16xf32>
      %312 = vector.shape_cast %311 : vector<1x8x16xf32> to vector<8x16xf32>
      %c1_142 = arith.constant 1 : index
      %c0_143 = arith.constant 0 : index
      %c0_144 = arith.constant 0 : index
      %313 = vector.load %arg14[%c1_142, %c0_143, %c0_144] : memref<4x16x16xbf16, #tpu.memory_space<vmem>>, vector<1x16x16xbf16>
      %314 = vector.shape_cast %313 : vector<1x16x16xbf16> to vector<16x16xbf16>
      %cst_145 = arith.constant dense<0.000000e+00> : vector<8x16xf32>
      %315 = tpu.matmul %310, %314, %cst_145 {dimension_numbers = #tpu.dot_dimension_numbers<[1], [0], [0], [1], [0, 0, 1, 1], [], []>} : vector<8x16xbf16>, vector<16x16xbf16>, vector<8x16xf32> -> vector<8x16xf32>
      %316 = arith.addf %312, %315 : vector<8x16xf32>
      %c1_146 = arith.constant 1 : index
      %c0_147 = arith.constant 0 : index
      %c0_148 = arith.constant 0 : index
      %317 = vector.load %arg20[%c1_146, %c0_147, %c0_148] : memref<4x8x16xf32, #tpu.memory_space<vmem>>, vector<1x8x16xf32>
      %318 = vector.shape_cast %317 : vector<1x8x16xf32> to vector<8x16xf32>
      %319 = vector.shape_cast %316 : vector<8x16xf32> to vector<1x8x16xf32>
      tpu.vector_store %arg20[%c1_146, %c0_147, %c0_148], %319 {strides = array<i32>} : memref<4x8x16xf32, #tpu.memory_space<vmem>>, vector<1x8x16xf32>,
      %c1_i32 = arith.constant 1 : i32
      %320 = vector.broadcast %c1_i32 : i32 to vector<8x128xi32>
      %321 = arith.cmpi eq, %285, %320 : vector<8x128xi32>
      %322 = arith.mulf %273, %283 : vector<8x16xf32>
      %323 = vector.shape_cast %322 : vector<8x16xf32> to vector<1x8x16xf32>
      %cst_149 = arith.constant dense<0.000000e+00> : vector<1xf32>
      %324 = vector.multi_reduction <add>, %323, %cst_149 [1, 2] : vector<1x8x16xf32> to vector<1xf32>
      %325 = vector.shape_cast %324 : vector<1xf32> to vector<1x1x1xf32>
      %326 = vector.extract %325[0, 0, 0] : f32 from vector<1x1x1xf32>
      %cst_150 = arith.constant 0.000000e+00 : f32
      %327 = vector.broadcast %326 : f32 to vector<8x128xf32>
      %328 = vector.broadcast %cst_150 : f32 to vector<8x128xf32>
      %329 = arith.select %321, %327, %328 : vector<8x128xi1>, vector<8x128xf32>
      %330 = arith.addf %308, %329 : vector<8x128xf32>
      %331 = arith.mulf %275, %284 : vector<8x16xf32>
      %332 = arith.truncf %331 : vector<8x16xf32> to vector<8x16xbf16>
      %c2_151 = arith.constant 2 : index
      %c0_152 = arith.constant 0 : index
      %c0_153 = arith.constant 0 : index
      %333 = vector.load %arg20[%c2_151, %c0_152, %c0_153] : memref<4x8x16xf32, #tpu.memory_space<vmem>>, vector<1x8x16xf32>
      %334 = vector.shape_cast %333 : vector<1x8x16xf32> to vector<8x16xf32>
      %c2_154 = arith.constant 2 : index
      %c0_155 = arith.constant 0 : index
      %c0_156 = arith.constant 0 : index
      %335 = vector.load %arg14[%c2_154, %c0_155, %c0_156] : memref<4x16x16xbf16, #tpu.memory_space<vmem>>, vector<1x16x16xbf16>
      %336 = vector.shape_cast %335 : vector<1x16x16xbf16> to vector<16x16xbf16>
      %cst_157 = arith.constant dense<0.000000e+00> : vector<8x16xf32>
      %337 = tpu.matmul %332, %336, %cst_157 {dimension_numbers = #tpu.dot_dimension_numbers<[1], [0], [0], [1], [0, 0, 1, 1], [], []>} : vector<8x16xbf16>, vector<16x16xbf16>, vector<8x16xf32> -> vector<8x16xf32>
      %338 = arith.addf %334, %337 : vector<8x16xf32>
      %c2_158 = arith.constant 2 : index
      %c0_159 = arith.constant 0 : index
      %c0_160 = arith.constant 0 : index
      %339 = vector.load %arg20[%c2_158, %c0_159, %c0_160] : memref<4x8x16xf32, #tpu.memory_space<vmem>>, vector<1x8x16xf32>
      %340 = vector.shape_cast %339 : vector<1x8x16xf32> to vector<8x16xf32>
      %341 = vector.shape_cast %338 : vector<8x16xf32> to vector<1x8x16xf32>
      tpu.vector_store %arg20[%c2_158, %c0_159, %c0_160], %341 {strides = array<i32>} : memref<4x8x16xf32, #tpu.memory_space<vmem>>, vector<1x8x16xf32>,
      %c2_i32 = arith.constant 2 : i32
      %342 = vector.broadcast %c2_i32 : i32 to vector<8x128xi32>
      %343 = arith.cmpi eq, %285, %342 : vector<8x128xi32>
      %344 = arith.mulf %275, %283 : vector<8x16xf32>
      %345 = vector.shape_cast %344 : vector<8x16xf32> to vector<1x8x16xf32>
      %cst_161 = arith.constant dense<0.000000e+00> : vector<1xf32>
      %346 = vector.multi_reduction <add>, %345, %cst_161 [1, 2] : vector<1x8x16xf32> to vector<1xf32>
      %347 = vector.shape_cast %346 : vector<1xf32> to vector<1x1x1xf32>
      %348 = vector.extract %347[0, 0, 0] : f32 from vector<1x1x1xf32>
      %cst_162 = arith.constant 0.000000e+00 : f32
      %349 = vector.broadcast %348 : f32 to vector<8x128xf32>
      %350 = vector.broadcast %cst_162 : f32 to vector<8x128xf32>
      %351 = arith.select %343, %349, %350 : vector<8x128xi1>, vector<8x128xf32>
      %352 = arith.addf %330, %351 : vector<8x128xf32>
      %353 = arith.mulf %277, %284 : vector<8x16xf32>
      %354 = arith.truncf %353 : vector<8x16xf32> to vector<8x16xbf16>
      %c3_163 = arith.constant 3 : index
      %c0_164 = arith.constant 0 : index
      %c0_165 = arith.constant 0 : index
      %355 = vector.load %arg20[%c3_163, %c0_164, %c0_165] : memref<4x8x16xf32, #tpu.memory_space<vmem>>, vector<1x8x16xf32>
      %356 = vector.shape_cast %355 : vector<1x8x16xf32> to vector<8x16xf32>
      %c3_166 = arith.constant 3 : index
      %c0_167 = arith.constant 0 : index
      %c0_168 = arith.constant 0 : index
      %357 = vector.load %arg14[%c3_166, %c0_167, %c0_168] : memref<4x16x16xbf16, #tpu.memory_space<vmem>>, vector<1x16x16xbf16>
      %358 = vector.shape_cast %357 : vector<1x16x16xbf16> to vector<16x16xbf16>
      %cst_169 = arith.constant dense<0.000000e+00> : vector<8x16xf32>
      %359 = tpu.matmul %354, %358, %cst_169 {dimension_numbers = #tpu.dot_dimension_numbers<[1], [0], [0], [1], [0, 0, 1, 1], [], []>} : vector<8x16xbf16>, vector<16x16xbf16>, vector<8x16xf32> -> vector<8x16xf32>
      %360 = arith.addf %356, %359 : vector<8x16xf32>
      %c3_170 = arith.constant 3 : index
      %c0_171 = arith.constant 0 : index
      %c0_172 = arith.constant 0 : index
      %361 = vector.load %arg20[%c3_170, %c0_171, %c0_172] : memref<4x8x16xf32, #tpu.memory_space<vmem>>, vector<1x8x16xf32>
      %362 = vector.shape_cast %361 : vector<1x8x16xf32> to vector<8x16xf32>
      %363 = vector.shape_cast %360 : vector<8x16xf32> to vector<1x8x16xf32>
      tpu.vector_store %arg20[%c3_170, %c0_171, %c0_172], %363 {strides = array<i32>} : memref<4x8x16xf32, #tpu.memory_space<vmem>>, vector<1x8x16xf32>,
      %c3_i32 = arith.constant 3 : i32
      %364 = vector.broadcast %c3_i32 : i32 to vector<8x128xi32>
      %365 = arith.cmpi eq, %285, %364 : vector<8x128xi32>
      %366 = arith.mulf %277, %283 : vector<8x16xf32>
      %367 = vector.shape_cast %366 : vector<8x16xf32> to vector<1x8x16xf32>
      %cst_173 = arith.constant dense<0.000000e+00> : vector<1xf32>
      %368 = vector.multi_reduction <add>, %367, %cst_173 [1, 2] : vector<1x8x16xf32> to vector<1xf32>
      %369 = vector.shape_cast %368 : vector<1xf32> to vector<1x1x1xf32>
      %370 = vector.extract %369[0, 0, 0] : f32 from vector<1x1x1xf32>
      %cst_174 = arith.constant 0.000000e+00 : f32
      %371 = vector.broadcast %370 : f32 to vector<8x128xf32>
      %372 = vector.broadcast %cst_174 : f32 to vector<8x128xf32>
      %373 = arith.select %365, %371, %372 : vector<8x128xi1>, vector<8x128xf32>
      %374 = arith.addf %352, %373 : vector<8x128xf32>
      %c0_175 = arith.constant 0 : index
      %c0_176 = arith.constant 0 : index
      %375 = vector.load %arg21[%c0_175, %c0_176] : memref<8x128xf32, #tpu.memory_space<vmem>>, vector<8x128xf32>
      tpu.vector_store %arg21[%c0_175, %c0_176], %374 {strides = array<i32>} : memref<8x128xf32, #tpu.memory_space<vmem>>, vector<8x128xf32>,
    } else {
    }
    %c0_i32_2 = arith.constant 0 : i32
    %8 = arith.cmpi eq, %arg1, %c0_i32_2 : i32
    %9 = arith.extui %8 : i1 to i32
    %c0_i32_3 = arith.constant 0 : i32
    %10 = arith.cmpi ne, %9, %c0_i32_3 : i32
    scf.if %10 {
      %c0 = arith.constant 0 : index
      %c0_4 = arith.constant 0 : index
      %c0_5 = arith.constant 0 : index
      %11 = vector.load %arg20[%c0, %c0_4, %c0_5] : memref<4x8x16xf32, #tpu.memory_space<vmem>>, vector<1x8x16xf32>
      %12 = vector.shape_cast %11 : vector<1x8x16xf32> to vector<8x16xf32>
      %c0_6 = arith.constant 0 : index
      %c0_7 = arith.constant 0 : index
      %c0_8 = arith.constant 0 : index
      %13 = vector.load %arg15[%c0_6, %c0_7, %c0_8] : memref<4x1x16xf32, #tpu.memory_space<vmem>>, vector<1x1x16xf32>
      %14 = vector.shape_cast %13 : vector<1x1x16xf32> to vector<1x16xf32>
      %15 = vector.broadcast %14 : vector<1x16xf32> to vector<8x16xf32>
      %16 = arith.addf %12, %15 : vector<8x16xf32>
      %cst = arith.constant 0.000000e+00 : f32
      %17 = vector.broadcast %cst : f32 to vector<8x16xf32>
      %18 = arith.maximumf %16, %17 : vector<8x16xf32>
      %c0_9 = arith.constant 0 : index
      %c0_10 = arith.constant 0 : index
      %c0_11 = arith.constant 0 : index
      %19 = vector.load %arg16[%c0_9, %c0_10, %c0_11] : memref<4x16x128xf32, #tpu.memory_space<vmem>>, vector<1x16x128xf32>
      %20 = vector.shape_cast %19 : vector<1x16x128xf32> to vector<16x128xf32>
      %cst_12 = arith.constant dense<0.000000e+00> : vector<8x128xf32>
      %21 = tpu.matmul %18, %20, %cst_12 {dimension_numbers = #tpu.dot_dimension_numbers<[1], [0], [0], [1], [0, 0, 1, 1], [], []>} : vector<8x16xf32>, vector<16x128xf32>, vector<8x128xf32> -> vector<8x128xf32>
      %c1 = arith.constant 1 : index
      %c0_13 = arith.constant 0 : index
      %c0_14 = arith.constant 0 : index
      %22 = vector.load %arg20[%c1, %c0_13, %c0_14] : memref<4x8x16xf32, #tpu.memory_space<vmem>>, vector<1x8x16xf32>
      %23 = vector.shape_cast %22 : vector<1x8x16xf32> to vector<8x16xf32>
      %c1_15 = arith.constant 1 : index
      %c0_16 = arith.constant 0 : index
      %c0_17 = arith.constant 0 : index
      %24 = vector.load %arg15[%c1_15, %c0_16, %c0_17] : memref<4x1x16xf32, #tpu.memory_space<vmem>>, vector<1x1x16xf32>
      %25 = vector.shape_cast %24 : vector<1x1x16xf32> to vector<1x16xf32>
      %26 = vector.broadcast %25 : vector<1x16xf32> to vector<8x16xf32>
      %27 = arith.addf %23, %26 : vector<8x16xf32>
      %cst_18 = arith.constant 0.000000e+00 : f32
      %28 = vector.broadcast %cst_18 : f32 to vector<8x16xf32>
      %29 = arith.maximumf %27, %28 : vector<8x16xf32>
      %c1_19 = arith.constant 1 : index
      %c0_20 = arith.constant 0 : index
      %c0_21 = arith.constant 0 : index
      %30 = vector.load %arg16[%c1_19, %c0_20, %c0_21] : memref<4x16x128xf32, #tpu.memory_space<vmem>>, vector<1x16x128xf32>
      %31 = vector.shape_cast %30 : vector<1x16x128xf32> to vector<16x128xf32>
      %cst_22 = arith.constant dense<0.000000e+00> : vector<8x128xf32>
      %32 = tpu.matmul %29, %31, %cst_22 {dimension_numbers = #tpu.dot_dimension_numbers<[1], [0], [0], [1], [0, 0, 1, 1], [], []>} : vector<8x16xf32>, vector<16x128xf32>, vector<8x128xf32> -> vector<8x128xf32>
      %33 = arith.addf %21, %32 : vector<8x128xf32>
      %c2 = arith.constant 2 : index
      %c0_23 = arith.constant 0 : index
      %c0_24 = arith.constant 0 : index
      %34 = vector.load %arg20[%c2, %c0_23, %c0_24] : memref<4x8x16xf32, #tpu.memory_space<vmem>>, vector<1x8x16xf32>
      %35 = vector.shape_cast %34 : vector<1x8x16xf32> to vector<8x16xf32>
      %c2_25 = arith.constant 2 : index
      %c0_26 = arith.constant 0 : index
      %c0_27 = arith.constant 0 : index
      %36 = vector.load %arg15[%c2_25, %c0_26, %c0_27] : memref<4x1x16xf32, #tpu.memory_space<vmem>>, vector<1x1x16xf32>
      %37 = vector.shape_cast %36 : vector<1x1x16xf32> to vector<1x16xf32>
      %38 = vector.broadcast %37 : vector<1x16xf32> to vector<8x16xf32>
      %39 = arith.addf %35, %38 : vector<8x16xf32>
      %cst_28 = arith.constant 0.000000e+00 : f32
      %40 = vector.broadcast %cst_28 : f32 to vector<8x16xf32>
      %41 = arith.maximumf %39, %40 : vector<8x16xf32>
      %c2_29 = arith.constant 2 : index
      %c0_30 = arith.constant 0 : index
      %c0_31 = arith.constant 0 : index
      %42 = vector.load %arg16[%c2_29, %c0_30, %c0_31] : memref<4x16x128xf32, #tpu.memory_space<vmem>>, vector<1x16x128xf32>
      %43 = vector.shape_cast %42 : vector<1x16x128xf32> to vector<16x128xf32>
      %cst_32 = arith.constant dense<0.000000e+00> : vector<8x128xf32>
      %44 = tpu.matmul %41, %43, %cst_32 {dimension_numbers = #tpu.dot_dimension_numbers<[1], [0], [0], [1], [0, 0, 1, 1], [], []>} : vector<8x16xf32>, vector<16x128xf32>, vector<8x128xf32> -> vector<8x128xf32>
      %45 = arith.addf %33, %44 : vector<8x128xf32>
      %c3 = arith.constant 3 : index
      %c0_33 = arith.constant 0 : index
      %c0_34 = arith.constant 0 : index
      %46 = vector.load %arg20[%c3, %c0_33, %c0_34] : memref<4x8x16xf32, #tpu.memory_space<vmem>>, vector<1x8x16xf32>
      %47 = vector.shape_cast %46 : vector<1x8x16xf32> to vector<8x16xf32>
      %c3_35 = arith.constant 3 : index
      %c0_36 = arith.constant 0 : index
      %c0_37 = arith.constant 0 : index
      %48 = vector.load %arg15[%c3_35, %c0_36, %c0_37] : memref<4x1x16xf32, #tpu.memory_space<vmem>>, vector<1x1x16xf32>
      %49 = vector.shape_cast %48 : vector<1x1x16xf32> to vector<1x16xf32>
      %50 = vector.broadcast %49 : vector<1x16xf32> to vector<8x16xf32>
      %51 = arith.addf %47, %50 : vector<8x16xf32>
      %cst_38 = arith.constant 0.000000e+00 : f32
      %52 = vector.broadcast %cst_38 : f32 to vector<8x16xf32>
      %53 = arith.maximumf %51, %52 : vector<8x16xf32>
      %c3_39 = arith.constant 3 : index
      %c0_40 = arith.constant 0 : index
      %c0_41 = arith.constant 0 : index
      %54 = vector.load %arg16[%c3_39, %c0_40, %c0_41] : memref<4x16x128xf32, #tpu.memory_space<vmem>>, vector<1x16x128xf32>
      %55 = vector.shape_cast %54 : vector<1x16x128xf32> to vector<16x128xf32>
      %cst_42 = arith.constant dense<0.000000e+00> : vector<8x128xf32>
      %56 = tpu.matmul %53, %55, %cst_42 {dimension_numbers = #tpu.dot_dimension_numbers<[1], [0], [0], [1], [0, 0, 1, 1], [], []>} : vector<8x16xf32>, vector<16x128xf32>, vector<8x128xf32> -> vector<8x128xf32>
      %57 = arith.addf %45, %56 : vector<8x128xf32>
      %c0_43 = arith.constant 0 : index
      %c0_44 = arith.constant 0 : index
      %58 = vector.load %arg17[%c0_43, %c0_44] : memref<1x128xf32, #tpu.memory_space<vmem>>, vector<1x128xf32>
      %59 = vector.broadcast %58 : vector<1x128xf32> to vector<8x128xf32>
      %60 = arith.addf %57, %59 : vector<8x128xf32>
      %c0_45 = arith.constant 0 : index
      %c0_46 = arith.constant 0 : index
      %61 = vector.load %arg18[%c0_45, %c0_46] : memref<8x128xf32, #tpu.memory_space<vmem>>, vector<8x128xf32>
      tpu.vector_store %arg18[%c0_45, %c0_46], %60 {strides = array<i32>} : memref<8x128xf32, #tpu.memory_space<vmem>>, vector<8x128xf32>,
      %c0_47 = arith.constant 0 : index
      %c0_48 = arith.constant 0 : index
      %62 = vector.load %arg21[%c0_47, %c0_48] : memref<8x128xf32, #tpu.memory_space<vmem>>, vector<8x128xf32>
      %c0_49 = arith.constant 0 : index
      %c0_50 = arith.constant 0 : index
      %63 = vector.load %arg19[%c0_49, %c0_50] : memref<8x128xf32, #tpu.memory_space<vmem>>, vector<8x128xf32>
      tpu.vector_store %arg19[%c0_49, %c0_50], %62 {strides = array<i32>} : memref<8x128xf32, #tpu.memory_space<vmem>>, vector<8x128xf32>,
    } else {
    }
    return
  }
  func.func @transform_0(%arg0: i32, %arg1: i32, %arg2: memref<2xi32, #tpu.memory_space<smem>>, %arg3: memref<2xi32, #tpu.memory_space<smem>>) -> (i32, i32) {
    %c0_i32 = arith.constant 0 : i32
    %c0_i32_0 = arith.constant 0 : i32
    %c0_i32_1 = arith.constant 0 : i32
    return %c0_i32, %c0_i32_0 : i32, i32
  }
  func.func @transform_1(%arg0: i32, %arg1: i32, %arg2: memref<2xi32, #tpu.memory_space<smem>>, %arg3: memref<2xi32, #tpu.memory_space<smem>>) -> (i32, i32) {
    %c0_i32 = arith.constant 0 : i32
    %c0_i32_0 = arith.constant 0 : i32
    %c0_i32_1 = arith.constant 0 : i32
    return %c0_i32, %c0_i32_0 : i32, i32
  }
  func.func @transform_2(%arg0: i32, %arg1: i32, %arg2: memref<2xi32, #tpu.memory_space<smem>>, %arg3: memref<2xi32, #tpu.memory_space<smem>>) -> (i32, i32) {
    %c0_i32 = arith.constant 0 : i32
    %c0_i32_0 = arith.constant 0 : i32
    %c0_i32_1 = arith.constant 0 : i32
    return %c0_i32, %c0_i32_0 : i32, i32
  }
  func.func @transform_3(%arg0: i32, %arg1: i32, %arg2: memref<2xi32, #tpu.memory_space<smem>>, %arg3: memref<2xi32, #tpu.memory_space<smem>>) -> (i32, i32) {
    %c0_i32 = arith.constant 0 : i32
    %c0_i32_0 = arith.constant 0 : i32
    %c0_i32_1 = arith.constant 0 : i32
    return %c0_i32, %c0_i32_0 : i32, i32
  }
  func.func @transform_4(%arg0: i32, %arg1: i32, %arg2: memref<2xi32, #tpu.memory_space<smem>>, %arg3: memref<2xi32, #tpu.memory_space<smem>>) -> (i32, i32) {
    %c0_i32 = arith.constant 0 : i32
    %c0_i32_0 = arith.constant 0 : i32
    return %arg0, %c0_i32 : i32, i32
  }
  func.func @transform_5(%arg0: i32, %arg1: i32, %arg2: memref<2xi32, #tpu.memory_space<smem>>, %arg3: memref<2xi32, #tpu.memory_space<smem>>) -> (i32, i32) {
    %0 = arith.index_cast %arg0 : i32 to index
    %1 = memref.load %arg3[%0] : memref<2xi32, #tpu.memory_space<smem>>
    %c1_i32 = arith.constant 1 : i32
    %2 = arith.subi %1, %c1_i32 : i32
    %c0_i32 = arith.constant 0 : i32
    %3 = arith.maxsi %2, %c0_i32 : i32
    %4 = arith.minsi %arg1, %3 : i32
    %5 = arith.index_cast %arg0 : i32 to index
    %6 = memref.load %arg2[%5] : memref<2xi32, #tpu.memory_space<smem>>
    %7 = arith.addi %6, %4 : i32
    %c0_i32_0 = arith.constant 0 : i32
    %c0_i32_1 = arith.constant 0 : i32
    %8 = arith.maxsi %c0_i32_0, %7 : i32
    %9 = arith.minsi %c0_i32_1, %8 : i32
    %c0_i32_2 = arith.constant 0 : i32
    %c0_i32_3 = arith.constant 0 : i32
    return %c0_i32_2, %9 : i32, i32
  }
  func.func @transform_6(%arg0: i32, %arg1: i32, %arg2: memref<2xi32, #tpu.memory_space<smem>>, %arg3: memref<2xi32, #tpu.memory_space<smem>>) -> (i32, i32) {
    %c0_i32 = arith.constant 0 : i32
    %c0_i32_0 = arith.constant 0 : i32
    return %arg0, %c0_i32 : i32, i32
  }
  func.func @transform_7(%arg0: i32, %arg1: i32, %arg2: memref<2xi32, #tpu.memory_space<smem>>, %arg3: memref<2xi32, #tpu.memory_space<smem>>) -> (i32, i32) {
    %0 = arith.index_cast %arg0 : i32 to index
    %1 = memref.load %arg3[%0] : memref<2xi32, #tpu.memory_space<smem>>
    %c1_i32 = arith.constant 1 : i32
    %2 = arith.subi %1, %c1_i32 : i32
    %c0_i32 = arith.constant 0 : i32
    %3 = arith.maxsi %2, %c0_i32 : i32
    %4 = arith.minsi %arg1, %3 : i32
    %5 = arith.index_cast %arg0 : i32 to index
    %6 = memref.load %arg2[%5] : memref<2xi32, #tpu.memory_space<smem>>
    %7 = arith.addi %6, %4 : i32
    %c0_i32_0 = arith.constant 0 : i32
    %c0_i32_1 = arith.constant 0 : i32
    %8 = arith.maxsi %c0_i32_0, %7 : i32
    %9 = arith.minsi %c0_i32_1, %8 : i32
    %c0_i32_2 = arith.constant 0 : i32
    %c0_i32_3 = arith.constant 0 : i32
    return %c0_i32_2, %9 : i32, i32
  }
  func.func @transform_8(%arg0: i32, %arg1: i32, %arg2: memref<2xi32, #tpu.memory_space<smem>>, %arg3: memref<2xi32, #tpu.memory_space<smem>>) -> (i32, i32) {
    %c0_i32 = arith.constant 0 : i32
    %c0_i32_0 = arith.constant 0 : i32
    return %arg0, %c0_i32 : i32, i32
  }
  func.func @transform_9(%arg0: i32, %arg1: i32, %arg2: memref<2xi32, #tpu.memory_space<smem>>, %arg3: memref<2xi32, #tpu.memory_space<smem>>) -> (i32, i32) {
    %c0_i32 = arith.constant 0 : i32
    %c0_i32_0 = arith.constant 0 : i32
    return %arg0, %c0_i32 : i32, i32
  }
  func.func @transform_10(%arg0: i32, %arg1: i32, %arg2: memref<2xi32, #tpu.memory_space<smem>>, %arg3: memref<2xi32, #tpu.memory_space<smem>>) -> (i32, i32, i32) {
    %0 = arith.index_cast %arg0 : i32 to index
    %1 = memref.load %arg3[%0] : memref<2xi32, #tpu.memory_space<smem>>
    %c1_i32 = arith.constant 1 : i32
    %2 = arith.subi %1, %c1_i32 : i32
    %c0_i32 = arith.constant 0 : i32
    %3 = arith.maxsi %2, %c0_i32 : i32
    %4 = arith.minsi %arg1, %3 : i32
    %5 = arith.index_cast %arg0 : i32 to index
    %6 = memref.load %arg2[%5] : memref<2xi32, #tpu.memory_space<smem>>
    %7 = arith.addi %6, %4 : i32
    %c0_i32_0 = arith.constant 0 : i32
    %c0_i32_1 = arith.constant 0 : i32
    %8 = arith.maxsi %c0_i32_0, %7 : i32
    %9 = arith.minsi %c0_i32_1, %8 : i32
    %c0_i32_2 = arith.constant 0 : i32
    %c0_i32_3 = arith.constant 0 : i32
    %c0_i32_4 = arith.constant 0 : i32
    return %c0_i32_2, %9, %c0_i32_3 : i32, i32, i32
  }
  func.func @transform_11(%arg0: i32, %arg1: i32, %arg2: memref<2xi32, #tpu.memory_space<smem>>, %arg3: memref<2xi32, #tpu.memory_space<smem>>) -> (i32, i32, i32) {
    %c0_i32 = arith.constant 0 : i32
    %c0_i32_0 = arith.constant 0 : i32
    %c0_i32_1 = arith.constant 0 : i32
    %c0_i32_2 = arith.constant 0 : i32
    return %c0_i32, %c0_i32_0, %c0_i32_1 : i32, i32, i32
  }
  func.func @transform_12(%arg0: i32, %arg1: i32, %arg2: memref<2xi32, #tpu.memory_space<smem>>, %arg3: memref<2xi32, #tpu.memory_space<smem>>) -> (i32, i32, i32) {
    %c0_i32 = arith.constant 0 : i32
    %c0_i32_0 = arith.constant 0 : i32
    %c0_i32_1 = arith.constant 0 : i32
    %c0_i32_2 = arith.constant 0 : i32
    return %c0_i32, %c0_i32_0, %c0_i32_1 : i32, i32, i32
  }
  func.func @transform_13(%arg0: i32, %arg1: i32, %arg2: memref<2xi32, #tpu.memory_space<smem>>, %arg3: memref<2xi32, #tpu.memory_space<smem>>) -> (i32, i32) {
    %c0_i32 = arith.constant 0 : i32
    %c0_i32_0 = arith.constant 0 : i32
    %c0_i32_1 = arith.constant 0 : i32
    return %c0_i32, %c0_i32_0 : i32, i32
  }
  func.func @transform_14(%arg0: i32, %arg1: i32, %arg2: memref<2xi32, #tpu.memory_space<smem>>, %arg3: memref<2xi32, #tpu.memory_space<smem>>) -> (i32, i32) {
    %c0_i32 = arith.constant 0 : i32
    %c0_i32_0 = arith.constant 0 : i32
    return %arg0, %c0_i32 : i32, i32
  }
  func.func @transform_15(%arg0: i32, %arg1: i32, %arg2: memref<2xi32, #tpu.memory_space<smem>>, %arg3: memref<2xi32, #tpu.memory_space<smem>>) -> (i32, i32) {
    %c0_i32 = arith.constant 0 : i32
    %c0_i32_0 = arith.constant 0 : i32
    return %arg0, %c0_i32 : i32, i32
  }
}

</mosaic_0001>

<llo_original>
// kernel: run.6
$region0: #{run.6}
  #allocation0 [shape = 'u32[]', space=smem, size = 0x4, offset = 0x4, fixed_abs, tag = 'smem constant byte address 0x4 - core index']
  #allocation1 [shape = 'u32[72,128]{1,0:T(1,128)}', space=vmem, size = 0x9000, scoped, tag = 'internal scratch']
  %s0 = inlined_call_operand.vmem [shape: f32[16,8], index: 0, kind: input, shape index: {}]
  %s1 = inlined_call_operand.vmem [shape: f32[16,2], index: 1, kind: input, shape index: {}]
  %s2 = inlined_call_operand.vmem [shape: f32[2,8], index: 2, kind: input, shape index: {}]
  %s3 = inlined_call_operand.vmem [shape: f32[2,8], index: 3, kind: input, shape index: {}]
  %s4 = inlined_call_operand.vmem [shape: f32[1,8], index: 4, kind: input, shape index: {}]
  %s5 = inlined_call_operand.vmem [shape: f32[16,8], index: 5, kind: output, shape index: {}]
  %s6 = sld [smem:[#allocation0]]
  $region53: #{run.6} parent=0
    _
  %s8 = ssub.s32 1, %s6
  %s9 = scalar_select 0, %s8, %s6
  loop: start=0, step=1, limit=4
  $region2: #{run.6} parent=0 // loop_pre_header
    _
  $region3: #{run.6} parent=0 // loop_header
    %s11 = sphi 0, %s15
    %p12 = scmp.ge.s32.totalorder %s11, 4
    %s21 = sphi 0, %s23
    %s24 = sphi 0, %s21
    %s25 = sphi 0, %s24
    %s41 = sphi 0, %s25
    %s47 = sphi 0, %s49
    %s50 = sphi 0, %s47
    %s51 = sphi 0, %s50
    %s67 = sphi 0, %s51
    %s71 = sphi 0, %s71
    %s73 = sphi 0, %s71
    %s74 = sphi 0, %s73
    %s88 = sphi 0, %s74
    %s92 = sphi 0, %s92
    %s94 = sphi 0, %s92
    %s95 = sphi 0, %s94
    %s109 = sphi 0, %s95
    %s113 = sphi 0, %s113
    %s115 = sphi 0, %s113
    %s116 = sphi 0, %s115
    %s130 = sphi 0, %s116
    %s136 = sphi 0, %s138
    %s139 = sphi 0, %s136
    %s140 = sphi 0, %s139
    %s156 = sphi 0, %s140
  $region4: #{run.6} parent=0 // loop_header_branch
    %14 = sbr.rel (%p12) target = $region8
  $region5: #{run.6} parent=0 // loop_body
    %s16 = ssub.s32 %s11, 1
    %s17 = ssub.s32 %s11, 2
    %s18 = sadd.s32 %s11, 1
    %s19 = ssub.s32 %s11, %s18
    %p20 = scmp.eq.s32.totalorder %s19, 0
    %s22 = sadd.s32 %s21, 1
    %s23 = scalar_select %p20, %s21, %s22
    %p26 = pneg %p20
    %p27 = scmp.eq.s32.totalorder %s11, 1
    %p28 = por %p26, %p27
    %p29 = scmp.ne.s32.totalorder %s21, %s24
    %p30 = scmp.eq.s32.totalorder %s11, 0
    %p31 = por %p29, %p30
    %p32 = scmp.ne.s32.totalorder %s21, %s24
    %p33 = scmp.eq.s32.totalorder %s16, 1
    %p34 = por %p32, %p33
    %p35 = scmp.ne.s32.totalorder %s24, %s25
    %p36 = scmp.eq.s32.totalorder %s16, 0
    %p37 = por %p35, %p36
    %p38 = scmp.ne.s32.totalorder %s24, %s25
    %p39 = scmp.eq.s32.totalorder %s17, 1
    %p40 = por %p38, %p39
    %p42 = scmp.ne.s32.totalorder %s25, %s41
    %p43 = scmp.eq.s32.totalorder %s17, 0
    %p44 = por %p42, %p43
    %s45 = ssub.s32 %s11, %s18
    %p46 = scmp.eq.s32.totalorder %s45, 0
    %s48 = sadd.s32 %s47, 1
    %s49 = scalar_select %p46, %s47, %s48
    %p52 = pneg %p46
    %p53 = scmp.eq.s32.totalorder %s11, 1
    %p54 = por %p52, %p53
    %p55 = scmp.ne.s32.totalorder %s47, %s50
    %p56 = scmp.eq.s32.totalorder %s11, 0
    %p57 = por %p55, %p56
    %p58 = scmp.ne.s32.totalorder %s47, %s50
    %p59 = scmp.eq.s32.totalorder %s16, 1
    %p60 = por %p58, %p59
    %p61 = scmp.ne.s32.totalorder %s50, %s51
    %p62 = scmp.eq.s32.totalorder %s16, 0
    %p63 = por %p61, %p62
    %p64 = scmp.ne.s32.totalorder %s50, %s51
    %p65 = scmp.eq.s32.totalorder %s17, 1
    %p66 = por %p64, %p65
    %p68 = scmp.ne.s32.totalorder %s51, %s67
    %p69 = scmp.eq.s32.totalorder %s17, 0
    %p70 = por %p68, %p69
    %s72 = sadd.s32 %s71, 1
    %p75 = scmp.eq.s32.totalorder %s11, 1
    %p76 = scmp.ne.s32.totalorder %s71, %s73
    %p77 = scmp.eq.s32.totalorder %s11, 0
    %p78 = por %p76, %p77
    %p79 = scmp.ne.s32.totalorder %s71, %s73
    %p80 = scmp.eq.s32.totalorder %s16, 1
    %p81 = por %p79, %p80
    %p82 = scmp.ne.s32.totalorder %s73, %s74
    %p83 = scmp.eq.s32.totalorder %s16, 0
    %p84 = por %p82, %p83
    %p85 = scmp.ne.s32.totalorder %s73, %s74
    %p86 = scmp.eq.s32.totalorder %s17, 1
    %p87 = por %p85, %p86
    %p89 = scmp.ne.s32.totalorder %s74, %s88
    %p90 = scmp.eq.s32.totalorder %s17, 0
    %p91 = por %p89, %p90
    %s93 = sadd.s32 %s92, 1
    %p96 = scmp.eq.s32.totalorder %s11, 1
    %p97 = scmp.ne.s32.totalorder %s92, %s94
    %p98 = scmp.eq.s32.totalorder %s11, 0
    %p99 = por %p97, %p98
    %p100 = scmp.ne.s32.totalorder %s92, %s94
    %p101 = scmp.eq.s32.totalorder %s16, 1
    %p102 = por %p100, %p101
    %p103 = scmp.ne.s32.totalorder %s94, %s95
    %p104 = scmp.eq.s32.totalorder %s16, 0
    %p105 = por %p103, %p104
    %p106 = scmp.ne.s32.totalorder %s94, %s95
    %p107 = scmp.eq.s32.totalorder %s17, 1
    %p108 = por %p106, %p107
    %p110 = scmp.ne.s32.totalorder %s95, %s109
    %p111 = scmp.eq.s32.totalorder %s17, 0
    %p112 = por %p110, %p111
    %s114 = sadd.s32 %s113, 1
    %p117 = scmp.eq.s32.totalorder %s11, 1
    %p118 = scmp.ne.s32.totalorder %s113, %s115
    %p119 = scmp.eq.s32.totalorder %s11, 0
    %p120 = por %p118, %p119
    %p121 = scmp.ne.s32.totalorder %s113, %s115
    %p122 = scmp.eq.s32.totalorder %s16, 1
    %p123 = por %p121, %p122
    %p124 = scmp.ne.s32.totalorder %s115, %s116
    %p125 = scmp.eq.s32.totalorder %s16, 0
    %p126 = por %p124, %p125
    %p127 = scmp.ne.s32.totalorder %s115, %s116
    %p128 = scmp.eq.s32.totalorder %s17, 1
    %p129 = por %p127, %p128
    %p131 = scmp.ne.s32.totalorder %s116, %s130
    %p132 = scmp.eq.s32.totalorder %s17, 0
    %p133 = por %p131, %p132
    %s134 = ssub.s32 %s11, %s18
    %p135 = scmp.eq.s32.totalorder %s134, 0
    %s137 = sadd.s32 %s136, 1
    %s138 = scalar_select %p135, %s136, %s137
    %p141 = pneg %p135
    %p142 = scmp.eq.s32.totalorder %s11, 1
    %p143 = por %p141, %p142
    %p144 = scmp.ne.s32.totalorder %s136, %s139
    %p145 = scmp.eq.s32.totalorder %s11, 0
    %p146 = por %p144, %p145
    %p147 = scmp.ne.s32.totalorder %s136, %s139
    %p148 = scmp.eq.s32.totalorder %s16, 1
    %p149 = por %p147, %p148
    %p150 = scmp.ne.s32.totalorder %s139, %s140
    %p151 = scmp.eq.s32.totalorder %s16, 0
    %p152 = por %p150, %p151
    %p153 = scmp.ne.s32.totalorder %s139, %s140
    %p154 = scmp.eq.s32.totalorder %s17, 1
    %p155 = por %p153, %p154
    %p157 = scmp.ne.s32.totalorder %s140, %s156
    %p158 = scmp.eq.s32.totalorder %s17, 0
    %p159 = por %p157, %p158
    %p160 = scmp.le.s32.totalorder 1, %s11
    %p161 = scmp.lt.s32.totalorder %s11, 3
    %p162 = pnand %p160, %p161
    %p163 = pneg %p162
    // Predicated region
    $region9: #{run.6} parent=5 // pred_check
      _
    $region10: #{run.6} parent=5 // pred_check_branch
      %165 = sbr.rel (%p162) target = $region12
    $region11: #{run.6} parent=5 // pred_region
      %s166 = ssub.s32 %s11, 1
      // Predicated region
      $region13: #{run.6} parent=11 // pred_check
        %p167 = pneg %p84
      $region14: #{run.6} parent=11 // pred_check_branch
        %169 = sbr.rel (%p167) target = $region16
      $region15: #{run.6} parent=11 // pred_region
        _
      $region16: #{run.6} parent=11 // pred_fallthru
        _
      // Predicated region
      $region17: #{run.6} parent=11 // pred_check
        %p170 = pneg %p105
      $region18: #{run.6} parent=11 // pred_check_branch
        %172 = sbr.rel (%p170) target = $region20
      $region19: #{run.6} parent=11 // pred_region
        _
      $region20: #{run.6} parent=11 // pred_fallthru
        _
      // Predicated region
      $region21: #{run.6} parent=11 // pred_check
        %p173 = pneg %p126
      $region22: #{run.6} parent=11 // pred_check_branch
        %175 = sbr.rel (%p173) target = $region24
      $region23: #{run.6} parent=11 // pred_region
        _
      $region24: #{run.6} parent=11 // pred_fallthru
        _
    $region12: #{run.6} parent=5 // pred_fallthru
      _
    %p176 = scmp.lt.s32.totalorder %s11, 2
    // Predicated region
    $region25: #{run.6} parent=5 // pred_check
      %p177 = pneg %p176
    $region26: #{run.6} parent=5 // pred_check_branch
      %179 = sbr.rel (%p177) target = $region28
    $region27: #{run.6} parent=5 // pred_region
      // Predicated region
      $region29: #{run.6} parent=27 // pred_check
        %p180 = pneg %p31
      $region30: #{run.6} parent=27 // pred_check_branch
        %182 = sbr.rel (%p180) target = $region32
      $region31: #{run.6} parent=27 // pred_region
        %p183 = scmp.lt.s32.totalorder %s11, 1
        %s184 = scalar_select %p183, %s11, 1
        %s185 = smul.addr %s184, 8
        %s186 = scalar_lea.vmem %s0, %s185
      $region32: #{run.6} parent=27 // pred_fallthru
        _
      // Predicated region
      $region33: #{run.6} parent=27 // pred_check
        %p187 = pneg %p57
      $region34: #{run.6} parent=27 // pred_check_branch
        %189 = sbr.rel (%p187) target = $region36
      $region35: #{run.6} parent=27 // pred_region
        %p190 = scmp.lt.s32.totalorder %s11, 1
        %s191 = scalar_select %p190, %s11, 1
        %s192 = smul.addr %s191, 8
        %s193 = scalar_lea.vmem %s1, %s192
      $region36: #{run.6} parent=27 // pred_fallthru
        _
    $region28: #{run.6} parent=5 // pred_fallthru
      _
    %p194 = scmp.le.s32.totalorder 1, %s11
    %p195 = scmp.lt.s32.totalorder %s11, 3
    %p196 = pnand %p194, %p195
    %p197 = pneg %p196
    // Predicated region
    $region37: #{run.6} parent=5 // pred_check
      _
    $region38: #{run.6} parent=5 // pred_check_branch
      %199 = sbr.rel (%p196) target = $region40
    $region39: #{run.6} parent=5 // pred_region
      %s200 = ssub.s32 %s11, 1
      %p201 = scmp.lt.s32.totalorder %s16, 1
      %s202 = scalar_select %p201, %s16, 1
      %s203 = smul.addr %s202, 8
      %s204 = scalar_lea.vmem %s0, %s203
      %p205 = pneg %p37
      %p206 = pneg %p34
      %p207 = scmp.lt.s32.totalorder %s16, 1
      %s208 = scalar_select %p207, %s16, 1
      %s209 = smul.addr %s208, 8
      %s210 = scalar_lea.vmem %s1, %s209
      %p211 = pneg %p63
      %p212 = pneg %p60
      %p213 = pneg %p84
      %p214 = pneg %p81
      %p215 = pneg %p105
      %p216 = pneg %p102
      %p217 = pneg %p126
      %p218 = pneg %p123
      %p219 = pneg %p152
      %p220 = pneg %p149
      %p221 = scmp.lt.s32.totalorder %s16, 1
      %s222 = scalar_select %p221, %s16, 1
      %s223 = smul.addr %s222, 8
      %s224 = scalar_lea.vmem %s5, %s223
      %p225 = scmp.lt.s32.totalorder %s16, 1
      %s226 = scalar_select %p225, %s16, 1
      %s227 = smul.addr %s226, 8
      %s228 = scalar_lea.vmem %s0, %s227
      %p229 = scmp.lt.s32.totalorder %s16, 1
      %s230 = scalar_select %p229, %s16, 1
      %s231 = smul.addr %s230, 8
      %s232 = scalar_lea.vmem %s1, %s231
      %p233 = scmp.lt.s32.totalorder %s16, 1
      %s234 = scalar_select %p233, %s16, 1
      %s235 = smul.addr %s234, 8
      %s236 = scalar_lea.vmem %s5, %s235
      %v237 = vld [vmem:[%s232] sm:$0xff]
      %v238 = vld [vmem:[%s2] sm:$0x3]
      %vm239 = vcmask 15360
      %v241 = vsel %vm239, %v237, 0
      %vm243 = vcmask 1041408
      %v245 = vsel %vm243, %v238, 0
      %247 = vmatpush.msra.mxu0 0.0
      %248 = vmatpush.msra.mxu0 0.0
      %249 = vmatpush.msra.mxu0 0.0
      %250 = vmatpush.msra.mxu0 0.0
      %251 = vmatpush.msra.mxu0 0.0
      %252 = vmatpush.msra.mxu0 0.0
      %253 = vmatpush.msra.mxu0 0.0
      %254 = vmatpush.msra.mxu0 0.0
      %255 = vmatpush.msra.mxu0 0.0
      %256 = vmatpush.msra.mxu0 0.0
      %257 = vmatpush.msra.mxu0 0.0
      %258 = vmatpush.msra.mxu0 0.0
      %259 = vmatpush.msra.mxu0 0.0
      %260 = vmatpush.msra.mxu0 0.0
      %261 = vmatpush.msra.mxu0 0.0
      %262 = vmatpush.msra.mxu0 %v245
      %263 = vmatmul.f32.gmra.mxu0 %v241
      %v264 = vpop.f32.mrf.mxu0
      %v265 = vadd.f32 0.0, %v264
      %266 = vdwg.mxu0
      %v267 = vld [vmem:[%s3] sm:$0x3]
      %v269 = vsel %vm243, %v267, 0
      %271 = vmatpush.msra.mxu0 0.0
      %272 = vmatpush.msra.mxu0 0.0
      %273 = vmatpush.msra.mxu0 0.0
      %274 = vmatpush.msra.mxu0 0.0
      %275 = vmatpush.msra.mxu0 0.0
      %276 = vmatpush.msra.mxu0 0.0
      %277 = vmatpush.msra.mxu0 0.0
      %278 = vmatpush.msra.mxu0 0.0
      %279 = vmatpush.msra.mxu0 0.0
      %280 = vmatpush.msra.mxu0 0.0
      %281 = vmatpush.msra.mxu0 0.0
      %282 = vmatpush.msra.mxu0 0.0
      %283 = vmatpush.msra.mxu0 0.0
      %284 = vmatpush.msra.mxu0 0.0
      %285 = vmatpush.msra.mxu0 0.0
      %286 = vmatpush.msra.mxu0 %v269
      %287 = vmatmul.f32.gmra.mxu0 %v241
      %v288 = vpop.f32.mrf.mxu0
      %v289 = vadd.f32 0.0, %v288
      %290 = vdwg.mxu0
      %v291 = vld [vmem:[%s228] sm:$0xff]
      %v292 = vsub.f32 %v291, %v265
      %v293 = vmul.f32 %v292, %v289
      %v294 = vld [vmem:[%s4] sm:$0x1]
      %v296 = vperm.slane %v294, 0
      %v298 = vadd.f32 %v293, %v296
      %v299 = vtanh.pop %v298
      %vm300 = vcmask 64512
      %301 = vst.msk [vmem:[%s236] sm:$0xff] %vm300, %v299
      %p302 = scmp.lt.s32.totalorder %s16, 1
      %s303 = scalar_select %p302, %s16, 1
      %s304 = smul.addr %s303, 8
      %s305 = scalar_lea.vmem %s5, %s304
      // Predicated region
      $region41: #{run.6} parent=39 // pred_check
        %p306 = pneg %p149
      $region42: #{run.6} parent=39 // pred_check_branch
        %308 = sbr.rel (%p306) target = $region44
      $region43: #{run.6} parent=39 // pred_region
        _
      $region44: #{run.6} parent=39 // pred_fallthru
        _
    $region40: #{run.6} parent=5 // pred_fallthru
      _
    %p309 = scmp.le.s32.totalorder 2, %s11
    // Predicated region
    $region45: #{run.6} parent=5 // pred_check
      %p310 = pneg %p309
    $region46: #{run.6} parent=5 // pred_check_branch
      %312 = sbr.rel (%p310) target = $region48
    $region47: #{run.6} parent=5 // pred_region
      %s313 = ssub.s32 %s11, 2
      // Predicated region
      $region49: #{run.6} parent=47 // pred_check
        %p314 = pneg %p155
      $region50: #{run.6} parent=47 // pred_check_branch
        %316 = sbr.rel (%p314) target = $region52
      $region51: #{run.6} parent=47 // pred_region
        %p317 = scmp.lt.s32.totalorder %s17, 1
        %s318 = scalar_select %p317, %s17, 1
        %s319 = smul.addr %s318, 8
        %s320 = scalar_lea.vmem %s5, %s319
      $region52: #{run.6} parent=47 // pred_fallthru
        _
    $region48: #{run.6} parent=5 // pred_fallthru
      _
  $region6: #{run.6} parent=0 // loop_footer
    %s15 = sadd.s32 1, %s11
  $region7: #{run.6} parent=0 // loop_footer_branch
    %10 = sbr.rel target = $region3
  $region8: #{run.6} parent=0 // loop_exit
    _

// kernel: run.4
$region0: #{run.4}
  #allocation0 [shape = 'u32[]', space=smem, size = 0x4, offset = 0x4, fixed_abs, tag = 'smem constant byte address 0x4 - core index']
  #allocation1 [shape = 'u32[72,128]{1,0:T(1,128)}', space=vmem, size = 0x9000, scoped, tag = 'internal scratch']
  #allocation2 [shape = 's32[1]{0}', space=sflag, size = 0x4, scoped, tag = 'scoped memory for run.4']
  #allocation3 [shape = 'u8[512]{0}', space=smem, size = 0x200, scoped, tag = 'prefetched SMEM operand 0']
  #allocation4 [shape = 'u8[512]{0}', space=smem, size = 0x200, scoped, tag = 'prefetched SMEM operand 1']
  %s0 = inlined_call_operand.vmem [shape: s32[2], index: 0, kind: input, shape index: {}]
  %s1 = inlined_call_operand.vmem [shape: s32[2], index: 1, kind: input, shape index: {}]
  %s2 = inlined_call_operand.vmem [shape: f32[16,3], index: 2, kind: input, shape index: {}]
  %s3 = inlined_call_operand.vmem [shape: f32[3,16], index: 3, kind: input, shape index: {}]
  %s4 = inlined_call_operand.vmem [shape: f32[16,1], index: 4, kind: input, shape index: {}]
  %s5 = inlined_call_operand.vmem [shape: f32[1,16], index: 5, kind: input, shape index: {}]
  %s6 = inlined_call_operand.vmem [shape: f32[16,128], index: 6, kind: output, shape index: {}]
  %s7 = sld [smem:[#allocation0]]
  $region57: #{run.4} parent=0
    _
  %s9 = ssub.s32 1, %s7
  %s10 = scalar_select 0, %s9, %s7
  %s12 = sshll.u32 %s0, 4
  %s13 = int_to_ptr.vmem [resolvable:$true] %s12
  %15 = dma.vmem_to_smem %s13, 16, [#allocation3], [#allocation2]
  %s17 = sshll.u32 %s1, 4
  %s18 = int_to_ptr.vmem [resolvable:$true] %s17
  %20 = dma.vmem_to_smem %s18, 16, [#allocation4], [#allocation2]
  %22 = dma.done [#allocation2], 32
  %23 = sfence
  loop: start=0, step=1, limit=4
  $region2: #{run.4} parent=0 // loop_pre_header
    _
  $region3: #{run.4} parent=0 // loop_header
    %s25 = sphi 0, %s29
    %p26 = scmp.ge.s32.totalorder %s25, 4
    %s32 = sphi 0, %s44
    %s33 = sphi 0, %s40
    %s34 = sphi 0, %s32
    %s35 = sphi 0, %s33
    %s36 = sphi 0, %s34
    %s37 = sphi 0, %s35
    %s47 = sphi 0, %s49
    %s50 = sphi 0, %s47
    %s51 = sphi 0, %s50
    %s67 = sphi 0, %s51
    %s97 = sphi 0, %s99
    %s100 = sphi 0, %s97
    %s101 = sphi 0, %s100
    %s117 = sphi 0, %s101
    %s123 = sphi 0, %s125
    %s126 = sphi 0, %s123
    %s127 = sphi 0, %s126
    %s143 = sphi 0, %s127
    %s173 = sphi 0, %s175
    %s176 = sphi 0, %s173
    %s177 = sphi 0, %s176
    %s193 = sphi 0, %s177
    %s199 = sphi 0, %s201
    %s202 = sphi 0, %s199
    %s203 = sphi 0, %s202
    %s219 = sphi 0, %s203
  $region4: #{run.4} parent=0 // loop_header_branch
    %28 = sbr.rel (%p26) target = $region8
  $region5: #{run.4} parent=0 // loop_body
    %s30 = ssub.s32 %s25, 1
    %s31 = ssub.s32 %s25, 2
    %s38 = sadd.s32 1, %s33
    %p39 = scmp.ge.s32.totalorder %s38, 1
    %s40 = scalar_select %p39, 0, %s38
    %s41 = sadd.s32 1, %s32
    %s42 = scalar_select %p39, %s41, %s32
    %p43 = scmp.ge.s32.totalorder %s42, 2
    %s44 = scalar_select %p43, 0, %s42
    %s45 = ssub.s32 %s32, %s44
    %p46 = scmp.eq.s32.totalorder %s45, 0
    %s48 = sadd.s32 %s47, 1
    %s49 = scalar_select %p46, %s47, %s48
    %p52 = pneg %p46
    %p53 = scmp.eq.s32.totalorder %s25, 1
    %p54 = por %p52, %p53
    %p55 = scmp.ne.s32.totalorder %s47, %s50
    %p56 = scmp.eq.s32.totalorder %s25, 0
    %p57 = por %p55, %p56
    %p58 = scmp.ne.s32.totalorder %s47, %s50
    %p59 = scmp.eq.s32.totalorder %s30, 1
    %p60 = por %p58, %p59
    %p61 = scmp.ne.s32.totalorder %s50, %s51
    %p62 = scmp.eq.s32.totalorder %s30, 0
    %p63 = por %p61, %p62
    %p64 = scmp.ne.s32.totalorder %s50, %s51
    %p65 = scmp.eq.s32.totalorder %s31, 1
    %p66 = por %p64, %p65
    %p68 = scmp.ne.s32.totalorder %s51, %s67
    %p69 = scmp.eq.s32.totalorder %s31, 0
    %p70 = por %p68, %p69
    %s71 = sld [smem:[#allocation4 + %s32]]
    %s72 = ssub.s32 %s71, 1
    %p73 = scmp.gt.s32.totalorder %s72, 0
    %s74 = scalar_select %p73, %s72, 0
    %p75 = scmp.lt.s32.totalorder %s33, %s74
    %s76 = scalar_select %p75, %s33, %s74
    %s77 = sld [smem:[#allocation3 + %s32]]
    %s78 = sadd.s32 %s77, %s76
    %p79 = scmp.gt.s32.totalorder %s78, 0
    %s80 = scalar_select %p79, %s78, 0
    %p81 = scmp.lt.s32.totalorder %s80, 0
    %s82 = scalar_select %p81, %s80, 0
    %s83 = sld [smem:[#allocation4 + %s44]]
    %s84 = ssub.s32 %s83, 1
    %p85 = scmp.gt.s32.totalorder %s84, 0
    %s86 = scalar_select %p85, %s84, 0
    %p87 = scmp.lt.s32.totalorder %s40, %s86
    %s88 = scalar_select %p87, %s40, %s86
    %s89 = sld [smem:[#allocation3 + %s44]]
    %s90 = sadd.s32 %s89, %s88
    %p91 = scmp.gt.s32.totalorder %s90, 0
    %s92 = scalar_select %p91, %s90, 0
    %p93 = scmp.lt.s32.totalorder %s92, 0
    %s94 = scalar_select %p93, %s92, 0
    %s95 = ssub.s32 %s82, %s94
    %p96 = scmp.eq.s32.totalorder %s95, 0
    %s98 = sadd.s32 %s97, 1
    %s99 = scalar_select %p96, %s97, %s98
    %p102 = pneg %p96
    %p103 = scmp.eq.s32.totalorder %s25, 1
    %p104 = por %p102, %p103
    %p105 = scmp.ne.s32.totalorder %s97, %s100
    %p106 = scmp.eq.s32.totalorder %s25, 0
    %p107 = por %p105, %p106
    %p108 = scmp.ne.s32.totalorder %s97, %s100
    %p109 = scmp.eq.s32.totalorder %s30, 1
    %p110 = por %p108, %p109
    %p111 = scmp.ne.s32.totalorder %s100, %s101
    %p112 = scmp.eq.s32.totalorder %s30, 0
    %p113 = por %p111, %p112
    %p114 = scmp.ne.s32.totalorder %s100, %s101
    %p115 = scmp.eq.s32.totalorder %s31, 1
    %p116 = por %p114, %p115
    %p118 = scmp.ne.s32.totalorder %s101, %s117
    %p119 = scmp.eq.s32.totalorder %s31, 0
    %p120 = por %p118, %p119
    %s121 = ssub.s32 %s32, %s44
    %p122 = scmp.eq.s32.totalorder %s121, 0
    %s124 = sadd.s32 %s123, 1
    %s125 = scalar_select %p122, %s123, %s124
    %p128 = pneg %p122
    %p129 = scmp.eq.s32.totalorder %s25, 1
    %p130 = por %p128, %p129
    %p131 = scmp.ne.s32.totalorder %s123, %s126
    %p132 = scmp.eq.s32.totalorder %s25, 0
    %p133 = por %p131, %p132
    %p134 = scmp.ne.s32.totalorder %s123, %s126
    %p135 = scmp.eq.s32.totalorder %s30, 1
    %p136 = por %p134, %p135
    %p137 = scmp.ne.s32.totalorder %s126, %s127
    %p138 = scmp.eq.s32.totalorder %s30, 0
    %p139 = por %p137, %p138
    %p140 = scmp.ne.s32.totalorder %s126, %s127
    %p141 = scmp.eq.s32.totalorder %s31, 1
    %p142 = por %p140, %p141
    %p144 = scmp.ne.s32.totalorder %s127, %s143
    %p145 = scmp.eq.s32.totalorder %s31, 0
    %p146 = por %p144, %p145
    %s147 = sld [smem:[#allocation4 + %s32]]
    %s148 = ssub.s32 %s147, 1
    %p149 = scmp.gt.s32.totalorder %s148, 0
    %s150 = scalar_select %p149, %s148, 0
    %p151 = scmp.lt.s32.totalorder %s33, %s150
    %s152 = scalar_select %p151, %s33, %s150
    %s153 = sld [smem:[#allocation3 + %s32]]
    %s154 = sadd.s32 %s153, %s152
    %p155 = scmp.gt.s32.totalorder %s154, 0
    %s156 = scalar_select %p155, %s154, 0
    %p157 = scmp.lt.s32.totalorder %s156, 0
    %s158 = scalar_select %p157, %s156, 0
    %s159 = sld [smem:[#allocation4 + %s44]]
    %s160 = ssub.s32 %s159, 1
    %p161 = scmp.gt.s32.totalorder %s160, 0
    %s162 = scalar_select %p161, %s160, 0
    %p163 = scmp.lt.s32.totalorder %s40, %s162
    %s164 = scalar_select %p163, %s40, %s162
    %s165 = sld [smem:[#allocation3 + %s44]]
    %s166 = sadd.s32 %s165, %s164
    %p167 = scmp.gt.s32.totalorder %s166, 0
    %s168 = scalar_select %p167, %s166, 0
    %p169 = scmp.lt.s32.totalorder %s168, 0
    %s170 = scalar_select %p169, %s168, 0
    %s171 = ssub.s32 %s158, %s170
    %p172 = scmp.eq.s32.totalorder %s171, 0
    %s174 = sadd.s32 %s173, 1
    %s175 = scalar_select %p172, %s173, %s174
    %p178 = pneg %p172
    %p179 = scmp.eq.s32.totalorder %s25, 1
    %p180 = por %p178, %p179
    %p181 = scmp.ne.s32.totalorder %s173, %s176
    %p182 = scmp.eq.s32.totalorder %s25, 0
    %p183 = por %p181, %p182
    %p184 = scmp.ne.s32.totalorder %s173, %s176
    %p185 = scmp.eq.s32.totalorder %s30, 1
    %p186 = por %p184, %p185
    %p187 = scmp.ne.s32.totalorder %s176, %s177
    %p188 = scmp.eq.s32.totalorder %s30, 0
    %p189 = por %p187, %p188
    %p190 = scmp.ne.s32.totalorder %s176, %s177
    %p191 = scmp.eq.s32.totalorder %s31, 1
    %p192 = por %p190, %p191
    %p194 = scmp.ne.s32.totalorder %s177, %s193
    %p195 = scmp.eq.s32.totalorder %s31, 0
    %p196 = por %p194, %p195
    %s197 = ssub.s32 %s32, %s44
    %p198 = scmp.eq.s32.totalorder %s197, 0
    %s200 = sadd.s32 %s199, 1
    %s201 = scalar_select %p198, %s199, %s200
    %p204 = pneg %p198
    %p205 = scmp.eq.s32.totalorder %s25, 1
    %p206 = por %p204, %p205
    %p207 = scmp.ne.s32.totalorder %s199, %s202
    %p208 = scmp.eq.s32.totalorder %s25, 0
    %p209 = por %p207, %p208
    %p210 = scmp.ne.s32.totalorder %s199, %s202
    %p211 = scmp.eq.s32.totalorder %s30, 1
    %p212 = por %p210, %p211
    %p213 = scmp.ne.s32.totalorder %s202, %s203
    %p214 = scmp.eq.s32.totalorder %s30, 0
    %p215 = por %p213, %p214
    %p216 = scmp.ne.s32.totalorder %s202, %s203
    %p217 = scmp.eq.s32.totalorder %s31, 1
    %p218 = por %p216, %p217
    %p220 = scmp.ne.s32.totalorder %s203, %s219
    %p221 = scmp.eq.s32.totalorder %s31, 0
    %p222 = por %p220, %p221
    %p223 = scmp.le.s32.totalorder 1, %s25
    %p224 = scmp.lt.s32.totalorder %s25, 3
    %p225 = pnand %p223, %p224
    %p226 = pneg %p225
    // Predicated region
    $region9: #{run.4} parent=5 // pred_check
      _
    $region10: #{run.4} parent=5 // pred_check_branch
      %228 = sbr.rel (%p225) target = $region12
    $region11: #{run.4} parent=5 // pred_region
      %s229 = ssub.s32 %s25, 1
    $region12: #{run.4} parent=5 // pred_fallthru
      _
    %p230 = scmp.lt.s32.totalorder %s25, 2
    // Predicated region
    $region13: #{run.4} parent=5 // pred_check
      %p231 = pneg %p230
    $region14: #{run.4} parent=5 // pred_check_branch
      %233 = sbr.rel (%p231) target = $region16
    $region15: #{run.4} parent=5 // pred_region
      // Predicated region
      $region17: #{run.4} parent=15 // pred_check
        %p234 = pneg %p57
      $region18: #{run.4} parent=15 // pred_check_branch
        %236 = sbr.rel (%p234) target = $region20
      $region19: #{run.4} parent=15 // pred_region
        %p237 = scmp.lt.s32.totalorder %s32, 1
        %s238 = scalar_select %p237, %s32, 1
        %s239 = smul.addr %s238, 8
        %s240 = scalar_lea.vmem %s2, %s239
      $region20: #{run.4} parent=15 // pred_fallthru
        _
      // Predicated region
      $region21: #{run.4} parent=15 // pred_check
        %p241 = pneg %p107
      $region22: #{run.4} parent=15 // pred_check_branch
        %243 = sbr.rel (%p241) target = $region24
      $region23: #{run.4} parent=15 // pred_region
        %s244 = sld [smem:[#allocation4 + %s32]]
        %s245 = ssub.s32 %s244, 1
        %p246 = scmp.gt.s32.totalorder %s245, 0
        %s247 = scalar_select %p246, %s245, 0
        %p248 = scmp.lt.s32.totalorder %s33, %s247
        %s249 = scalar_select %p248, %s33, %s247
        %s250 = sld [smem:[#allocation3 + %s32]]
        %s251 = sadd.s32 %s250, %s249
        %p252 = scmp.gt.s32.totalorder %s251, 0
        %s253 = scalar_select %p252, %s251, 0
        %p254 = scmp.lt.s32.totalorder %s253, 0
        %s255 = scalar_select %p254, %s253, 0
        %p256 = scmp.lt.s32.totalorder %s255, 0
        %s257 = scalar_select %p256, %s255, 0
        %s258 = smul.addr %s257, 4
        %s259 = scalar_lea.vmem %s3, %s258
        %s260 = sld [smem:[#allocation4 + %s32]]
        %s261 = ssub.s32 %s260, 1
        %p262 = scmp.gt.s32.totalorder %s261, 0
        %s263 = scalar_select %p262, %s261, 0
        %p264 = scmp.lt.s32.totalorder %s33, %s263
        %s265 = scalar_select %p264, %s33, %s263
        %s266 = sld [smem:[#allocation3 + %s32]]
        %s267 = sadd.s32 %s266, %s265
        %p268 = scmp.gt.s32.totalorder %s267, 0
        %s269 = scalar_select %p268, %s267, 0
        %p270 = scmp.lt.s32.totalorder %s269, 0
        %s271 = scalar_select %p270, %s269, 0
      $region24: #{run.4} parent=15 // pred_fallthru
        _
      // Predicated region
      $region25: #{run.4} parent=15 // pred_check
        %p272 = pneg %p133
      $region26: #{run.4} parent=15 // pred_check_branch
        %274 = sbr.rel (%p272) target = $region28
      $region27: #{run.4} parent=15 // pred_region
        %p275 = scmp.lt.s32.totalorder %s32, 1
        %s276 = scalar_select %p275, %s32, 1
        %s277 = smul.addr %s276, 8
        %s278 = scalar_lea.vmem %s4, %s277
      $region28: #{run.4} parent=15 // pred_fallthru
        _
      // Predicated region
      $region29: #{run.4} parent=15 // pred_check
        %p279 = pneg %p183
      $region30: #{run.4} parent=15 // pred_check_branch
        %281 = sbr.rel (%p279) target = $region32
      $region31: #{run.4} parent=15 // pred_region
        %s282 = sld [smem:[#allocation4 + %s32]]
        %s283 = ssub.s32 %s282, 1
        %p284 = scmp.gt.s32.totalorder %s283, 0
        %s285 = scalar_select %p284, %s283, 0
        %p286 = scmp.lt.s32.totalorder %s33, %s285
        %s287 = scalar_select %p286, %s33, %s285
        %s288 = sld [smem:[#allocation3 + %s32]]
        %s289 = sadd.s32 %s288, %s287
        %p290 = scmp.gt.s32.totalorder %s289, 0
        %s291 = scalar_select %p290, %s289, 0
        %p292 = scmp.lt.s32.totalorder %s291, 0
        %s293 = scalar_select %p292, %s291, 0
        %p294 = scmp.lt.s32.totalorder %s293, 0
        %s295 = scalar_select %p294, %s293, 0
        %s296 = scalar_lea.vmem %s5, %s295
        %s297 = sld [smem:[#allocation4 + %s32]]
        %s298 = ssub.s32 %s297, 1
        %p299 = scmp.gt.s32.totalorder %s298, 0
        %s300 = scalar_select %p299, %s298, 0
        %p301 = scmp.lt.s32.totalorder %s33, %s300
        %s302 = scalar_select %p301, %s33, %s300
        %s303 = sld [smem:[#allocation3 + %s32]]
        %s304 = sadd.s32 %s303, %s302
        %p305 = scmp.gt.s32.totalorder %s304, 0
        %s306 = scalar_select %p305, %s304, 0
        %p307 = scmp.lt.s32.totalorder %s306, 0
        %s308 = scalar_select %p307, %s306, 0
      $region32: #{run.4} parent=15 // pred_fallthru
        _
    $region16: #{run.4} parent=5 // pred_fallthru
      _
    %p309 = scmp.le.s32.totalorder 1, %s25
    %p310 = scmp.lt.s32.totalorder %s25, 3
    %p311 = pnand %p309, %p310
    %p312 = pneg %p311
    // Predicated region
    $region33: #{run.4} parent=5 // pred_check
      _
    $region34: #{run.4} parent=5 // pred_check_branch
      %314 = sbr.rel (%p311) target = $region36
    $region35: #{run.4} parent=5 // pred_region
      %s315 = ssub.s32 %s25, 1
      %p316 = scmp.lt.s32.totalorder %s34, 1
      %s317 = scalar_select %p316, %s34, 1
      %s318 = smul.addr %s317, 8
      %s319 = scalar_lea.vmem %s2, %s318
      %p320 = pneg %p63
      %p321 = pneg %p60
      %s322 = sld [smem:[#allocation4 + %s34]]
      %s323 = ssub.s32 %s322, 1
      %p324 = scmp.gt.s32.totalorder %s323, 0
      %s325 = scalar_select %p324, %s323, 0
      %p326 = scmp.lt.s32.totalorder %s35, %s325
      %s327 = scalar_select %p326, %s35, %s325
      %s328 = sld [smem:[#allocation3 + %s34]]
      %s329 = sadd.s32 %s328, %s327
      %p330 = scmp.gt.s32.totalorder %s329, 0
      %s331 = scalar_select %p330, %s329, 0
      %p332 = scmp.lt.s32.totalorder %s331, 0
      %s333 = scalar_select %p332, %s331, 0
      %p334 = scmp.lt.s32.totalorder %s333, 0
      %s335 = scalar_select %p334, %s333, 0
      %s336 = smul.addr %s335, 4
      %s337 = scalar_lea.vmem %s3, %s336
      %p338 = pneg %p113
      %p339 = pneg %p110
      %p340 = scmp.lt.s32.totalorder %s34, 1
      %s341 = scalar_select %p340, %s34, 1
      %s342 = smul.addr %s341, 8
      %s343 = scalar_lea.vmem %s4, %s342
      %p344 = pneg %p139
      %p345 = pneg %p136
      %s346 = sld [smem:[#allocation4 + %s34]]
      %s347 = ssub.s32 %s346, 1
      %p348 = scmp.gt.s32.totalorder %s347, 0
      %s349 = scalar_select %p348, %s347, 0
      %p350 = scmp.lt.s32.totalorder %s35, %s349
      %s351 = scalar_select %p350, %s35, %s349
      %s352 = sld [smem:[#allocation3 + %s34]]
      %s353 = sadd.s32 %s352, %s351
      %p354 = scmp.gt.s32.totalorder %s353, 0
      %s355 = scalar_select %p354, %s353, 0
      %p356 = scmp.lt.s32.totalorder %s355, 0
      %s357 = scalar_select %p356, %s355, 0
      %p358 = scmp.lt.s32.totalorder %s357, 0
      %s359 = scalar_select %p358, %s357, 0
      %s360 = scalar_lea.vmem %s5, %s359
      %p361 = pneg %p189
      %p362 = pneg %p186
      %p363 = pneg %p215
      %p364 = pneg %p212
      %p365 = scmp.lt.s32.totalorder %s34, 1
      %s366 = scalar_select %p365, %s34, 1
      %s367 = smul.addr %s366, 8
      %s368 = scalar_lea.vmem %s6, %s367
      %p369 = scmp.lt.s32.totalorder %s34, 1
      %s370 = scalar_select %p369, %s34, 1
      %s371 = smul.addr %s370, 8
      %s372 = scalar_lea.vmem %s2, %s371
      %s373 = sld [smem:[#allocation4 + %s34]]
      %s374 = ssub.s32 %s373, 1
      %p375 = scmp.gt.s32.totalorder %s374, 0
      %s376 = scalar_select %p375, %s374, 0
      %p377 = scmp.lt.s32.totalorder %s35, %s376
      %s378 = scalar_select %p377, %s35, %s376
      %s379 = sld [smem:[#allocation3 + %s34]]
      %s380 = sadd.s32 %s379, %s378
      %p381 = scmp.gt.s32.totalorder %s380, 0
      %s382 = scalar_select %p381, %s380, 0
      %p383 = scmp.lt.s32.totalorder %s382, 0
      %s384 = scalar_select %p383, %s382, 0
      %p385 = scmp.lt.s32.totalorder %s384, 0
      %s386 = scalar_select %p385, %s384, 0
      %s387 = smul.addr %s386, 4
      %s388 = scalar_lea.vmem %s3, %s387
      %s389 = sld [smem:[#allocation4 + %s34]]
      %s390 = ssub.s32 %s389, 1
      %p391 = scmp.gt.s32.totalorder %s390, 0
      %s392 = scalar_select %p391, %s390, 0
      %p393 = scmp.lt.s32.totalorder %s35, %s392
      %s394 = scalar_select %p393, %s35, %s392
      %s395 = sld [smem:[#allocation3 + %s34]]
      %s396 = sadd.s32 %s395, %s394
      %p397 = scmp.gt.s32.totalorder %s396, 0
      %s398 = scalar_select %p397, %s396, 0
      %p399 = scmp.lt.s32.totalorder %s398, 0
      %s400 = scalar_select %p399, %s398, 0
      %p401 = scmp.lt.s32.totalorder %s34, 1
      %s402 = scalar_select %p401, %s34, 1
      %s403 = smul.addr %s402, 8
      %s404 = scalar_lea.vmem %s4, %s403
      %s405 = sld [smem:[#allocation4 + %s34]]
      %s406 = ssub.s32 %s405, 1
      %p407 = scmp.gt.s32.totalorder %s406, 0
      %s408 = scalar_select %p407, %s406, 0
      %p409 = scmp.lt.s32.totalorder %s35, %s408
      %s410 = scalar_select %p409, %s35, %s408
      %s411 = sld [smem:[#allocation3 + %s34]]
      %s412 = sadd.s32 %s411, %s410
      %p413 = scmp.gt.s32.totalorder %s412, 0
      %s414 = scalar_select %p413, %s412, 0
      %p415 = scmp.lt.s32.totalorder %s414, 0
      %s416 = scalar_select %p415, %s414, 0
      %p417 = scmp.lt.s32.totalorder %s416, 0
      %s418 = scalar_select %p417, %s416, 0
      %s419 = scalar_lea.vmem %s5, %s418
      %s420 = sld [smem:[#allocation4 + %s34]]
      %s421 = ssub.s32 %s420, 1
      %p422 = scmp.gt.s32.totalorder %s421, 0
      %s423 = scalar_select %p422, %s421, 0
      %p424 = scmp.lt.s32.totalorder %s35, %s423
      %s425 = scalar_select %p424, %s35, %s423
      %s426 = sld [smem:[#allocation3 + %s34]]
      %s427 = sadd.s32 %s426, %s425
      %p428 = scmp.gt.s32.totalorder %s427, 0
      %s429 = scalar_select %p428, %s427, 0
      %p430 = scmp.lt.s32.totalorder %s429, 0
      %s431 = scalar_select %p430, %s429, 0
      %p432 = scmp.lt.s32.totalorder %s34, 1
      %s433 = scalar_select %p432, %s34, 1
      %s434 = smul.addr %s433, 8
      %s435 = scalar_lea.vmem %s6, %s434
      %p436 = scmp.eq.s32.totalorder %s35, 0
      // Predicated region
      $region37: #{run.4} parent=35 // pred_check
        %p437 = pneg %p436
      $region38: #{run.4} parent=35 // pred_check_branch
        %439 = sbr.rel (%p437) target = $region40
      $region39: #{run.4} parent=35 // pred_region
        %440 = vst [vmem:[%s435] sm:$0xff] 0.0
      $region40: #{run.4} parent=35 // pred_fallthru
        _
      %s441 = sld [smem:[#allocation4 + %s34]]
      %p442 = scmp.lt.s32.totalorder %s35, %s441
      // Predicated region
      $region41: #{run.4} parent=35 // pred_check
        %p443 = pneg %p442
      $region42: #{run.4} parent=35 // pred_check_branch
        %445 = sbr.rel (%p443) target = $region44
      $region43: #{run.4} parent=35 // pred_region
        %v446 = vld [vmem:[%s372] sm:$0xff]
        %v447 = vld [vmem:[%s388] sm:$0x7]
        %449 = vset.pattern.permute.xlu0 0
        %450 = vperm.xlu0 %449, %v446
        %v451 = vpop.permute.xlu0 %450
        %v453 = vperm.slane %v447, 0
        %v454 = vsub.f32 %v451, %v453
        %v455 = vmul.f32 %v454, %v454
        %456 = vset.pattern.permute.xlu0 1
        %457 = vperm.xlu0 %456, %v446
        %v458 = vpop.permute.xlu0 %457
        %v460 = vperm.slane %v447, 1
        %v461 = vsub.f32 %v458, %v460
        %v462 = vmul.f32 %v461, %v461
        %v463 = vadd.f32 %v455, %v462
        %464 = vset.pattern.permute.xlu0 2
        %465 = vperm.xlu0 %464, %v446
        %v466 = vpop.permute.xlu0 %465
        %v468 = vperm.slane %v447, 2
        %v469 = vsub.f32 %v466, %v468
        %v470 = vmul.f32 %v469, %v469
        %v471 = vadd.f32 %v463, %v470
        %v472 = vrsqrt.pop %v471
        %v473 = vmul.f32 %v472, %v471
        %v474 = vmul.f32 %v473, %v472
        %v475 = vmul.f32 0.5, %v474
        %v476 = vsub.f32 1.5, %v475
        %v477 = vmul.f32 %v472, %v476
        %v478 = vmul.f32 %v471, %v477
        %vm479 = vcmp.eq.f32.partialorder %v471, inf
        %v480 = vsel %vm479, %v471, %v478
        %vm481 = vcmp.eq.f32.partialorder %v471, 0.0
        %v482 = vand.u32 %v471, 2147483648
        %v483 = vsel %vm481, %v482, %v480
        %s484 = sld [smem:[#allocation3 + %s34]]
        %s485 = sadd.s32 %s484, %s35
        %s486 = smul.u32 %s485, 16
        %s487 = smul.u32 %s34, 8
        %s488 = ssub.s32 %s487, %s486
        %v489 = vlaneseq
        %v490 = vshrl.u32 %v489, 7
        %v491 = vstv %s488
        %v492 = vadd.s32 %v491, %v490
        %v493 = vlaneseq
        %v494 = vand.u32 %v493, 127
        %vm495 = vcmp.ne.s32.totalorder %v494, %v492
        %v496 = vld [vmem:[%s404] sm:$0xff]
        %v497 = vld [vmem:[%s419] sm:$0x1]
        %499 = vset.pattern.permute.xlu0 0
        %500 = vperm.xlu0 %499, %v496
        %v501 = vpop.permute.xlu0 %500
        %v504 = vperm.slane %v497, 0
        %vm506 = vcmp.eq.f32.partialorder %v501, %v504
        %vm507 = vmand %vm506, %vm495
        %vm508 = vcmp.le.f32.partialorder %v471, 100.0
        %vm509 = vmand %vm507, %vm508
        %v510 = vsel %vm509, 1.0, 0.0
        %vm511 = vcmask 130048
        %v512 = vsel %vm511, %v510, 0.0
        %513 = vadd.xlane.f32.xlu0 %v512
        %v514 = vpop.xlane.xlu0 %513
        %v515 = vsel %vm509, %v483, 0.0
        %v516 = vsel %vm511, %v515, 0.0
        %517 = vadd.xlane.f32.xlu0 %v516
        %v518 = vpop.xlane.xlu0 %517
        %v519 = vsel %vm509, %v471, 0.0
        %v520 = vsel %vm511, %v519, 0.0
        %521 = vadd.xlane.f32.xlu0 %v520
        %v522 = vpop.xlane.xlu0 %521
        %v523 = vld [vmem:[%s435] sm:$0xff]
        %vm524 = vcmp.eq.s32.totalorder %v494, 0
        %v525 = vsel %vm524, %v514, 0.0
        %v526 = vadd.f32 %v523, %v525
        %vm527 = vcmp.eq.s32.totalorder %v494, 1
        %v528 = vsel %vm527, %v518, 0.0
        %v529 = vadd.f32 %v526, %v528
        %vm530 = vcmp.eq.s32.totalorder %v494, 2
        %v531 = vsel %vm530, %v522, 0.0
        %v532 = vadd.f32 %v529, %v531
        %533 = vst [vmem:[%s435] sm:$0xff] %v532
      $region44: #{run.4} parent=35 // pred_fallthru
        _
      %p534 = scmp.lt.s32.totalorder %s34, 1
      %s535 = scalar_select %p534, %s34, 1
      %s536 = smul.addr %s535, 8
      %s537 = scalar_lea.vmem %s6, %s536
      // Predicated region
      $region45: #{run.4} parent=35 // pred_check
        %p538 = pneg %p212
      $region46: #{run.4} parent=35 // pred_check_branch
        %540 = sbr.rel (%p538) target = $region48
      $region47: #{run.4} parent=35 // pred_region
        _
      $region48: #{run.4} parent=35 // pred_fallthru
        _
    $region36: #{run.4} parent=5 // pred_fallthru
      _
    %p541 = scmp.le.s32.totalorder 2, %s25
    // Predicated region
    $region49: #{run.4} parent=5 // pred_check
      %p542 = pneg %p541
    $region50: #{run.4} parent=5 // pred_check_branch
      %544 = sbr.rel (%p542) target = $region52
    $region51: #{run.4} parent=5 // pred_region
      %s545 = ssub.s32 %s25, 2
      // Predicated region
      $region53: #{run.4} parent=51 // pred_check
        %p546 = pneg %p218
      $region54: #{run.4} parent=51 // pred_check_branch
        %548 = sbr.rel (%p546) target = $region56
      $region55: #{run.4} parent=51 // pred_region
        %p549 = scmp.lt.s32.totalorder %s36, 1
        %s550 = scalar_select %p549, %s36, 1
        %s551 = smul.addr %s550, 8
        %s552 = scalar_lea.vmem %s6, %s551
      $region56: #{run.4} parent=51 // pred_fallthru
        _
    $region52: #{run.4} parent=5 // pred_fallthru
      _
  $region6: #{run.4} parent=0 // loop_footer
    %s29 = sadd.s32 1, %s25
  $region7: #{run.4} parent=0 // loop_footer_branch
    %24 = sbr.rel target = $region3
  $region8: #{run.4} parent=0 // loop_exit
    _

// kernel: run.5
$region0: #{run.5}
  #allocation0 [shape = 'u32[]', space=smem, size = 0x4, offset = 0x4, fixed_abs, tag = 'smem constant byte address 0x4 - core index']
  #allocation1 [shape = 'u32[72,128]{1,0:T(1,128)}', space=vmem, size = 0x9000, scoped, tag = 'internal scratch']
  #allocation2 [shape = 'f32[4,8,16]{2,1,0:T(8,128)}', space=vmem, size = 0x4000, scoped, tag = 'scratch operand']
  #allocation3 [shape = 'f32[8,128]{1,0:T(8,128)}', space=vmem, size = 0x1000, scoped, tag = 'scratch operand']
  #allocation4 [shape = 's32[1]{0}', space=sflag, size = 0x4, scoped, tag = 'scoped memory for run.5']
  #allocation5 [shape = 'u8[512]{0}', space=smem, size = 0x200, scoped, tag = 'prefetched SMEM operand 0']
  #allocation6 [shape = 'u8[512]{0}', space=smem, size = 0x200, scoped, tag = 'prefetched SMEM operand 1']
  %s0 = inlined_call_operand.vmem [shape: s32[2], index: 0, kind: input, shape index: {}]
  %s1 = inlined_call_operand.vmem [shape: s32[2], index: 1, kind: input, shape index: {}]
  %s2 = inlined_call_operand.vmem [shape: f32[1,8], index: 2, kind: input, shape index: {}]
  %s3 = inlined_call_operand.vmem [shape: f32[1,8], index: 3, kind: input, shape index: {}]
  %s4 = inlined_call_operand.vmem [shape: f32[8,4], index: 4, kind: input, shape index: {}]
  %s5 = inlined_call_operand.vmem [shape: f32[1,4], index: 5, kind: input, shape index: {}]
  %s6 = inlined_call_operand.vmem [shape: f32[16,3], index: 6, kind: input, shape index: {}]
  %s7 = inlined_call_operand.vmem [shape: f32[3,16], index: 7, kind: input, shape index: {}]
  %s8 = inlined_call_operand.vmem [shape: f32[16,1], index: 8, kind: input, shape index: {}]
  %s9 = inlined_call_operand.vmem [shape: f32[1,16], index: 9, kind: input, shape index: {}]
  %s10 = inlined_call_operand.vmem [shape: f32[16,1], index: 10, kind: input, shape index: {}]
  %s11 = inlined_call_operand.vmem [shape: f32[16,1], index: 11, kind: input, shape index: {}]
  %s12 = inlined_call_operand.vmem [shape: bf16[4,16,16], index: 12, kind: input, shape index: {}]
  %s13 = inlined_call_operand.vmem [shape: f32[4,1,16], index: 13, kind: input, shape index: {}]
  %s14 = inlined_call_operand.vmem [shape: f32[4,16,128], index: 14, kind: input, shape index: {}]
  %s15 = inlined_call_operand.vmem [shape: f32[1,128], index: 15, kind: input, shape index: {}]
  %s16 = inlined_call_operand.vmem [shape: f32[16,128], index: 16, kind: output, shape index: {0}]
  %s17 = inlined_call_operand.vmem [shape: f32[16,128], index: 17, kind: output, shape index: {1}]
  %18 = xla_tuple %s16, %s17
  %s19 = sld [smem:[#allocation0]]
  $region125: #{run.5} parent=0
    _
  %s21 = ssub.s32 1, %s19
  %s22 = scalar_select 0, %s21, %s19
  %s24 = sshll.u32 %s0, 4
  %s25 = int_to_ptr.vmem [resolvable:$true] %s24
  %27 = dma.vmem_to_smem %s25, 16, [#allocation5], [#allocation4]
  %s29 = sshll.u32 %s1, 4
  %s30 = int_to_ptr.vmem [resolvable:$true] %s29
  %32 = dma.vmem_to_smem %s30, 16, [#allocation6], [#allocation4]
  %34 = dma.done [#allocation4], 32
  %35 = sfence
  $region1: #{run.5} parent=0
    #allocation7 [shape = 'u8[512]{0}', space=smem, size = 0x200, scoped, tag = 'input window, operand 2, single buffered']
    #allocation8 [shape = 's32[2]{0}', space=sflag, size = 0x8, scoped, tag = 'scoped memory for run.5']
    #allocation9 [shape = 'u8[512]{0}', space=smem, size = 0x200, scoped, tag = 'input window, operand 3, single buffered']
    #allocation10 [shape = 's32[1]{0}', space=sflag, size = 0x4, scoped, tag = 'scoped memory for run.5']
    #allocation11 [shape = 'u8[4096]{0}', space=smem, size = 0x1000, scoped, tag = 'input window, operand 4, single buffered']
    #allocation12 [shape = 'u8[512]{0}', space=smem, size = 0x200, scoped, tag = 'input window, operand 5, single buffered']
    #allocation13 [shape = 's32[1]{0}', space=sflag, size = 0x4, scoped, tag = 'scoped memory for run.5']
    %36 = vsyncpa [#allocation8], 0
    %37 = vsyncpa [#allocation10], 0
    %38 = vsyncpa [#allocation13], 0
    loop: start=0, step=1, limit=4
    $region2: #{run.5} parent=1 // loop_pre_header
      _
    $region3: #{run.5} parent=1 // loop_header
      %s40 = sphi 0, %s44
      %p41 = scmp.ge.s32.totalorder %s40, 4
      %s47 = sphi 0, %s59
      %s48 = sphi 0, %s55
      %s49 = sphi 0, %s47
      %s50 = sphi 0, %s48
      %s51 = sphi 0, %s49
      %s52 = sphi 0, %s50
      %s60 = sphi 0, %s60
      %s62 = sphi 0, %s60
      %s63 = sphi 0, %s62
      %s77 = sphi 0, %s63
      %s81 = sphi 0, %s81
      %s83 = sphi 0, %s81
      %s84 = sphi 0, %s83
      %s98 = sphi 0, %s84
      %s102 = sphi 0, %s102
      %s104 = sphi 0, %s102
      %s105 = sphi 0, %s104
      %s119 = sphi 0, %s105
      %s123 = sphi 0, %s123
      %s125 = sphi 0, %s123
      %s126 = sphi 0, %s125
      %s140 = sphi 0, %s126
      %s146 = sphi 0, %s148
      %s149 = sphi 0, %s146
      %s150 = sphi 0, %s149
      %s166 = sphi 0, %s150
      %s196 = sphi 0, %s198
      %s199 = sphi 0, %s196
      %s200 = sphi 0, %s199
      %s216 = sphi 0, %s200
      %s222 = sphi 0, %s224
      %s225 = sphi 0, %s222
      %s226 = sphi 0, %s225
      %s242 = sphi 0, %s226
      %s272 = sphi 0, %s274
      %s275 = sphi 0, %s272
      %s276 = sphi 0, %s275
      %s292 = sphi 0, %s276
      %s298 = sphi 0, %s300
      %s301 = sphi 0, %s298
      %s302 = sphi 0, %s301
      %s318 = sphi 0, %s302
      %s324 = sphi 0, %s326
      %s327 = sphi 0, %s324
      %s328 = sphi 0, %s327
      %s344 = sphi 0, %s328
      %s374 = sphi 0, %s376
      %s377 = sphi 0, %s374
      %s378 = sphi 0, %s377
      %s394 = sphi 0, %s378
      %s398 = sphi 0, %s398
      %s400 = sphi 0, %s398
      %s401 = sphi 0, %s400
      %s415 = sphi 0, %s401
      %s419 = sphi 0, %s419
      %s421 = sphi 0, %s419
      %s422 = sphi 0, %s421
      %s436 = sphi 0, %s422
      %s440 = sphi 0, %s440
      %s442 = sphi 0, %s440
      %s443 = sphi 0, %s442
      %s457 = sphi 0, %s443
      %s463 = sphi 0, %s465
      %s466 = sphi 0, %s463
      %s467 = sphi 0, %s466
      %s483 = sphi 0, %s467
      %s489 = sphi 0, %s491
      %s492 = sphi 0, %s489
      %s493 = sphi 0, %s492
      %s509 = sphi 0, %s493
    $region4: #{run.5} parent=1 // loop_header_branch
      %43 = sbr.rel (%p41) target = $region8
    $region5: #{run.5} parent=1 // loop_body
      %s45 = ssub.s32 %s40, 1
      %s46 = ssub.s32 %s40, 2
      %s53 = sadd.s32 1, %s48
      %p54 = scmp.ge.s32.totalorder %s53, 1
      %s55 = scalar_select %p54, 0, %s53
      %s56 = sadd.s32 1, %s47
      %s57 = scalar_select %p54, %s56, %s47
      %p58 = scmp.ge.s32.totalorder %s57, 2
      %s59 = scalar_select %p58, 0, %s57
      %s61 = sadd.s32 %s60, 1
      %p64 = scmp.eq.s32.totalorder %s40, 1
      %p65 = scmp.ne.s32.totalorder %s60, %s62
      %p66 = scmp.eq.s32.totalorder %s40, 0
      %p67 = por %p65, %p66
      %p68 = scmp.ne.s32.totalorder %s60, %s62
      %p69 = scmp.eq.s32.totalorder %s45, 1
      %p70 = por %p68, %p69
      %p71 = scmp.ne.s32.totalorder %s62, %s63
      %p72 = scmp.eq.s32.totalorder %s45, 0
      %p73 = por %p71, %p72
      %p74 = scmp.ne.s32.totalorder %s62, %s63
      %p75 = scmp.eq.s32.totalorder %s46, 1
      %p76 = por %p74, %p75
      %p78 = scmp.ne.s32.totalorder %s63, %s77
      %p79 = scmp.eq.s32.totalorder %s46, 0
      %p80 = por %p78, %p79
      %s82 = sadd.s32 %s81, 1
      %p85 = scmp.eq.s32.totalorder %s40, 1
      %p86 = scmp.ne.s32.totalorder %s81, %s83
      %p87 = scmp.eq.s32.totalorder %s40, 0
      %p88 = por %p86, %p87
      %p89 = scmp.ne.s32.totalorder %s81, %s83
      %p90 = scmp.eq.s32.totalorder %s45, 1
      %p91 = por %p89, %p90
      %p92 = scmp.ne.s32.totalorder %s83, %s84
      %p93 = scmp.eq.s32.totalorder %s45, 0
      %p94 = por %p92, %p93
      %p95 = scmp.ne.s32.totalorder %s83, %s84
      %p96 = scmp.eq.s32.totalorder %s46, 1
      %p97 = por %p95, %p96
      %p99 = scmp.ne.s32.totalorder %s84, %s98
      %p100 = scmp.eq.s32.totalorder %s46, 0
      %p101 = por %p99, %p100
      %s103 = sadd.s32 %s102, 1
      %p106 = scmp.eq.s32.totalorder %s40, 1
      %p107 = scmp.ne.s32.totalorder %s102, %s104
      %p108 = scmp.eq.s32.totalorder %s40, 0
      %p109 = por %p107, %p108
      %p110 = scmp.ne.s32.totalorder %s102, %s104
      %p111 = scmp.eq.s32.totalorder %s45, 1
      %p112 = por %p110, %p111
      %p113 = scmp.ne.s32.totalorder %s104, %s105
      %p114 = scmp.eq.s32.totalorder %s45, 0
      %p115 = por %p113, %p114
      %p116 = scmp.ne.s32.totalorder %s104, %s105
      %p117 = scmp.eq.s32.totalorder %s46, 1
      %p118 = por %p116, %p117
      %p120 = scmp.ne.s32.totalorder %s105, %s119
      %p121 = scmp.eq.s32.totalorder %s46, 0
      %p122 = por %p120, %p121
      %s124 = sadd.s32 %s123, 1
      %p127 = scmp.eq.s32.totalorder %s40, 1
      %p128 = scmp.ne.s32.totalorder %s123, %s125
      %p129 = scmp.eq.s32.totalorder %s40, 0
      %p130 = por %p128, %p129
      %p131 = scmp.ne.s32.totalorder %s123, %s125
      %p132 = scmp.eq.s32.totalorder %s45, 1
      %p133 = por %p131, %p132
      %p134 = scmp.ne.s32.totalorder %s125, %s126
      %p135 = scmp.eq.s32.totalorder %s45, 0
      %p136 = por %p134, %p135
      %p137 = scmp.ne.s32.totalorder %s125, %s126
      %p138 = scmp.eq.s32.totalorder %s46, 1
      %p139 = por %p137, %p138
      %p141 = scmp.ne.s32.totalorder %s126, %s140
      %p142 = scmp.eq.s32.totalorder %s46, 0
      %p143 = por %p141, %p142
      %s144 = ssub.s32 %s47, %s59
      %p145 = scmp.eq.s32.totalorder %s144, 0
      %s147 = sadd.s32 %s146, 1
      %s148 = scalar_select %p145, %s146, %s147
      %p151 = pneg %p145
      %p152 = scmp.eq.s32.totalorder %s40, 1
      %p153 = por %p151, %p152
      %p154 = scmp.ne.s32.totalorder %s146, %s149
      %p155 = scmp.eq.s32.totalorder %s40, 0
      %p156 = por %p154, %p155
      %p157 = scmp.ne.s32.totalorder %s146, %s149
      %p158 = scmp.eq.s32.totalorder %s45, 1
      %p159 = por %p157, %p158
      %p160 = scmp.ne.s32.totalorder %s149, %s150
      %p161 = scmp.eq.s32.totalorder %s45, 0
      %p162 = por %p160, %p161
      %p163 = scmp.ne.s32.totalorder %s149, %s150
      %p164 = scmp.eq.s32.totalorder %s46, 1
      %p165 = por %p163, %p164
      %p167 = scmp.ne.s32.totalorder %s150, %s166
      %p168 = scmp.eq.s32.totalorder %s46, 0
      %p169 = por %p167, %p168
      %s170 = sld [smem:[#allocation6 + %s47]]
      %s171 = ssub.s32 %s170, 1
      %p172 = scmp.gt.s32.totalorder %s171, 0
      %s173 = scalar_select %p172, %s171, 0
      %p174 = scmp.lt.s32.totalorder %s48, %s173
      %s175 = scalar_select %p174, %s48, %s173
      %s176 = sld [smem:[#allocation5 + %s47]]
      %s177 = sadd.s32 %s176, %s175
      %p178 = scmp.gt.s32.totalorder %s177, 0
      %s179 = scalar_select %p178, %s177, 0
      %p180 = scmp.lt.s32.totalorder %s179, 0
      %s181 = scalar_select %p180, %s179, 0
      %s182 = sld [smem:[#allocation6 + %s59]]
      %s183 = ssub.s32 %s182, 1
      %p184 = scmp.gt.s32.totalorder %s183, 0
      %s185 = scalar_select %p184, %s183, 0
      %p186 = scmp.lt.s32.totalorder %s55, %s185
      %s187 = scalar_select %p186, %s55, %s185
      %s188 = sld [smem:[#allocation5 + %s59]]
      %s189 = sadd.s32 %s188, %s187
      %p190 = scmp.gt.s32.totalorder %s189, 0
      %s191 = scalar_select %p190, %s189, 0
      %p192 = scmp.lt.s32.totalorder %s191, 0
      %s193 = scalar_select %p192, %s191, 0
      %s194 = ssub.s32 %s181, %s193
      %p195 = scmp.eq.s32.totalorder %s194, 0
      %s197 = sadd.s32 %s196, 1
      %s198 = scalar_select %p195, %s196, %s197
      %p201 = pneg %p195
      %p202 = scmp.eq.s32.totalorder %s40, 1
      %p203 = por %p201, %p202
      %p204 = scmp.ne.s32.totalorder %s196, %s199
      %p205 = scmp.eq.s32.totalorder %s40, 0
      %p206 = por %p204, %p205
      %p207 = scmp.ne.s32.totalorder %s196, %s199
      %p208 = scmp.eq.s32.totalorder %s45, 1
      %p209 = por %p207, %p208
      %p210 = scmp.ne.s32.totalorder %s199, %s200
      %p211 = scmp.eq.s32.totalorder %s45, 0
      %p212 = por %p210, %p211
      %p213 = scmp.ne.s32.totalorder %s199, %s200
      %p214 = scmp.eq.s32.totalorder %s46, 1
      %p215 = por %p213, %p214
      %p217 = scmp.ne.s32.totalorder %s200, %s216
      %p218 = scmp.eq.s32.totalorder %s46, 0
      %p219 = por %p217, %p218
      %s220 = ssub.s32 %s47, %s59
      %p221 = scmp.eq.s32.totalorder %s220, 0
      %s223 = sadd.s32 %s222, 1
      %s224 = scalar_select %p221, %s222, %s223
      %p227 = pneg %p221
      %p228 = scmp.eq.s32.totalorder %s40, 1
      %p229 = por %p227, %p228
      %p230 = scmp.ne.s32.totalorder %s222, %s225
      %p231 = scmp.eq.s32.totalorder %s40, 0
      %p232 = por %p230, %p231
      %p233 = scmp.ne.s32.totalorder %s222, %s225
      %p234 = scmp.eq.s32.totalorder %s45, 1
      %p235 = por %p233, %p234
      %p236 = scmp.ne.s32.totalorder %s225, %s226
      %p237 = scmp.eq.s32.totalorder %s45, 0
      %p238 = por %p236, %p237
      %p239 = scmp.ne.s32.totalorder %s225, %s226
      %p240 = scmp.eq.s32.totalorder %s46, 1
      %p241 = por %p239, %p240
      %p243 = scmp.ne.s32.totalorder %s226, %s242
      %p244 = scmp.eq.s32.totalorder %s46, 0
      %p245 = por %p243, %p244
      %s246 = sld [smem:[#allocation6 + %s47]]
      %s247 = ssub.s32 %s246, 1
      %p248 = scmp.gt.s32.totalorder %s247, 0
      %s249 = scalar_select %p248, %s247, 0
      %p250 = scmp.lt.s32.totalorder %s48, %s249
      %s251 = scalar_select %p250, %s48, %s249
      %s252 = sld [smem:[#allocation5 + %s47]]
      %s253 = sadd.s32 %s252, %s251
      %p254 = scmp.gt.s32.totalorder %s253, 0
      %s255 = scalar_select %p254, %s253, 0
      %p256 = scmp.lt.s32.totalorder %s255, 0
      %s257 = scalar_select %p256, %s255, 0
      %s258 = sld [smem:[#allocation6 + %s59]]
      %s259 = ssub.s32 %s258, 1
      %p260 = scmp.gt.s32.totalorder %s259, 0
      %s261 = scalar_select %p260, %s259, 0
      %p262 = scmp.lt.s32.totalorder %s55, %s261
      %s263 = scalar_select %p262, %s55, %s261
      %s264 = sld [smem:[#allocation5 + %s59]]
      %s265 = sadd.s32 %s264, %s263
      %p266 = scmp.gt.s32.totalorder %s265, 0
      %s267 = scalar_select %p266, %s265, 0
      %p268 = scmp.lt.s32.totalorder %s267, 0
      %s269 = scalar_select %p268, %s267, 0
      %s270 = ssub.s32 %s257, %s269
      %p271 = scmp.eq.s32.totalorder %s270, 0
      %s273 = sadd.s32 %s272, 1
      %s274 = scalar_select %p271, %s272, %s273
      %p277 = pneg %p271
      %p278 = scmp.eq.s32.totalorder %s40, 1
      %p279 = por %p277, %p278
      %p280 = scmp.ne.s32.totalorder %s272, %s275
      %p281 = scmp.eq.s32.totalorder %s40, 0
      %p282 = por %p280, %p281
      %p283 = scmp.ne.s32.totalorder %s272, %s275
      %p284 = scmp.eq.s32.totalorder %s45, 1
      %p285 = por %p283, %p284
      %p286 = scmp.ne.s32.totalorder %s275, %s276
      %p287 = scmp.eq.s32.totalorder %s45, 0
      %p288 = por %p286, %p287
      %p289 = scmp.ne.s32.totalorder %s275, %s276
      %p290 = scmp.eq.s32.totalorder %s46, 1
      %p291 = por %p289, %p290
      %p293 = scmp.ne.s32.totalorder %s276, %s292
      %p294 = scmp.eq.s32.totalorder %s46, 0
      %p295 = por %p293, %p294
      %s296 = ssub.s32 %s47, %s59
      %p297 = scmp.eq.s32.totalorder %s296, 0
      %s299 = sadd.s32 %s298, 1
      %s300 = scalar_select %p297, %s298, %s299
      %p303 = pneg %p297
      %p304 = scmp.eq.s32.totalorder %s40, 1
      %p305 = por %p303, %p304
      %p306 = scmp.ne.s32.totalorder %s298, %s301
      %p307 = scmp.eq.s32.totalorder %s40, 0
      %p308 = por %p306, %p307
      %p309 = scmp.ne.s32.totalorder %s298, %s301
      %p310 = scmp.eq.s32.totalorder %s45, 1
      %p311 = por %p309, %p310
      %p312 = scmp.ne.s32.totalorder %s301, %s302
      %p313 = scmp.eq.s32.totalorder %s45, 0
      %p314 = por %p312, %p313
      %p315 = scmp.ne.s32.totalorder %s301, %s302
      %p316 = scmp.eq.s32.totalorder %s46, 1
      %p317 = por %p315, %p316
      %p319 = scmp.ne.s32.totalorder %s302, %s318
      %p320 = scmp.eq.s32.totalorder %s46, 0
      %p321 = por %p319, %p320
      %s322 = ssub.s32 %s47, %s59
      %p323 = scmp.eq.s32.totalorder %s322, 0
      %s325 = sadd.s32 %s324, 1
      %s326 = scalar_select %p323, %s324, %s325
      %p329 = pneg %p323
      %p330 = scmp.eq.s32.totalorder %s40, 1
      %p331 = por %p329, %p330
      %p332 = scmp.ne.s32.totalorder %s324, %s327
      %p333 = scmp.eq.s32.totalorder %s40, 0
      %p334 = por %p332, %p333
      %p335 = scmp.ne.s32.totalorder %s324, %s327
      %p336 = scmp.eq.s32.totalorder %s45, 1
      %p337 = por %p335, %p336
      %p338 = scmp.ne.s32.totalorder %s327, %s328
      %p339 = scmp.eq.s32.totalorder %s45, 0
      %p340 = por %p338, %p339
      %p341 = scmp.ne.s32.totalorder %s327, %s328
      %p342 = scmp.eq.s32.totalorder %s46, 1
      %p343 = por %p341, %p342
      %p345 = scmp.ne.s32.totalorder %s328, %s344
      %p346 = scmp.eq.s32.totalorder %s46, 0
      %p347 = por %p345, %p346
      %s348 = sld [smem:[#allocation6 + %s47]]
      %s349 = ssub.s32 %s348, 1
      %p350 = scmp.gt.s32.totalorder %s349, 0
      %s351 = scalar_select %p350, %s349, 0
      %p352 = scmp.lt.s32.totalorder %s48, %s351
      %s353 = scalar_select %p352, %s48, %s351
      %s354 = sld [smem:[#allocation5 + %s47]]
      %s355 = sadd.s32 %s354, %s353
      %p356 = scmp.gt.s32.totalorder %s355, 0
      %s357 = scalar_select %p356, %s355, 0
      %p358 = scmp.lt.s32.totalorder %s357, 0
      %s359 = scalar_select %p358, %s357, 0
      %s360 = sld [smem:[#allocation6 + %s59]]
      %s361 = ssub.s32 %s360, 1
      %p362 = scmp.gt.s32.totalorder %s361, 0
      %s363 = scalar_select %p362, %s361, 0
      %p364 = scmp.lt.s32.totalorder %s55, %s363
      %s365 = scalar_select %p364, %s55, %s363
      %s366 = sld [smem:[#allocation5 + %s59]]
      %s367 = sadd.s32 %s366, %s365
      %p368 = scmp.gt.s32.totalorder %s367, 0
      %s369 = scalar_select %p368, %s367, 0
      %p370 = scmp.lt.s32.totalorder %s369, 0
      %s371 = scalar_select %p370, %s369, 0
      %s372 = ssub.s32 %s359, %s371
      %p373 = scmp.eq.s32.totalorder %s372, 0
      %s375 = sadd.s32 %s374, 1
      %s376 = scalar_select %p373, %s374, %s375
      %p379 = pneg %p373
      %p380 = scmp.eq.s32.totalorder %s40, 1
      %p381 = por %p379, %p380
      %p382 = scmp.ne.s32.totalorder %s374, %s377
      %p383 = scmp.eq.s32.totalorder %s40, 0
      %p384 = por %p382, %p383
      %p385 = scmp.ne.s32.totalorder %s374, %s377
      %p386 = scmp.eq.s32.totalorder %s45, 1
      %p387 = por %p385, %p386
      %p388 = scmp.ne.s32.totalorder %s377, %s378
      %p389 = scmp.eq.s32.totalorder %s45, 0
      %p390 = por %p388, %p389
      %p391 = scmp.ne.s32.totalorder %s377, %s378
      %p392 = scmp.eq.s32.totalorder %s46, 1
      %p393 = por %p391, %p392
      %p395 = scmp.ne.s32.totalorder %s378, %s394
      %p396 = scmp.eq.s32.totalorder %s46, 0
      %p397 = por %p395, %p396
      %s399 = sadd.s32 %s398, 1
      %p402 = scmp.eq.s32.totalorder %s40, 1
      %p403 = scmp.ne.s32.totalorder %s398, %s400
      %p404 = scmp.eq.s32.totalorder %s40, 0
      %p405 = por %p403, %p404
      %p406 = scmp.ne.s32.totalorder %s398, %s400
      %p407 = scmp.eq.s32.totalorder %s45, 1
      %p408 = por %p406, %p407
      %p409 = scmp.ne.s32.totalorder %s400, %s401
      %p410 = scmp.eq.s32.totalorder %s45, 0
      %p411 = por %p409, %p410
      %p412 = scmp.ne.s32.totalorder %s400, %s401
      %p413 = scmp.eq.s32.totalorder %s46, 1
      %p414 = por %p412, %p413
      %p416 = scmp.ne.s32.totalorder %s401, %s415
      %p417 = scmp.eq.s32.totalorder %s46, 0
      %p418 = por %p416, %p417
      %s420 = sadd.s32 %s419, 1
      %p423 = scmp.eq.s32.totalorder %s40, 1
      %p424 = scmp.ne.s32.totalorder %s419, %s421
      %p425 = scmp.eq.s32.totalorder %s40, 0
      %p426 = por %p424, %p425
      %p427 = scmp.ne.s32.totalorder %s419, %s421
      %p428 = scmp.eq.s32.totalorder %s45, 1
      %p429 = por %p427, %p428
      %p430 = scmp.ne.s32.totalorder %s421, %s422
      %p431 = scmp.eq.s32.totalorder %s45, 0
      %p432 = por %p430, %p431
      %p433 = scmp.ne.s32.totalorder %s421, %s422
      %p434 = scmp.eq.s32.totalorder %s46, 1
      %p435 = por %p433, %p434
      %p437 = scmp.ne.s32.totalorder %s422, %s436
      %p438 = scmp.eq.s32.totalorder %s46, 0
      %p439 = por %p437, %p438
      %s441 = sadd.s32 %s440, 1
      %p444 = scmp.eq.s32.totalorder %s40, 1
      %p445 = scmp.ne.s32.totalorder %s440, %s442
      %p446 = scmp.eq.s32.totalorder %s40, 0
      %p447 = por %p445, %p446
      %p448 = scmp.ne.s32.totalorder %s440, %s442
      %p449 = scmp.eq.s32.totalorder %s45, 1
      %p450 = por %p448, %p449
      %p451 = scmp.ne.s32.totalorder %s442, %s443
      %p452 = scmp.eq.s32.totalorder %s45, 0
      %p453 = por %p451, %p452
      %p454 = scmp.ne.s32.totalorder %s442, %s443
      %p455 = scmp.eq.s32.totalorder %s46, 1
      %p456 = por %p454, %p455
      %p458 = scmp.ne.s32.totalorder %s443, %s457
      %p459 = scmp.eq.s32.totalorder %s46, 0
      %p460 = por %p458, %p459
      %s461 = ssub.s32 %s47, %s59
      %p462 = scmp.eq.s32.totalorder %s461, 0
      %s464 = sadd.s32 %s463, 1
      %s465 = scalar_select %p462, %s463, %s464
      %p468 = pneg %p462
      %p469 = scmp.eq.s32.totalorder %s40, 1
      %p470 = por %p468, %p469
      %p471 = scmp.ne.s32.totalorder %s463, %s466
      %p472 = scmp.eq.s32.totalorder %s40, 0
      %p473 = por %p471, %p472
      %p474 = scmp.ne.s32.totalorder %s463, %s466
      %p475 = scmp.eq.s32.totalorder %s45, 1
      %p476 = por %p474, %p475
      %p477 = scmp.ne.s32.totalorder %s466, %s467
      %p478 = scmp.eq.s32.totalorder %s45, 0
      %p479 = por %p477, %p478
      %p480 = scmp.ne.s32.totalorder %s466, %s467
      %p481 = scmp.eq.s32.totalorder %s46, 1
      %p482 = por %p480, %p481
      %p484 = scmp.ne.s32.totalorder %s467, %s483
      %p485 = scmp.eq.s32.totalorder %s46, 0
      %p486 = por %p484, %p485
      %s487 = ssub.s32 %s47, %s59
      %p488 = scmp.eq.s32.totalorder %s487, 0
      %s490 = sadd.s32 %s489, 1
      %s491 = scalar_select %p488, %s489, %s490
      %p494 = pneg %p488
      %p495 = scmp.eq.s32.totalorder %s40, 1
      %p496 = por %p494, %p495
      %p497 = scmp.ne.s32.totalorder %s489, %s492
      %p498 = scmp.eq.s32.totalorder %s40, 0
      %p499 = por %p497, %p498
      %p500 = scmp.ne.s32.totalorder %s489, %s492
      %p501 = scmp.eq.s32.totalorder %s45, 1
      %p502 = por %p500, %p501
      %p503 = scmp.ne.s32.totalorder %s492, %s493
      %p504 = scmp.eq.s32.totalorder %s45, 0
      %p505 = por %p503, %p504
      %p506 = scmp.ne.s32.totalorder %s492, %s493
      %p507 = scmp.eq.s32.totalorder %s46, 1
      %p508 = por %p506, %p507
      %p510 = scmp.ne.s32.totalorder %s493, %s509
      %p511 = scmp.eq.s32.totalorder %s46, 0
      %p512 = por %p510, %p511
      %p513 = scmp.le.s32.totalorder 1, %s40
      %p514 = scmp.lt.s32.totalorder %s40, 3
      %p515 = pnand %p513, %p514
      %p516 = pneg %p515
      // Predicated region
      $region9: #{run.5} parent=5 // pred_check
        _
      $region10: #{run.5} parent=5 // pred_check_branch
        %518 = sbr.rel (%p515) target = $region12
      $region11: #{run.5} parent=5 // pred_region
        %s519 = ssub.s32 %s40, 1
        // Predicated region
        $region13: #{run.5} parent=11 // pred_check
          %p520 = pneg %p73
        $region14: #{run.5} parent=11 // pred_check_branch
          %522 = sbr.rel (%p520) target = $region16
        $region15: #{run.5} parent=11 // pred_region
          %524 = vsyncadd [#allocation8], 0
          %s526 = sshll.u32 %s2, 4
          %s527 = int_to_ptr.vmem [resolvable:$true] %s526
          %529 = dma.vmem_to_smem %s527, 16, [#allocation7], [#allocation8]
        $region16: #{run.5} parent=11 // pred_fallthru
          _
        // Predicated region
        $region17: #{run.5} parent=11 // pred_check
          %p530 = pneg %p94
        $region18: #{run.5} parent=11 // pred_check_branch
          %532 = sbr.rel (%p530) target = $region20
        $region19: #{run.5} parent=11 // pred_region
          %534 = vsyncadd [#allocation10], 0
          %s536 = sshll.u32 %s3, 4
          %s537 = int_to_ptr.vmem [resolvable:$true] %s536
          %539 = dma.vmem_to_smem %s537, 16, [#allocation9], [#allocation10]
        $region20: #{run.5} parent=11 // pred_fallthru
          _
        // Predicated region
        $region21: #{run.5} parent=11 // pred_check
          %p540 = pneg %p115
        $region22: #{run.5} parent=11 // pred_check_branch
          %542 = sbr.rel (%p540) target = $region24
        $region23: #{run.5} parent=11 // pred_region
          %544 = vsyncadd [#allocation10], 0
          %s546 = sshll.u32 %s4, 4
          %s547 = int_to_ptr.vmem [resolvable:$true] %s546
          %549 = dma.vmem_to_smem %s547, 128, [#allocation11], [#allocation10]
        $region24: #{run.5} parent=11 // pred_fallthru
          _
        // Predicated region
        $region25: #{run.5} parent=11 // pred_check
          %p550 = pneg %p136
        $region26: #{run.5} parent=11 // pred_check_branch
          %552 = sbr.rel (%p550) target = $region28
        $region27: #{run.5} parent=11 // pred_region
          %554 = vsyncadd [#allocation13], 0
          %s556 = sshll.u32 %s5, 4
          %s557 = int_to_ptr.vmem [resolvable:$true] %s556
          %559 = dma.vmem_to_smem %s557, 16, [#allocation12], [#allocation13]
        $region28: #{run.5} parent=11 // pred_fallthru
          _
        // Predicated region
        $region29: #{run.5} parent=11 // pred_check
          %p560 = pneg %p411
        $region30: #{run.5} parent=11 // pred_check_branch
          %562 = sbr.rel (%p560) target = $region32
        $region31: #{run.5} parent=11 // pred_region
          _
        $region32: #{run.5} parent=11 // pred_fallthru
          _
        // Predicated region
        $region33: #{run.5} parent=11 // pred_check
          %p563 = pneg %p432
        $region34: #{run.5} parent=11 // pred_check_branch
          %565 = sbr.rel (%p563) target = $region36
        $region35: #{run.5} parent=11 // pred_region
          _
        $region36: #{run.5} parent=11 // pred_fallthru
          _
        // Predicated region
        $region37: #{run.5} parent=11 // pred_check
          %p566 = pneg %p453
        $region38: #{run.5} parent=11 // pred_check_branch
          %568 = sbr.rel (%p566) target = $region40
        $region39: #{run.5} parent=11 // pred_region
          _
        $region40: #{run.5} parent=11 // pred_fallthru
          _
      $region12: #{run.5} parent=5 // pred_fallthru
        _
      %p569 = scmp.lt.s32.totalorder %s40, 2
      // Predicated region
      $region41: #{run.5} parent=5 // pred_check
        %p570 = pneg %p569
      $region42: #{run.5} parent=5 // pred_check_branch
        %572 = sbr.rel (%p570) target = $region44
      $region43: #{run.5} parent=5 // pred_region
        // Predicated region
        $region45: #{run.5} parent=43 // pred_check
          %p573 = pneg %p156
        $region46: #{run.5} parent=43 // pred_check_branch
          %575 = sbr.rel (%p573) target = $region48
        $region47: #{run.5} parent=43 // pred_region
          %p576 = scmp.lt.s32.totalorder %s47, 1
          %s577 = scalar_select %p576, %s47, 1
          %s578 = smul.addr %s577, 8
          %s579 = scalar_lea.vmem %s6, %s578
        $region48: #{run.5} parent=43 // pred_fallthru
          _
        // Predicated region
        $region49: #{run.5} parent=43 // pred_check
          %p580 = pneg %p206
        $region50: #{run.5} parent=43 // pred_check_branch
          %582 = sbr.rel (%p580) target = $region52
        $region51: #{run.5} parent=43 // pred_region
          %s583 = sld [smem:[#allocation6 + %s47]]
          %s584 = ssub.s32 %s583, 1
          %p585 = scmp.gt.s32.totalorder %s584, 0
          %s586 = scalar_select %p585, %s584, 0
          %p587 = scmp.lt.s32.totalorder %s48, %s586
          %s588 = scalar_select %p587, %s48, %s586
          %s589 = sld [smem:[#allocation5 + %s47]]
          %s590 = sadd.s32 %s589, %s588
          %p591 = scmp.gt.s32.totalorder %s590, 0
          %s592 = scalar_select %p591, %s590, 0
          %p593 = scmp.lt.s32.totalorder %s592, 0
          %s594 = scalar_select %p593, %s592, 0
          %p595 = scmp.lt.s32.totalorder %s594, 0
          %s596 = scalar_select %p595, %s594, 0
          %s597 = smul.addr %s596, 4
          %s598 = scalar_lea.vmem %s7, %s597
          %s599 = sld [smem:[#allocation6 + %s47]]
          %s600 = ssub.s32 %s599, 1
          %p601 = scmp.gt.s32.totalorder %s600, 0
          %s602 = scalar_select %p601, %s600, 0
          %p603 = scmp.lt.s32.totalorder %s48, %s602
          %s604 = scalar_select %p603, %s48, %s602
          %s605 = sld [smem:[#allocation5 + %s47]]
          %s606 = sadd.s32 %s605, %s604
          %p607 = scmp.gt.s32.totalorder %s606, 0
          %s608 = scalar_select %p607, %s606, 0
          %p609 = scmp.lt.s32.totalorder %s608, 0
          %s610 = scalar_select %p609, %s608, 0
        $region52: #{run.5} parent=43 // pred_fallthru
          _
        // Predicated region
        $region53: #{run.5} parent=43 // pred_check
          %p611 = pneg %p232
        $region54: #{run.5} parent=43 // pred_check_branch
          %613 = sbr.rel (%p611) target = $region56
        $region55: #{run.5} parent=43 // pred_region
          %p614 = scmp.lt.s32.totalorder %s47, 1
          %s615 = scalar_select %p614, %s47, 1
          %s616 = smul.addr %s615, 8
          %s617 = scalar_lea.vmem %s8, %s616
        $region56: #{run.5} parent=43 // pred_fallthru
          _
        // Predicated region
        $region57: #{run.5} parent=43 // pred_check
          %p618 = pneg %p282
        $region58: #{run.5} parent=43 // pred_check_branch
          %620 = sbr.rel (%p618) target = $region60
        $region59: #{run.5} parent=43 // pred_region
          %s621 = sld [smem:[#allocation6 + %s47]]
          %s622 = ssub.s32 %s621, 1
          %p623 = scmp.gt.s32.totalorder %s622, 0
          %s624 = scalar_select %p623, %s622, 0
          %p625 = scmp.lt.s32.totalorder %s48, %s624
          %s626 = scalar_select %p625, %s48, %s624
          %s627 = sld [smem:[#allocation5 + %s47]]
          %s628 = sadd.s32 %s627, %s626
          %p629 = scmp.gt.s32.totalorder %s628, 0
          %s630 = scalar_select %p629, %s628, 0
          %p631 = scmp.lt.s32.totalorder %s630, 0
          %s632 = scalar_select %p631, %s630, 0
          %p633 = scmp.lt.s32.totalorder %s632, 0
          %s634 = scalar_select %p633, %s632, 0
          %s635 = scalar_lea.vmem %s9, %s634
          %s636 = sld [smem:[#allocation6 + %s47]]
          %s637 = ssub.s32 %s636, 1
          %p638 = scmp.gt.s32.totalorder %s637, 0
          %s639 = scalar_select %p638, %s637, 0
          %p640 = scmp.lt.s32.totalorder %s48, %s639
          %s641 = scalar_select %p640, %s48, %s639
          %s642 = sld [smem:[#allocation5 + %s47]]
          %s643 = sadd.s32 %s642, %s641
          %p644 = scmp.gt.s32.totalorder %s643, 0
          %s645 = scalar_select %p644, %s643, 0
          %p646 = scmp.lt.s32.totalorder %s645, 0
          %s647 = scalar_select %p646, %s645, 0
        $region60: #{run.5} parent=43 // pred_fallthru
          _
        // Predicated region
        $region61: #{run.5} parent=43 // pred_check
          %p648 = pneg %p308
        $region62: #{run.5} parent=43 // pred_check_branch
          %650 = sbr.rel (%p648) target = $region64
        $region63: #{run.5} parent=43 // pred_region
          %p651 = scmp.lt.s32.totalorder %s47, 1
          %s652 = scalar_select %p651, %s47, 1
          %s653 = smul.addr %s652, 8
          %s654 = scalar_lea.vmem %s10, %s653
        $region64: #{run.5} parent=43 // pred_fallthru
          _
        // Predicated region
        $region65: #{run.5} parent=43 // pred_check
          %p655 = pneg %p334
        $region66: #{run.5} parent=43 // pred_check_branch
          %657 = sbr.rel (%p655) target = $region68
        $region67: #{run.5} parent=43 // pred_region
          %p658 = scmp.lt.s32.totalorder %s47, 1
          %s659 = scalar_select %p658, %s47, 1
          %s660 = smul.addr %s659, 8
          %s661 = scalar_lea.vmem %s11, %s660
        $region68: #{run.5} parent=43 // pred_fallthru
          _
        // Predicated region
        $region69: #{run.5} parent=43 // pred_check
          %p662 = pneg %p384
        $region70: #{run.5} parent=43 // pred_check_branch
          %664 = sbr.rel (%p662) target = $region72
        $region71: #{run.5} parent=43 // pred_region
          %s665 = sld [smem:[#allocation6 + %s47]]
          %s666 = ssub.s32 %s665, 1
          %p667 = scmp.gt.s32.totalorder %s666, 0
          %s668 = scalar_select %p667, %s666, 0
          %p669 = scmp.lt.s32.totalorder %s48, %s668
          %s670 = scalar_select %p669, %s48, %s668
          %s671 = sld [smem:[#allocation5 + %s47]]
          %s672 = sadd.s32 %s671, %s670
          %p673 = scmp.gt.s32.totalorder %s672, 0
          %s674 = scalar_select %p673, %s672, 0
          %p675 = scmp.lt.s32.totalorder %s674, 0
          %s676 = scalar_select %p675, %s674, 0
          %s677 = smul.u32 2, %s676
          %p678 = scmp.lt.s32.totalorder %s677, 1
          %s679 = scalar_select %p678, %s677, 1
          %s680 = smul.addr %s679, 4
          %s681 = scalar_lea.vmem %s12, %s680
          %s682 = sld [smem:[#allocation6 + %s47]]
          %s683 = ssub.s32 %s682, 1
          %p684 = scmp.gt.s32.totalorder %s683, 0
          %s685 = scalar_select %p684, %s683, 0
          %p686 = scmp.lt.s32.totalorder %s48, %s685
          %s687 = scalar_select %p686, %s48, %s685
          %s688 = sld [smem:[#allocation5 + %s47]]
          %s689 = sadd.s32 %s688, %s687
          %p690 = scmp.gt.s32.totalorder %s689, 0
          %s691 = scalar_select %p690, %s689, 0
          %p692 = scmp.lt.s32.totalorder %s691, 0
          %s693 = scalar_select %p692, %s691, 0
          %s694 = smul.u32 2, %s693
        $region72: #{run.5} parent=43 // pred_fallthru
          _
      $region44: #{run.5} parent=5 // pred_fallthru
        _
      %p695 = scmp.le.s32.totalorder 1, %s40
      %p696 = scmp.lt.s32.totalorder %s40, 3
      %p697 = pnand %p695, %p696
      %p698 = pneg %p697
      // Predicated region
      $region73: #{run.5} parent=5 // pred_check
        _
      $region74: #{run.5} parent=5 // pred_check_branch
        %700 = sbr.rel (%p697) target = $region76
      $region75: #{run.5} parent=5 // pred_region
        %s701 = ssub.s32 %s40, 1
        // Predicated region
        $region77: #{run.5} parent=75 // pred_check
          %p702 = pneg %p73
        $region78: #{run.5} parent=75 // pred_check_branch
          %704 = sbr.rel (%p702) target = $region80
        $region79: #{run.5} parent=75 // pred_region
          %706 = dma.done [#allocation8], 16
        $region80: #{run.5} parent=75 // pred_fallthru
          _
        // Predicated region
        $region81: #{run.5} parent=75 // pred_check
          %p707 = pneg %p94
        $region82: #{run.5} parent=75 // pred_check_branch
          %709 = sbr.rel (%p707) target = $region84
        $region83: #{run.5} parent=75 // pred_region
          %711 = dma.done [#allocation10], 16
        $region84: #{run.5} parent=75 // pred_fallthru
          _
        // Predicated region
        $region85: #{run.5} parent=75 // pred_check
          %p712 = pneg %p115
        $region86: #{run.5} parent=75 // pred_check_branch
          %714 = sbr.rel (%p712) target = $region88
        $region87: #{run.5} parent=75 // pred_region
          %716 = dma.done [#allocation10], 128
        $region88: #{run.5} parent=75 // pred_fallthru
          _
        // Predicated region
        $region89: #{run.5} parent=75 // pred_check
          %p717 = pneg %p136
        $region90: #{run.5} parent=75 // pred_check_branch
          %719 = sbr.rel (%p717) target = $region92
        $region91: #{run.5} parent=75 // pred_region
          %721 = dma.done [#allocation13], 16
        $region92: #{run.5} parent=75 // pred_fallthru
          _
        %722 = sfence
        %p723 = pneg %p73
        %p724 = pneg %p70
        %p725 = pneg %p94
        %p726 = pneg %p91
        %p727 = pneg %p115
        %p728 = pneg %p112
        %p729 = pneg %p136
        %p730 = pneg %p133
        %p731 = scmp.lt.s32.totalorder %s49, 1
        %s732 = scalar_select %p731, %s49, 1
        %s733 = smul.addr %s732, 8
        %s734 = scalar_lea.vmem %s6, %s733
        %p735 = pneg %p162
        %p736 = pneg %p159
        %s737 = sld [smem:[#allocation6 + %s49]]
        %s738 = ssub.s32 %s737, 1
        %p739 = scmp.gt.s32.totalorder %s738, 0
        %s740 = scalar_select %p739, %s738, 0
        %p741 = scmp.lt.s32.totalorder %s50, %s740
        %s742 = scalar_select %p741, %s50, %s740
        %s743 = sld [smem:[#allocation5 + %s49]]
        %s744 = sadd.s32 %s743, %s742
        %p745 = scmp.gt.s32.totalorder %s744, 0
        %s746 = scalar_select %p745, %s744, 0
        %p747 = scmp.lt.s32.totalorder %s746, 0
        %s748 = scalar_select %p747, %s746, 0
        %p749 = scmp.lt.s32.totalorder %s748, 0
        %s750 = scalar_select %p749, %s748, 0
        %s751 = smul.addr %s750, 4
        %s752 = scalar_lea.vmem %s7, %s751
        %p753 = pneg %p212
        %p754 = pneg %p209
        %p755 = scmp.lt.s32.totalorder %s49, 1
        %s756 = scalar_select %p755, %s49, 1
        %s757 = smul.addr %s756, 8
        %s758 = scalar_lea.vmem %s8, %s757
        %p759 = pneg %p238
        %p760 = pneg %p235
        %s761 = sld [smem:[#allocation6 + %s49]]
        %s762 = ssub.s32 %s761, 1
        %p763 = scmp.gt.s32.totalorder %s762, 0
        %s764 = scalar_select %p763, %s762, 0
        %p765 = scmp.lt.s32.totalorder %s50, %s764
        %s766 = scalar_select %p765, %s50, %s764
        %s767 = sld [smem:[#allocation5 + %s49]]
        %s768 = sadd.s32 %s767, %s766
        %p769 = scmp.gt.s32.totalorder %s768, 0
        %s770 = scalar_select %p769, %s768, 0
        %p771 = scmp.lt.s32.totalorder %s770, 0
        %s772 = scalar_select %p771, %s770, 0
        %p773 = scmp.lt.s32.totalorder %s772, 0
        %s774 = scalar_select %p773, %s772, 0
        %s775 = scalar_lea.vmem %s9, %s774
        %p776 = pneg %p288
        %p777 = pneg %p285
        %p778 = scmp.lt.s32.totalorder %s49, 1
        %s779 = scalar_select %p778, %s49, 1
        %s780 = smul.addr %s779, 8
        %s781 = scalar_lea.vmem %s10, %s780
        %p782 = pneg %p314
        %p783 = pneg %p311
        %p784 = scmp.lt.s32.totalorder %s49, 1
        %s785 = scalar_select %p784, %s49, 1
        %s786 = smul.addr %s785, 8
        %s787 = scalar_lea.vmem %s11, %s786
        %p788 = pneg %p340
        %p789 = pneg %p337
        %s790 = sld [smem:[#allocation6 + %s49]]
        %s791 = ssub.s32 %s790, 1
        %p792 = scmp.gt.s32.totalorder %s791, 0
        %s793 = scalar_select %p792, %s791, 0
        %p794 = scmp.lt.s32.totalorder %s50, %s793
        %s795 = scalar_select %p794, %s50, %s793
        %s796 = sld [smem:[#allocation5 + %s49]]
        %s797 = sadd.s32 %s796, %s795
        %p798 = scmp.gt.s32.totalorder %s797, 0
        %s799 = scalar_select %p798, %s797, 0
        %p800 = scmp.lt.s32.totalorder %s799, 0
        %s801 = scalar_select %p800, %s799, 0
        %s802 = smul.u32 2, %s801
        %p803 = scmp.lt.s32.totalorder %s802, 1
        %s804 = scalar_select %p803, %s802, 1
        %s805 = smul.addr %s804, 4
        %s806 = scalar_lea.vmem %s12, %s805
        %p807 = pneg %p390
        %p808 = pneg %p387
        %p809 = pneg %p411
        %p810 = pneg %p408
        %p811 = pneg %p432
        %p812 = pneg %p429
        %p813 = pneg %p453
        %p814 = pneg %p450
        %p815 = pneg %p479
        %p816 = pneg %p476
        %p817 = scmp.lt.s32.totalorder %s49, 1
        %s818 = scalar_select %p817, %s49, 1
        %s819 = smul.addr %s818, 8
        %s820 = scalar_lea.vmem %s16, %s819
        %p821 = pneg %p505
        %p822 = pneg %p502
        %p823 = scmp.lt.s32.totalorder %s49, 1
        %s824 = scalar_select %p823, %s49, 1
        %s825 = smul.addr %s824, 8
        %s826 = scalar_lea.vmem %s17, %s825
        %p827 = scmp.lt.s32.totalorder %s49, 1
        %s828 = scalar_select %p827, %s49, 1
        %s829 = smul.addr %s828, 8
        %s830 = scalar_lea.vmem %s6, %s829
        %s831 = sld [smem:[#allocation6 + %s49]]
        %s832 = ssub.s32 %s831, 1
        %p833 = scmp.gt.s32.totalorder %s832, 0
        %s834 = scalar_select %p833, %s832, 0
        %p835 = scmp.lt.s32.totalorder %s50, %s834
        %s836 = scalar_select %p835, %s50, %s834
        %s837 = sld [smem:[#allocation5 + %s49]]
        %s838 = sadd.s32 %s837, %s836
        %p839 = scmp.gt.s32.totalorder %s838, 0
        %s840 = scalar_select %p839, %s838, 0
        %p841 = scmp.lt.s32.totalorder %s840, 0
        %s842 = scalar_select %p841, %s840, 0
        %p843 = scmp.lt.s32.totalorder %s842, 0
        %s844 = scalar_select %p843, %s842, 0
        %s845 = smul.addr %s844, 4
        %s846 = scalar_lea.vmem %s7, %s845
        %s847 = sld [smem:[#allocation6 + %s49]]
        %s848 = ssub.s32 %s847, 1
        %p849 = scmp.gt.s32.totalorder %s848, 0
        %s850 = scalar_select %p849, %s848, 0
        %p851 = scmp.lt.s32.totalorder %s50, %s850
        %s852 = scalar_select %p851, %s50, %s850
        %s853 = sld [smem:[#allocation5 + %s49]]
        %s854 = sadd.s32 %s853, %s852
        %p855 = scmp.gt.s32.totalorder %s854, 0
        %s856 = scalar_select %p855, %s854, 0
        %p857 = scmp.lt.s32.totalorder %s856, 0
        %s858 = scalar_select %p857, %s856, 0
        %p859 = scmp.lt.s32.totalorder %s49, 1
        %s860 = scalar_select %p859, %s49, 1
        %s861 = smul.addr %s860, 8
        %s862 = scalar_lea.vmem %s8, %s861
        %s863 = sld [smem:[#allocation6 + %s49]]
        %s864 = ssub.s32 %s863, 1
        %p865 = scmp.gt.s32.totalorder %s864, 0
        %s866 = scalar_select %p865, %s864, 0
        %p867 = scmp.lt.s32.totalorder %s50, %s866
        %s868 = scalar_select %p867, %s50, %s866
        %s869 = sld [smem:[#allocation5 + %s49]]
        %s870 = sadd.s32 %s869, %s868
        %p871 = scmp.gt.s32.totalorder %s870, 0
        %s872 = scalar_select %p871, %s870, 0
        %p873 = scmp.lt.s32.totalorder %s872, 0
        %s874 = scalar_select %p873, %s872, 0
        %p875 = scmp.lt.s32.totalorder %s874, 0
        %s876 = scalar_select %p875, %s874, 0
        %s877 = scalar_lea.vmem %s9, %s876
        %s878 = sld [smem:[#allocation6 + %s49]]
        %s879 = ssub.s32 %s878, 1
        %p880 = scmp.gt.s32.totalorder %s879, 0
        %s881 = scalar_select %p880, %s879, 0
        %p882 = scmp.lt.s32.totalorder %s50, %s881
        %s883 = scalar_select %p882, %s50, %s881
        %s884 = sld [smem:[#allocation5 + %s49]]
        %s885 = sadd.s32 %s884, %s883
        %p886 = scmp.gt.s32.totalorder %s885, 0
        %s887 = scalar_select %p886, %s885, 0
        %p888 = scmp.lt.s32.totalorder %s887, 0
        %s889 = scalar_select %p888, %s887, 0
        %p890 = scmp.lt.s32.totalorder %s49, 1
        %s891 = scalar_select %p890, %s49, 1
        %s892 = smul.addr %s891, 8
        %s893 = scalar_lea.vmem %s10, %s892
        %p894 = scmp.lt.s32.totalorder %s49, 1
        %s895 = scalar_select %p894, %s49, 1
        %s896 = smul.addr %s895, 8
        %s897 = scalar_lea.vmem %s11, %s896
        %s898 = sld [smem:[#allocation6 + %s49]]
        %s899 = ssub.s32 %s898, 1
        %p900 = scmp.gt.s32.totalorder %s899, 0
        %s901 = scalar_select %p900, %s899, 0
        %p902 = scmp.lt.s32.totalorder %s50, %s901
        %s903 = scalar_select %p902, %s50, %s901
        %s904 = sld [smem:[#allocation5 + %s49]]
        %s905 = sadd.s32 %s904, %s903
        %p906 = scmp.gt.s32.totalorder %s905, 0
        %s907 = scalar_select %p906, %s905, 0
        %p908 = scmp.lt.s32.totalorder %s907, 0
        %s909 = scalar_select %p908, %s907, 0
        %s910 = smul.u32 2, %s909
        %p911 = scmp.lt.s32.totalorder %s910, 1
        %s912 = scalar_select %p911, %s910, 1
        %s913 = smul.addr %s912, 4
        %s914 = scalar_lea.vmem %s12, %s913
        %s915 = sld [smem:[#allocation6 + %s49]]
        %s916 = ssub.s32 %s915, 1
        %p917 = scmp.gt.s32.totalorder %s916, 0
        %s918 = scalar_select %p917, %s916, 0
        %p919 = scmp.lt.s32.totalorder %s50, %s918
        %s920 = scalar_select %p919, %s50, %s918
        %s921 = sld [smem:[#allocation5 + %s49]]
        %s922 = sadd.s32 %s921, %s920
        %p923 = scmp.gt.s32.totalorder %s922, 0
        %s924 = scalar_select %p923, %s922, 0
        %p925 = scmp.lt.s32.totalorder %s924, 0
        %s926 = scalar_select %p925, %s924, 0
        %s927 = smul.u32 2, %s926
        %p928 = scmp.lt.s32.totalorder %s49, 1
        %s929 = scalar_select %p928, %s49, 1
        %s930 = smul.addr %s929, 8
        %s931 = scalar_lea.vmem %s16, %s930
        %p932 = scmp.lt.s32.totalorder %s49, 1
        %s933 = scalar_select %p932, %s49, 1
        %s934 = smul.addr %s933, 8
        %s935 = scalar_lea.vmem %s17, %s934
        %p937 = scmp.eq.s32.totalorder %s50, 0
        // Predicated region
        $region93: #{run.5} parent=75 // pred_check
          %p938 = pneg %p937
        $region94: #{run.5} parent=75 // pred_check_branch
          %940 = sbr.rel (%p938) target = $region96
        $region95: #{run.5} parent=75 // pred_region
          %vm941 = vcmask 130048
          %942 = vst.msk [vmem:[#allocation2] sm:$0xff] %vm941, 0.0
          %943 = vst.msk [vmem:[#allocation2 + $0x8] sm:$0xff] %vm941, 0.0
          %944 = vst.msk [vmem:[#allocation2 + $0x10] sm:$0xff] %vm941, 0.0
          %945 = vst.msk [vmem:[#allocation2 + $0x18] sm:$0xff] %vm941, 0.0
          %946 = vst [vmem:[#allocation3] sm:$0xff] 0.0
        $region96: #{run.5} parent=75 // pred_fallthru
          _
        %s947 = sld [smem:[#allocation6 + %s49]]
        %p948 = scmp.lt.s32.totalorder %s50, %s947
        // Predicated region
        $region97: #{run.5} parent=75 // pred_check
          %p949 = pneg %p948
        $region98: #{run.5} parent=75 // pred_check_branch
          %951 = sbr.rel (%p949) target = $region100
        $region99: #{run.5} parent=75 // pred_region
          %v952 = vld [vmem:[%s830] sm:$0xff]
          %v953 = vld [vmem:[%s846] sm:$0x7]
          %955 = vset.pattern.permute.xlu0 0
          %956 = vperm.xlu0 %955, %v952
          %v957 = vpop.permute.xlu0 %956
          %v959 = vperm.slane %v953, 0
          %v960 = vsub.f32 %v957, %v959
          %v961 = vmul.f32 %v960, %v960
          %962 = vset.pattern.permute.xlu0 1
          %963 = vperm.xlu0 %962, %v952
          %v964 = vpop.permute.xlu0 %963
          %v966 = vperm.slane %v953, 1
          %v967 = vsub.f32 %v964, %v966
          %v968 = vmul.f32 %v967, %v967
          %v969 = vadd.f32 %v961, %v968
          %970 = vset.pattern.permute.xlu0 2
          %971 = vperm.xlu0 %970, %v952
          %v972 = vpop.permute.xlu0 %971
          %v974 = vperm.slane %v953, 2
          %v975 = vsub.f32 %v972, %v974
          %v976 = vmul.f32 %v975, %v975
          %v977 = vadd.f32 %v969, %v976
          %v978 = vrsqrt.pop %v977
          %v979 = vmul.f32 %v978, %v977
          %v980 = vmul.f32 %v979, %v978
          %v981 = vmul.f32 0.5, %v980
          %v982 = vsub.f32 1.5, %v981
          %v983 = vmul.f32 %v978, %v982
          %v984 = vmul.f32 %v977, %v983
          %vm985 = vcmp.eq.f32.partialorder %v977, inf
          %v986 = vsel %vm985, %v977, %v984
          %vm987 = vcmp.eq.f32.partialorder %v977, 0.0
          %v988 = vand.u32 %v977, 2147483648
          %v989 = vsel %vm987, %v988, %v986
          %s990 = sld [smem:[#allocation5 + %s49]]
          %s991 = sadd.s32 %s990, %s50
          %s992 = smul.u32 %s991, 16
          %s993 = smul.u32 %s49, 8
          %s994 = ssub.s32 %s993, %s992
          %v995 = vlaneseq
          %v996 = vshrl.u32 %v995, 7
          %v997 = vstv %s994
          %v998 = vadd.s32 %v997, %v996
          %v999 = vlaneseq
          %v1000 = vand.u32 %v999, 127
          %vm1001 = vcmp.ne.s32.totalorder %v1000, %v998
          %v1002 = vld [vmem:[%s862] sm:$0xff]
          %v1003 = vld [vmem:[%s877] sm:$0x1]
          %1005 = vset.pattern.permute.xlu0 0
          %1006 = vperm.xlu0 %1005, %v1002
          %v1007 = vpop.permute.xlu0 %1006
          %v1010 = vperm.slane %v1003, 0
          %vm1012 = vcmp.eq.f32.partialorder %v1007, %v1010
          %vm1013 = vmand %vm1012, %vm1001
          %vm1014 = vcmp.le.f32.partialorder %v977, 100.0
          %vm1015 = vmand %vm1013, %vm1014
          %v1016 = vsub.f32 10.0, %v989
          %v1017 = vmul.f32 %v1016, 0.1
          %v1018 = vsel %vm1015, %v1017, 0.0
          %v1019 = vld [vmem:[%s893] sm:$0xff]
          %1021 = vset.pattern.permute.xlu0 0
          %1022 = vperm.xlu0 %1021, %v1019
          %v1023 = vpop.permute.xlu0 %1022
          %v1025 = vsub.f32 %v989, %v1023
          %v1026 = vld [vmem:[%s897] sm:$0xff]
          %1028 = vset.pattern.permute.xlu0 0
          %1029 = vperm.xlu0 %1028, %v1026
          %v1030 = vpop.permute.xlu0 %1029
          %v1032 = vmul.f32 %v1025, %v1030
          %s1033 = sld [smem:[#allocation7]]
          %v1034 = vstv %s1033
          %v1035 = vmul.f32 %v1032, %v1034
          %s1036 = sld [smem:[#allocation9]]
          %v1037 = vstv %s1036
          %v1038 = vadd.f32 %v1035, %v1037
          %v1039 = vmax.f32 %v1038, 0.0
          %s1040 = sld [smem:[#allocation11]]
          %v1041 = vstv %s1040
          %v1042 = vmul.f32 %v1039, %v1041
          %s1043 = sld [smem:[#allocation11 + $0x1]]
          %v1044 = vstv %s1043
          %v1045 = vmul.f32 %v1039, %v1044
          %s1046 = sld [smem:[#allocation11 + $0x2]]
          %v1047 = vstv %s1046
          %v1048 = vmul.f32 %v1039, %v1047
          %s1049 = sld [smem:[#allocation11 + $0x3]]
          %v1050 = vstv %s1049
          %v1051 = vmul.f32 %v1039, %v1050
          %s1052 = sld [smem:[#allocation7 + $0x1]]
          %v1053 = vstv %s1052
          %v1054 = vmul.f32 %v1032, %v1053
          %s1055 = sld [smem:[#allocation9 + $0x1]]
          %v1056 = vstv %s1055
          %v1057 = vadd.f32 %v1054, %v1056
          %v1058 = vmax.f32 %v1057, 0.0
          %s1059 = sld [smem:[#allocation11 + $0x80]]
          %v1060 = vstv %s1059
          %v1061 = vmul.f32 %v1058, %v1060
          %v1062 = vadd.f32 %v1042, %v1061
          %s1063 = sld [smem:[#allocation11 + $0x81]]
          %v1064 = vstv %s1063
          %v1065 = vmul.f32 %v1058, %v1064
          %v1066 = vadd.f32 %v1045, %v1065
          %s1067 = sld [smem:[#allocation11 + $0x82]]
          %v1068 = vstv %s1067
          %v1069 = vmul.f32 %v1058, %v1068
          %v1070 = vadd.f32 %v1048, %v1069
          %s1071 = sld [smem:[#allocation11 + $0x83]]
          %v1072 = vstv %s1071
          %v1073 = vmul.f32 %v1058, %v1072
          %v1074 = vadd.f32 %v1051, %v1073
          %s1075 = sld [smem:[#allocation7 + $0x2]]
          %v1076 = vstv %s1075
          %v1077 = vmul.f32 %v1032, %v1076
          %s1078 = sld [smem:[#allocation9 + $0x2]]
          %v1079 = vstv %s1078
          %v1080 = vadd.f32 %v1077, %v1079
          %v1081 = vmax.f32 %v1080, 0.0
          %s1082 = sld [smem:[#allocation11 + $0x100]]
          %v1083 = vstv %s1082
          %v1084 = vmul.f32 %v1081, %v1083
          %v1085 = vadd.f32 %v1062, %v1084
          %s1086 = sld [smem:[#allocation11 + $0x101]]
          %v1087 = vstv %s1086
          %v1088 = vmul.f32 %v1081, %v1087
          %v1089 = vadd.f32 %v1066, %v1088
          %s1090 = sld [smem:[#allocation11 + $0x102]]
          %v1091 = vstv %s1090
          %v1092 = vmul.f32 %v1081, %v1091
          %v1093 = vadd.f32 %v1070, %v1092
          %s1094 = sld [smem:[#allocation11 + $0x103]]
          %v1095 = vstv %s1094
          %v1096 = vmul.f32 %v1081, %v1095
          %v1097 = vadd.f32 %v1074, %v1096
          %s1098 = sld [smem:[#allocation7 + $0x3]]
          %v1099 = vstv %s1098
          %v1100 = vmul.f32 %v1032, %v1099
          %s1101 = sld [smem:[#allocation9 + $0x3]]
          %v1102 = vstv %s1101
          %v1103 = vadd.f32 %v1100, %v1102
          %v1104 = vmax.f32 %v1103, 0.0
          %s1105 = sld [smem:[#allocation11 + $0x180]]
          %v1106 = vstv %s1105
          %v1107 = vmul.f32 %v1104, %v1106
          %v1108 = vadd.f32 %v1085, %v1107
          %s1109 = sld [smem:[#allocation11 + $0x181]]
          %v1110 = vstv %s1109
          %v1111 = vmul.f32 %v1104, %v1110
          %v1112 = vadd.f32 %v1089, %v1111
          %s1113 = sld [smem:[#allocation11 + $0x182]]
          %v1114 = vstv %s1113
          %v1115 = vmul.f32 %v1104, %v1114
          %v1116 = vadd.f32 %v1093, %v1115
          %s1117 = sld [smem:[#allocation11 + $0x183]]
          %v1118 = vstv %s1117
          %v1119 = vmul.f32 %v1104, %v1118
          %v1120 = vadd.f32 %v1097, %v1119
          %s1121 = sld [smem:[#allocation7 + $0x4]]
          %v1122 = vstv %s1121
          %v1123 = vmul.f32 %v1032, %v1122
          %s1124 = sld [smem:[#allocation9 + $0x4]]
          %v1125 = vstv %s1124
          %v1126 = vadd.f32 %v1123, %v1125
          %v1127 = vmax.f32 %v1126, 0.0
          %s1128 = sld [smem:[#allocation11 + $0x200]]
          %v1129 = vstv %s1128
          %v1130 = vmul.f32 %v1127, %v1129
          %v1131 = vadd.f32 %v1108, %v1130
          %s1132 = sld [smem:[#allocation11 + $0x201]]
          %v1133 = vstv %s1132
          %v1134 = vmul.f32 %v1127, %v1133
          %v1135 = vadd.f32 %v1112, %v1134
          %s1136 = sld [smem:[#allocation11 + $0x202]]
          %v1137 = vstv %s1136
          %v1138 = vmul.f32 %v1127, %v1137
          %v1139 = vadd.f32 %v1116, %v1138
          %s1140 = sld [smem:[#allocation11 + $0x203]]
          %v1141 = vstv %s1140
          %v1142 = vmul.f32 %v1127, %v1141
          %v1143 = vadd.f32 %v1120, %v1142
          %s1144 = sld [smem:[#allocation7 + $0x5]]
          %v1145 = vstv %s1144
          %v1146 = vmul.f32 %v1032, %v1145
          %s1147 = sld [smem:[#allocation9 + $0x5]]
          %v1148 = vstv %s1147
          %v1149 = vadd.f32 %v1146, %v1148
          %v1150 = vmax.f32 %v1149, 0.0
          %s1151 = sld [smem:[#allocation11 + $0x280]]
          %v1152 = vstv %s1151
          %v1153 = vmul.f32 %v1150, %v1152
          %v1154 = vadd.f32 %v1131, %v1153
          %s1155 = sld [smem:[#allocation11 + $0x281]]
          %v1156 = vstv %s1155
          %v1157 = vmul.f32 %v1150, %v1156
          %v1158 = vadd.f32 %v1135, %v1157
          %s1159 = sld [smem:[#allocation11 + $0x282]]
          %v1160 = vstv %s1159
          %v1161 = vmul.f32 %v1150, %v1160
          %v1162 = vadd.f32 %v1139, %v1161
          %s1163 = sld [smem:[#allocation11 + $0x283]]
          %v1164 = vstv %s1163
          %v1165 = vmul.f32 %v1150, %v1164
          %v1166 = vadd.f32 %v1143, %v1165
          %s1167 = sld [smem:[#allocation7 + $0x6]]
          %v1168 = vstv %s1167
          %v1169 = vmul.f32 %v1032, %v1168
          %s1170 = sld [smem:[#allocation9 + $0x6]]
          %v1171 = vstv %s1170
          %v1172 = vadd.f32 %v1169, %v1171
          %v1173 = vmax.f32 %v1172, 0.0
          %s1174 = sld [smem:[#allocation11 + $0x300]]
          %v1175 = vstv %s1174
          %v1176 = vmul.f32 %v1173, %v1175
          %v1177 = vadd.f32 %v1154, %v1176
          %s1178 = sld [smem:[#allocation11 + $0x301]]
          %v1179 = vstv %s1178
          %v1180 = vmul.f32 %v1173, %v1179
          %v1181 = vadd.f32 %v1158, %v1180
          %s1182 = sld [smem:[#allocation11 + $0x302]]
          %v1183 = vstv %s1182
          %v1184 = vmul.f32 %v1173, %v1183
          %v1185 = vadd.f32 %v1162, %v1184
          %s1186 = sld [smem:[#allocation11 + $0x303]]
          %v1187 = vstv %s1186
          %v1188 = vmul.f32 %v1173, %v1187
          %v1189 = vadd.f32 %v1166, %v1188
          %s1190 = sld [smem:[#allocation7 + $0x7]]
          %v1191 = vstv %s1190
          %v1192 = vmul.f32 %v1032, %v1191
          %s1193 = sld [smem:[#allocation9 + $0x7]]
          %v1194 = vstv %s1193
          %v1195 = vadd.f32 %v1192, %v1194
          %v1196 = vmax.f32 %v1195, 0.0
          %s1197 = sld [smem:[#allocation11 + $0x380]]
          %v1198 = vstv %s1197
          %v1199 = vmul.f32 %v1196, %v1198
          %v1200 = vadd.f32 %v1177, %v1199
          %s1201 = sld [smem:[#allocation11 + $0x381]]
          %v1202 = vstv %s1201
          %v1203 = vmul.f32 %v1196, %v1202
          %v1204 = vadd.f32 %v1181, %v1203
          %s1205 = sld [smem:[#allocation11 + $0x382]]
          %v1206 = vstv %s1205
          %v1207 = vmul.f32 %v1196, %v1206
          %v1208 = vadd.f32 %v1185, %v1207
          %s1209 = sld [smem:[#allocation11 + $0x383]]
          %v1210 = vstv %s1209
          %v1211 = vmul.f32 %v1196, %v1210
          %v1212 = vadd.f32 %v1189, %v1211
          %s1213 = sld [smem:[#allocation12]]
          %v1214 = vstv %s1213
          %v1215 = vadd.f32 %v1200, %v1214
          %s1216 = sld [smem:[#allocation12 + $0x1]]
          %v1217 = vstv %s1216
          %v1218 = vadd.f32 %v1204, %v1217
          %v1219 = vmax.f32 %v1215, %v1218
          %s1220 = sld [smem:[#allocation12 + $0x2]]
          %v1221 = vstv %s1220
          %v1222 = vadd.f32 %v1208, %v1221
          %v1223 = vmax.f32 %v1219, %v1222
          %s1224 = sld [smem:[#allocation12 + $0x3]]
          %v1225 = vstv %s1224
          %v1226 = vadd.f32 %v1212, %v1225
          %v1227 = vmax.f32 %v1223, %v1226
          %v1228 = vsub.f32 %v1215, %v1227
          %v1229 = vmul.f32 %v1228, 1.442695
          %v1230 = vpow.pop %v1229
          %v1231 = vsub.f32 %v1218, %v1227
          %v1232 = vmul.f32 %v1231, 1.442695
          %v1233 = vpow.pop %v1232
          %v1234 = vsub.f32 %v1222, %v1227
          %v1235 = vmul.f32 %v1234, 1.442695
          %v1236 = vpow.pop %v1235
          %v1237 = vsub.f32 %v1226, %v1227
          %v1238 = vmul.f32 %v1237, 1.442695
          %v1239 = vpow.pop %v1238
          %v1240 = vadd.f32 %v1230, %v1233
          %v1241 = vadd.f32 %v1240, %v1236
          %v1242 = vadd.f32 %v1241, %v1239
          %v1243 = vrcp.pop %v1242
          %v1244 = vsel %vm1015, %v1243, 0.0
          %v1245 = vmul.f32 %v1243, %v1018
          %v1246 = vld [vmem:[#allocation3] sm:$0xff]
          %v1247 = vmul.f32 %v1230, %v1245
          %v1248 = vpack.c.bf16 %v1247, %v1247
          %v1249 = vld [vmem:[#allocation2] sm:$0xff]
          %v1250 = vld [vmem:[%s914] sm:$0xf]
          %v1251 = vld [vmem:[%s914 + $0x4] sm:$0xf]
          %v1254 = vunpack.c.l.b16 %v1250
          %v1255 = vunpack.c.l.b16 %v1251
          %v1256 = vpack.c.b16 %v1255, %v1254
          %vm1258 = vcmask 130048
          %v1260 = vsel %vm1258, %v1248, 0
          %1262 = vmatpush.bf16.msra.mxu0 0
          %1263 = vmatpush.bf16.msra.mxu0 0
          %1264 = vmatpush.bf16.msra.mxu0 0
          %1265 = vmatpush.bf16.msra.mxu0 0
          %1266 = vmatpush.bf16.msra.mxu0 0
          %1267 = vmatpush.bf16.msra.mxu0 0
          %1268 = vmatpush.bf16.msra.mxu0 0
          %1269 = vmatpush.bf16.msra.mxu0 %v1256
          %1270 = vmatmul.bf16.gmra.mxu0 %v1260
          %v1271 = vpop.f32.mrf.mxu0
          %v1272 = vadd.f32 0.0, %v1271
          %v1273 = vpop.f32.mrf.mxu0
          %1274 = vdwg.mxu0
          %v1275 = vadd.f32 %v1249, %v1272
          %1276 = vst.msk [vmem:[#allocation2] sm:$0xff] %vm1258, %v1275
          %vm1277 = vcmp.eq.s32.totalorder %v1000, 0
          %v1278 = vmul.f32 %v1230, %v1244
          %v1279 = vsel %vm1258, %v1278, 0.0
          %1280 = vadd.xlane.f32.xlu0 %v1279
          %v1281 = vpop.xlane.xlu0 %1280
          %v1282 = vrot.slane %v1281, 4
          %v1283 = vadd.f32 %v1281, %v1282
          %v1284 = vrot.slane %v1283, 2
          %v1285 = vadd.f32 %v1283, %v1284
          %v1286 = vrot.slane %v1285, 1
          %v1287 = vadd.f32 %v1285, %v1286
          %s1288 = vtos %v1287
          %v1289 = vstv %s1288
          %v1290 = vsel %vm1277, %v1289, 0.0
          %v1291 = vadd.f32 %v1246, %v1290
          %v1292 = vmul.f32 %v1233, %v1245
          %v1293 = vpack.c.bf16 %v1292, %v1292
          %s1294 = scalar_lea.vmem [#allocation2], 8
          %v1295 = vld [vmem:[%s1294] sm:$0xff]
          %s1296 = scalar_lea.vmem %s914, 8
          %v1297 = vld [vmem:[%s1296] sm:$0xf]
          %v1298 = vld [vmem:[%s1296 + $0x4] sm:$0xf]
          %v1301 = vunpack.c.l.b16 %v1297
          %v1302 = vunpack.c.l.b16 %v1298
          %v1303 = vpack.c.b16 %v1302, %v1301
          %v1306 = vsel %vm1258, %v1293, 0
          %1308 = vmatpush.bf16.msra.mxu0 0
          %1309 = vmatpush.bf16.msra.mxu0 0
          %1310 = vmatpush.bf16.msra.mxu0 0
          %1311 = vmatpush.bf16.msra.mxu0 0
          %1312 = vmatpush.bf16.msra.mxu0 0
          %1313 = vmatpush.bf16.msra.mxu0 0
          %1314 = vmatpush.bf16.msra.mxu0 0
          %1315 = vmatpush.bf16.msra.mxu0 %v1303
          %1316 = vmatmul.bf16.gmra.mxu0 %v1306
          %v1317 = vpop.f32.mrf.mxu0
          %v1318 = vadd.f32 0.0, %v1317
          %v1319 = vpop.f32.mrf.mxu0
          %1320 = vdwg.mxu0
          %v1321 = vadd.f32 %v1295, %v1318
          %1322 = vst.msk [vmem:[%s1294] sm:$0xff] %vm1258, %v1321
          %vm1323 = vcmp.eq.s32.totalorder %v1000, 1
          %v1324 = vmul.f32 %v1233, %v1244
          %v1325 = vsel %vm1258, %v1324, 0.0
          %1326 = vadd.xlane.f32.xlu0 %v1325
          %v1327 = vpop.xlane.xlu0 %1326
          %v1328 = vrot.slane %v1327, 4
          %v1329 = vadd.f32 %v1327, %v1328
          %v1330 = vrot.slane %v1329, 2
          %v1331 = vadd.f32 %v1329, %v1330
          %v1332 = vrot.slane %v1331, 1
          %v1333 = vadd.f32 %v1331, %v1332
          %s1334 = vtos %v1333
          %v1335 = vstv %s1334
          %v1336 = vsel %vm1323, %v1335, 0.0
          %v1337 = vadd.f32 %v1291, %v1336
          %v1338 = vmul.f32 %v1236, %v1245
          %v1339 = vpack.c.bf16 %v1338, %v1338
          %s1340 = scalar_lea.vmem [#allocation2], 16
          %v1341 = vld [vmem:[%s1340] sm:$0xff]
          %s1342 = scalar_lea.vmem %s914, 16
          %v1343 = vld [vmem:[%s1342] sm:$0xf]
          %v1344 = vld [vmem:[%s1342 + $0x4] sm:$0xf]
          %v1347 = vunpack.c.l.b16 %v1343
          %v1348 = vunpack.c.l.b16 %v1344
          %v1349 = vpack.c.b16 %v1348, %v1347
          %v1352 = vsel %vm1258, %v1339, 0
          %1354 = vmatpush.bf16.msra.mxu0 0
          %1355 = vmatpush.bf16.msra.mxu0 0
          %1356 = vmatpush.bf16.msra.mxu0 0
          %1357 = vmatpush.bf16.msra.mxu0 0
          %1358 = vmatpush.bf16.msra.mxu0 0
          %1359 = vmatpush.bf16.msra.mxu0 0
          %1360 = vmatpush.bf16.msra.mxu0 0
          %1361 = vmatpush.bf16.msra.mxu0 %v1349
          %1362 = vmatmul.bf16.gmra.mxu0 %v1352
          %v1363 = vpop.f32.mrf.mxu0
          %v1364 = vadd.f32 0.0, %v1363
          %v1365 = vpop.f32.mrf.mxu0
          %1366 = vdwg.mxu0
          %v1367 = vadd.f32 %v1341, %v1364
          %1368 = vst.msk [vmem:[%s1340] sm:$0xff] %vm1258, %v1367
          %vm1369 = vcmp.eq.s32.totalorder %v1000, 2
          %v1370 = vmul.f32 %v1236, %v1244
          %v1371 = vsel %vm1258, %v1370, 0.0
          %1372 = vadd.xlane.f32.xlu0 %v1371
          %v1373 = vpop.xlane.xlu0 %1372
          %v1374 = vrot.slane %v1373, 4
          %v1375 = vadd.f32 %v1373, %v1374
          %v1376 = vrot.slane %v1375, 2
          %v1377 = vadd.f32 %v1375, %v1376
          %v1378 = vrot.slane %v1377, 1
          %v1379 = vadd.f32 %v1377, %v1378
          %s1380 = vtos %v1379
          %v1381 = vstv %s1380
          %v1382 = vsel %vm1369, %v1381, 0.0
          %v1383 = vadd.f32 %v1337, %v1382
          %v1384 = vmul.f32 %v1239, %v1245
          %v1385 = vpack.c.bf16 %v1384, %v1384
          %s1386 = scalar_lea.vmem [#allocation2], 24
          %v1387 = vld [vmem:[%s1386] sm:$0xff]
          %s1388 = scalar_lea.vmem %s914, 24
          %v1389 = vld [vmem:[%s1388] sm:$0xf]
          %v1390 = vld [vmem:[%s1388 + $0x4] sm:$0xf]
          %v1393 = vunpack.c.l.b16 %v1389
          %v1394 = vunpack.c.l.b16 %v1390
          %v1395 = vpack.c.b16 %v1394, %v1393
          %v1398 = vsel %vm1258, %v1385, 0
          %1400 = vmatpush.bf16.msra.mxu0 0
          %1401 = vmatpush.bf16.msra.mxu0 0
          %1402 = vmatpush.bf16.msra.mxu0 0
          %1403 = vmatpush.bf16.msra.mxu0 0
          %1404 = vmatpush.bf16.msra.mxu0 0
          %1405 = vmatpush.bf16.msra.mxu0 0
          %1406 = vmatpush.bf16.msra.mxu0 0
          %1407 = vmatpush.bf16.msra.mxu0 %v1395
          %1408 = vmatmul.bf16.gmra.mxu0 %v1398
          %v1409 = vpop.f32.mrf.mxu0
          %v1410 = vadd.f32 0.0, %v1409
          %v1411 = vpop.f32.mrf.mxu0
          %1412 = vdwg.mxu0
          %v1413 = vadd.f32 %v1387, %v1410
          %1414 = vst.msk [vmem:[%s1386] sm:$0xff] %vm1258, %v1413
          %vm1415 = vcmp.eq.s32.totalorder %v1000, 3
          %v1416 = vmul.f32 %v1239, %v1244
          %v1417 = vsel %vm1258, %v1416, 0.0
          %1418 = vadd.xlane.f32.xlu0 %v1417
          %v1419 = vpop.xlane.xlu0 %1418
          %v1420 = vrot.slane %v1419, 4
          %v1421 = vadd.f32 %v1419, %v1420
          %v1422 = vrot.slane %v1421, 2
          %v1423 = vadd.f32 %v1421, %v1422
          %v1424 = vrot.slane %v1423, 1
          %v1425 = vadd.f32 %v1423, %v1424
          %s1426 = vtos %v1425
          %v1427 = vstv %s1426
          %v1428 = vsel %vm1415, %v1427, 0.0
          %v1429 = vadd.f32 %v1383, %v1428
          %1430 = vst [vmem:[#allocation3] sm:$0xff] %v1429
        $region100: #{run.5} parent=75 // pred_fallthru
          _
        // Predicated region
        $region101: #{run.5} parent=75 // pred_check
          %p1431 = pneg %p937
        $region102: #{run.5} parent=75 // pred_check_branch
          %1433 = sbr.rel (%p1431) target = $region104
        $region103: #{run.5} parent=75 // pred_region
          %v1434 = vld [vmem:[#allocation2] sm:$0xff]
          %v1435 = vld [vmem:[%s13] sm:$0x1]
          %v1437 = vperm.slane %v1435, 0
          %v1439 = vadd.f32 %v1434, %v1437
          %v1440 = vmax.f32 %v1439, 0.0
          %v1441 = vld [vmem:[%s14] sm:$0xff]
          %v1442 = vld [vmem:[%s14 + $0x8] sm:$0xff]
          %s1443 = scalar_lea.vmem [#allocation2], 8
          %v1444 = vld [vmem:[%s1443] sm:$0xff]
          %s1445 = scalar_lea.vmem %s13, 1
          %v1446 = vld [vmem:[%s1445] sm:$0x1]
          %v1448 = vperm.slane %v1446, 0
          %v1450 = vadd.f32 %v1444, %v1448
          %v1451 = vmax.f32 %v1450, 0.0
          %s1452 = scalar_lea.vmem %s14, 16
          %v1453 = vld [vmem:[%s1452] sm:$0xff]
          %v1454 = vld [vmem:[%s1452 + $0x8] sm:$0xff]
          %vm1455 = vcmask 130048
          %v1457 = vsel %vm1455, %v1451, 0
          %1459 = vmatpush.msra.mxu0 0.0
          %1460 = vmatpush.msra.mxu0 0.0
          %1461 = vmatpush.msra.mxu0 0.0
          %1462 = vmatpush.msra.mxu0 0.0
          %1463 = vmatpush.msra.mxu0 0.0
          %1464 = vmatpush.msra.mxu0 0.0
          %1465 = vmatpush.msra.mxu0 0.0
          %1466 = vmatpush.msra.mxu0 0.0
          %1467 = vmatpush.msra.mxu0 0.0
          %1468 = vmatpush.msra.mxu0 0.0
          %1469 = vmatpush.msra.mxu0 0.0
          %1470 = vmatpush.msra.mxu0 0.0
          %1471 = vmatpush.msra.mxu0 0.0
          %1472 = vmatpush.msra.mxu0 0.0
          %1473 = vmatpush.msra.mxu0 %v1454
          %1474 = vmatpush.msra.mxu0 %v1453
          %1475 = vmatmul.f32.gmra.mxu0 %v1457
          %v1476 = vpop.f32.mrf.mxu0
          %v1477 = vadd.f32 0.0, %v1476
          %1478 = vdwg.mxu0
          %v1480 = vsel %vm1455, %v1440, 0
          %1482 = vmatpush.msra.mxu0 0.0
          %1483 = vmatpush.msra.mxu0 0.0
          %1484 = vmatpush.msra.mxu0 0.0
          %1485 = vmatpush.msra.mxu0 0.0
          %1486 = vmatpush.msra.mxu0 0.0
          %1487 = vmatpush.msra.mxu0 0.0
          %1488 = vmatpush.msra.mxu0 0.0
          %1489 = vmatpush.msra.mxu0 0.0
          %1490 = vmatpush.msra.mxu0 0.0
          %1491 = vmatpush.msra.mxu0 0.0
          %1492 = vmatpush.msra.mxu0 0.0
          %1493 = vmatpush.msra.mxu0 0.0
          %1494 = vmatpush.msra.mxu0 0.0
          %1495 = vmatpush.msra.mxu0 0.0
          %1496 = vmatpush.msra.mxu0 %v1442
          %1497 = vmatpush.msra.mxu0 %v1441
          %1498 = vmatmul.f32.gmra.mxu0 %v1480
          %v1499 = vpop.f32.mrf.mxu0
          %v1500 = vadd.f32 %v1477, %v1499
          %1501 = vdwg.mxu0
          %s1502 = scalar_lea.vmem [#allocation2], 16
          %v1503 = vld [vmem:[%s1502] sm:$0xff]
          %s1504 = scalar_lea.vmem %s13, 2
          %v1505 = vld [vmem:[%s1504] sm:$0x1]
          %v1507 = vperm.slane %v1505, 0
          %v1509 = vadd.f32 %v1503, %v1507
          %v1510 = vmax.f32 %v1509, 0.0
          %s1511 = scalar_lea.vmem %s14, 32
          %v1512 = vld [vmem:[%s1511] sm:$0xff]
          %v1513 = vld [vmem:[%s1511 + $0x8] sm:$0xff]
          %v1515 = vsel %vm1455, %v1510, 0
          %1517 = vmatpush.msra.mxu0 0.0
          %1518 = vmatpush.msra.mxu0 0.0
          %1519 = vmatpush.msra.mxu0 0.0
          %1520 = vmatpush.msra.mxu0 0.0
          %1521 = vmatpush.msra.mxu0 0.0
          %1522 = vmatpush.msra.mxu0 0.0
          %1523 = vmatpush.msra.mxu0 0.0
          %1524 = vmatpush.msra.mxu0 0.0
          %1525 = vmatpush.msra.mxu0 0.0
          %1526 = vmatpush.msra.mxu0 0.0
          %1527 = vmatpush.msra.mxu0 0.0
          %1528 = vmatpush.msra.mxu0 0.0
          %1529 = vmatpush.msra.mxu0 0.0
          %1530 = vmatpush.msra.mxu0 0.0
          %1531 = vmatpush.msra.mxu0 %v1513
          %1532 = vmatpush.msra.mxu0 %v1512
          %1533 = vmatmul.f32.gmra.mxu0 %v1515
          %v1534 = vpop.f32.mrf.mxu0
          %v1535 = vadd.f32 0.0, %v1534
          %1536 = vdwg.mxu0
          %v1537 = vadd.f32 %v1500, %v1535
          %s1538 = scalar_lea.vmem [#allocation2], 24
          %v1539 = vld [vmem:[%s1538] sm:$0xff]
          %s1540 = scalar_lea.vmem %s13, 3
          %v1541 = vld [vmem:[%s1540] sm:$0x1]
          %v1543 = vperm.slane %v1541, 0
          %v1545 = vadd.f32 %v1539, %v1543
          %v1546 = vmax.f32 %v1545, 0.0
          %s1547 = scalar_lea.vmem %s14, 48
          %v1548 = vld [vmem:[%s1547] sm:$0xff]
          %v1549 = vld [vmem:[%s1547 + $0x8] sm:$0xff]
          %v1551 = vsel %vm1455, %v1546, 0
          %1553 = vmatpush.msra.mxu0 0.0
          %1554 = vmatpush.msra.mxu0 0.0
          %1555 = vmatpush.msra.mxu0 0.0
          %1556 = vmatpush.msra.mxu0 0.0
          %1557 = vmatpush.msra.mxu0 0.0
          %1558 = vmatpush.msra.mxu0 0.0
          %1559 = vmatpush.msra.mxu0 0.0
          %1560 = vmatpush.msra.mxu0 0.0
          %1561 = vmatpush.msra.mxu0 0.0
          %1562 = vmatpush.msra.mxu0 0.0
          %1563 = vmatpush.msra.mxu0 0.0
          %1564 = vmatpush.msra.mxu0 0.0
          %1565 = vmatpush.msra.mxu0 0.0
          %1566 = vmatpush.msra.mxu0 0.0
          %1567 = vmatpush.msra.mxu0 %v1549
          %1568 = vmatpush.msra.mxu0 %v1548
          %1569 = vmatmul.f32.gmra.mxu0 %v1551
          %v1570 = vpop.f32.mrf.mxu0
          %v1571 = vadd.f32 0.0, %v1570
          %1572 = vdwg.mxu0
          %v1573 = vadd.f32 %v1537, %v1571
          %v1574 = vld [vmem:[%s15] sm:$0x1]
          %v1576 = vperm.slane %v1574, 0
          %v1578 = vadd.f32 %v1573, %v1576
          %1579 = vst [vmem:[%s931] sm:$0xff] %v1578
          %v1580 = vld [vmem:[#allocation3] sm:$0xff]
          %1581 = vst [vmem:[%s935] sm:$0xff] %v1580
        $region104: #{run.5} parent=75 // pred_fallthru
          _
        %p1582 = scmp.lt.s32.totalorder %s49, 1
        %s1583 = scalar_select %p1582, %s49, 1
        %s1584 = smul.addr %s1583, 8
        %s1585 = scalar_lea.vmem %s16, %s1584
        %p1586 = scmp.lt.s32.totalorder %s49, 1
        %s1587 = scalar_select %p1586, %s49, 1
        %s1588 = smul.addr %s1587, 8
        %s1589 = scalar_lea.vmem %s17, %s1588
        // Predicated region
        $region105: #{run.5} parent=75 // pred_check
          %p1590 = pneg %p476
        $region106: #{run.5} parent=75 // pred_check_branch
          %1592 = sbr.rel (%p1590) target = $region108
        $region107: #{run.5} parent=75 // pred_region
          _
        $region108: #{run.5} parent=75 // pred_fallthru
          _
        // Predicated region
        $region109: #{run.5} parent=75 // pred_check
          %p1593 = pneg %p502
        $region110: #{run.5} parent=75 // pred_check_branch
          %1595 = sbr.rel (%p1593) target = $region112
        $region111: #{run.5} parent=75 // pred_region
          _
        $region112: #{run.5} parent=75 // pred_fallthru
          _
      $region76: #{run.5} parent=5 // pred_fallthru
        _
      %p1596 = scmp.le.s32.totalorder 2, %s40
      // Predicated region
      $region113: #{run.5} parent=5 // pred_check
        %p1597 = pneg %p1596
      $region114: #{run.5} parent=5 // pred_check_branch
        %1599 = sbr.rel (%p1597) target = $region116
      $region115: #{run.5} parent=5 // pred_region
        %s1600 = ssub.s32 %s40, 2
        // Predicated region
        $region117: #{run.5} parent=115 // pred_check
          %p1601 = pneg %p482
        $region118: #{run.5} parent=115 // pred_check_branch
          %1603 = sbr.rel (%p1601) target = $region120
        $region119: #{run.5} parent=115 // pred_region
          %p1604 = scmp.lt.s32.totalorder %s51, 1
          %s1605 = scalar_select %p1604, %s51, 1
          %s1606 = smul.addr %s1605, 8
          %s1607 = scalar_lea.vmem %s16, %s1606
        $region120: #{run.5} parent=115 // pred_fallthru
          _
        // Predicated region
        $region121: #{run.5} parent=115 // pred_check
          %p1608 = pneg %p508
        $region122: #{run.5} parent=115 // pred_check_branch
          %1610 = sbr.rel (%p1608) target = $region124
        $region123: #{run.5} parent=115 // pred_region
          %p1611 = scmp.lt.s32.totalorder %s51, 1
          %s1612 = scalar_select %p1611, %s51, 1
          %s1613 = smul.addr %s1612, 8
          %s1614 = scalar_lea.vmem %s17, %s1613
        $region124: #{run.5} parent=115 // pred_fallthru
          _
      $region116: #{run.5} parent=5 // pred_fallthru
        _
    $region6: #{run.5} parent=1 // loop_footer
      %s44 = sadd.s32 1, %s40
    $region7: #{run.5} parent=1 // loop_footer_branch
      %39 = sbr.rel target = $region3
    $region8: #{run.5} parent=1 // loop_exit
      _
    %1615 = vsyncpa [#allocation8], 1
    %s1616 = scalar_lea.sflag [#allocation8], 1
    %1617 = vsyncpa %s1616, 1
    %1618 = vsyncpa [#allocation10], 1
    %1619 = vsyncpa [#allocation13], 1

</llo_original>
